<compile_context>
chip_gen: v5e
topology: v5e:2x2
jax: 0.10.0
libtpu: 0.0.40
codegen_flags: <defaults>
</compile_context>

<pallas_src>
import math
import functools

import jax
import jax.numpy as jnp
from jax.experimental import pallas as pl
from jax.experimental.pallas import tpu as pltpu


_VMEM_LIMIT = 48 * 1024 * 1024          # v7x-safe budget (64 MiB physical per TC)
_TM_CANDIDATES = (512, 256, 128)        # sublane-dim tiles (multiples of 8)
_TN_CANDIDATES = (512, 256, 128)        # lane-dim tiles (>=256 keeps v6e MXU full)
_TK_CANDIDATES = (1024, 512, 256, 128)  # contraction tiles


def _pick_tile(dim, candidates):
    """Largest candidate that divides `dim`; else fall back to the full dim."""
    # TODO(synk): pad/mask ragged edge tiles instead of falling back to a
    # full-dim block when dim is not a multiple of any candidate.
    for c in candidates:
        if c <= dim and dim % c == 0:
            return c
    return dim


def _cparams(semantics):
    return pltpu.CompilerParams(dimension_semantics=semantics,
                                vmem_limit_bytes=_VMEM_LIMIT)


# --------------------------------------------------------------------------
# Pallas kernels
# --------------------------------------------------------------------------

def _ln_linear_kernel(x_ref, g_ref, b_ref, wt_ref, bias_ref, o_ref, *,
                      eps, activation):
    # Fused LayerNorm (f32 stats over the full feature dim) + matmul + bias
    # (+ optional QuickGELU).  MXU inputs stay in the incoming dtype.
    x = x_ref[...].astype(jnp.float32)
    mean = jnp.mean(x, axis=-1, keepdims=True)
    xc = x - mean
    var = jnp.mean(xc * xc, axis=-1, keepdims=True)
    xn = xc * jax.lax.rsqrt(var + eps)
    xn = xn * g_ref[...].astype(jnp.float32) + b_ref[...].astype(jnp.float32)
    xn = xn.astype(x_ref.dtype)                      # LN returns orig dtype
    y = jnp.dot(xn, wt_ref[...], preferred_element_type=jnp.float32)
    y = y + bias_ref[...].astype(jnp.float32)
    if activation == "quick_gelu":
        y = y * jax.nn.sigmoid(1.702 * y)
    o_ref[...] = y.astype(o_ref.dtype)


def _linear_kernel(x_ref, wt_ref, bias_ref, o_ref, acc_ref, *, activation):
    # Tiled y = x @ Wt + b with K-axis accumulation; bias/activation fused
    # into the finalize branch.
    k = pl.program_id(2)

    @pl.when(k == 0)
    def _():
        acc_ref[...] = jnp.zeros_like(acc_ref)

    acc_ref[...] += jnp.dot(x_ref[...], wt_ref[...],
                            preferred_element_type=jnp.float32)

    @pl.when(k == pl.num_programs(2) - 1)
    def _():
        y = acc_ref[...] + bias_ref[...].astype(jnp.float32)
        if activation == "quick_gelu":
            y = y * jax.nn.sigmoid(1.702 * y)
        o_ref[...] = y.astype(o_ref.dtype)


def _linear_residual_kernel(x_ref, wt_ref, bias_ref, r_ref, o_ref, acc_ref):
    # Tiled y = residual + (x @ Wt + b); residual add fused into finalize.
    k = pl.program_id(2)

    @pl.when(k == 0)
    def _():
        acc_ref[...] = jnp.zeros_like(acc_ref)

    acc_ref[...] += jnp.dot(x_ref[...], wt_ref[...],
                            preferred_element_type=jnp.float32)

    @pl.when(k == pl.num_programs(2) - 1)
    def _():
        y = (acc_ref[...] + bias_ref[...].astype(jnp.float32)
             + r_ref[...].astype(jnp.float32))
        o_ref[...] = y.astype(o_ref.dtype)


def _attention_kernel(qkv_ref, o_ref, *, n_head, scale):
    # One (batch*frame) element per grid step, all heads in-kernel.
    # qkv_ref: (1, L, 3C); o_ref: (1, L, C) -> lane-dense output writes.
    qkv = qkv_ref[0]                                  # (L, 3C)
    C = qkv.shape[-1] // 3
    Dh = C // n_head
    for h in range(n_head):
        q = qkv[:, h * Dh:(h + 1) * Dh]
        k = qkv[:, C + h * Dh:C + (h + 1) * Dh]
        v = qkv[:, 2 * C + h * Dh:2 * C + (h + 1) * Dh]
        # s = q @ k^T (contract last dims, f32 accumulation on the MXU)
        s = jax.lax.dot_general(q, k, (((1,), (1,)), ((), ())),
                                preferred_element_type=jnp.float32) * scale
        m = jnp.max(s, axis=-1, keepdims=True)
        p = jnp.exp(s - m)
        l = jnp.sum(p, axis=-1, keepdims=True)
        o_h = jnp.dot(p.astype(v.dtype), v, preferred_element_type=jnp.float32)
        o_h = o_h * pl.reciprocal(l, approx=True)     # EUP, applied to (L, Dh)
        o_ref[0, :, h * Dh:(h + 1) * Dh] = o_h.astype(o_ref.dtype)


def _dwconv3d_kernel(x_ref, w_ref, b_ref, o_ref, *, ksize):
    # Depthwise 3-D conv on a (1, Tp, Hp, Wp, Ca) block: W on sublanes,
    # channels on lanes.  Taps are pre-broadcast to (W, Ca) by the caller so
    # no per-tap broadcast_in_dim is re-emitted inside the loop.
    kT, kH, kW = ksize
    _, T, H, W, Ca = o_ref.shape
    xp = x_ref[0].astype(jnp.float32)                 # (Tp, Hp, Wp, Ca)
    acc = jnp.zeros((T, H, W, Ca), jnp.float32)
    for dt in range(kT):
        for dh in range(kH):
            for dw in range(kW):
                idx = (dt * kH + dh) * kW + dw
                xs = xp[dt:dt + T, dh:dh + H, dw:dw + W, :]
                acc = acc + xs * w_ref[idx].astype(jnp.float32)   # (W, Ca)
    acc = acc + b_ref[...].astype(jnp.float32)
    o_ref[0] = acc.astype(o_ref.dtype)


def _adapter_fc2_residual_kernel(h_ref, wt_ref, b_ref, x_ref, o_ref):
    # delta = h @ Wt + b added to tokens 1..L-1 of x (CLS passes through);
    # output aliases x in place (input_output_aliases in the wrapper).
    h = h_ref[0]                                      # (L-1, Ca)
    d = jnp.dot(h, wt_ref[...], preferred_element_type=jnp.float32)
    d = d + b_ref[...].astype(jnp.float32)            # (L-1, C)
    o_ref[0, 0:1, :] = x_ref[0, 0:1, :]
    tok = x_ref[0, 1:, :].astype(jnp.float32) + d
    o_ref[0, 1:, :] = tok.astype(o_ref.dtype)


# --------------------------------------------------------------------------
# Wrappers
# --------------------------------------------------------------------------

def ln_linear(x2d, gamma, beta, wt, bias, activation=None, eps=1e-5):
    # Fused LayerNorm + (x2d @ wt + bias); wt already transposed to (K, N).
    M, K = x2d.shape
    N = wt.shape[1]
    tm = _pick_tile(M, _TM_CANDIDATES)
    tn = _pick_tile(N, _TN_CANDIDATES)
    g2 = gamma.reshape(1, K)
    b2 = beta.reshape(1, K)
    bias2 = bias.reshape(1, N)
    return pl.pallas_call(
        functools.partial(_ln_linear_kernel, eps=eps, activation=activation),
        grid=(M // tm, N // tn),
        in_specs=[
            pl.BlockSpec((tm, K), lambda i, j: (i, 0)),
            pl.BlockSpec((1, K), lambda i, j: (0, 0)),
            pl.BlockSpec((1, K), lambda i, j: (0, 0)),
            pl.BlockSpec((K, tn), lambda i, j: (0, j)),
            pl.BlockSpec((1, tn), lambda i, j: (0, j)),
        ],
        out_specs=pl.BlockSpec((tm, tn), lambda i, j: (i, j)),
        out_shape=jax.ShapeDtypeStruct((M, N), x2d.dtype),
        compiler_params=_cparams(("parallel", "parallel")),
    )(x2d, g2, b2, wt, bias2)


def linear(x2d, wt, bias, activation=None):
    # Tiled (M//tm, N//tn, K//tk) matmul with f32 accumulator scratch.
    M, K = x2d.shape
    N = wt.shape[1]
    tm = _pick_tile(M, _TM_CANDIDATES)
    tn = _pick_tile(N, _TN_CANDIDATES)
    tk = _pick_tile(K, _TK_CANDIDATES)
    bias2 = bias.reshape(1, N)
    return pl.pallas_call(
        functools.partial(_linear_kernel, activation=activation),
        grid=(M // tm, N // tn, K // tk),
        in_specs=[
            pl.BlockSpec((tm, tk), lambda i, j, k: (i, k)),
            pl.BlockSpec((tk, tn), lambda i, j, k: (k, j)),
            pl.BlockSpec((1, tn), lambda i, j, k: (0, j)),
        ],
        out_specs=pl.BlockSpec((tm, tn), lambda i, j, k: (i, j)),
        out_shape=jax.ShapeDtypeStruct((M, N), x2d.dtype),
        scratch_shapes=[pltpu.VMEM((tm, tn), jnp.float32)],
        compiler_params=_cparams(("parallel", "parallel", "arbitrary")),
    )(x2d, wt, bias2)


def linear_residual(x2d, wt, bias, residual2d):
    M, K = x2d.shape
    N = wt.shape[1]
    tm = _pick_tile(M, _TM_CANDIDATES)
    tn = _pick_tile(N, _TN_CANDIDATES)
    tk = _pick_tile(K, _TK_CANDIDATES)
    bias2 = bias.reshape(1, N)
    return pl.pallas_call(
        _linear_residual_kernel,
        grid=(M // tm, N // tn, K // tk),
        in_specs=[
            pl.BlockSpec((tm, tk), lambda i, j, k: (i, k)),
            pl.BlockSpec((tk, tn), lambda i, j, k: (k, j)),
            pl.BlockSpec((1, tn), lambda i, j, k: (0, j)),
            pl.BlockSpec((tm, tn), lambda i, j, k: (i, j)),
        ],
        out_specs=pl.BlockSpec((tm, tn), lambda i, j, k: (i, j)),
        out_shape=jax.ShapeDtypeStruct((M, N), x2d.dtype),
        scratch_shapes=[pltpu.VMEM((tm, tn), jnp.float32)],
        compiler_params=_cparams(("parallel", "parallel", "arbitrary")),
    )(x2d, wt, bias2, residual2d)


def attention(qkv, n_head):
    # qkv: (BT, L, 3C)  ->  (BT, L, C), one grid step per batch*frame element.
    BT, L, C3 = qkv.shape
    C = C3 // 3
    Dh = C // n_head
    scale = 1.0 / math.sqrt(Dh)
    return pl.pallas_call(
        functools.partial(_attention_kernel, n_head=n_head, scale=scale),
        grid=(BT,),
        in_specs=[pl.BlockSpec((1, L, C3), lambda b: (b, 0, 0))],
        out_specs=pl.BlockSpec((1, L, C), lambda b: (b, 0, 0)),
        out_shape=jax.ShapeDtypeStruct((BT, L, C), qkv.dtype),
        compiler_params=_cparams(("parallel",)),
    )(qkv)


def dwconv3d(h, w, bias, ksize):
    # h: (B, T, H, W, Ca) unpadded; depthwise conv with "same" padding.
    B, T, H, W, Ca = h.shape
    kT, kH, kW = ksize
    pt, ph, pw = kT // 2, kH // 2, kW // 2
    hpad = jnp.pad(h, ((0, 0), (pt, pt), (ph, ph), (pw, pw), (0, 0)))
    Tp, Hp, Wp = T + 2 * pt, H + 2 * ph, W + 2 * pw
    # Pre-broadcast each tap to the sublane extent W (JAX won't CSE
    # broadcast_in_dim inside the tap loop).
    wtaps = jnp.broadcast_to(w.reshape(kT * kH * kW, 1, Ca),
                             (kT * kH * kW, W, Ca))
    bias2 = bias.reshape(1, Ca)
    return pl.pallas_call(
        functools.partial(_dwconv3d_kernel, ksize=ksize),
        grid=(B,),
        in_specs=[
            pl.BlockSpec((1, Tp, Hp, Wp, Ca), lambda b: (b, 0, 0, 0, 0)),
            pl.BlockSpec((kT * kH * kW, W, Ca), lambda b: (0, 0, 0)),
            pl.BlockSpec((1, Ca), lambda b: (0, 0)),
        ],
        out_specs=pl.BlockSpec((1, T, H, W, Ca), lambda b: (b, 0, 0, 0, 0)),
        out_shape=jax.ShapeDtypeStruct((B, T, H, W, Ca), h.dtype),
        compiler_params=_cparams(("parallel",)),
    )(hpad, wtaps, bias2)


def adapter_fc2_residual(h, wt, bias, x):
    # h: (BT, L-1, Ca); x: (BT, L, C).  Returns x with fc2(h) added to tokens
    # 1..L-1; the output aliases the x buffer (no XLA scatter-add pass).
    BT, HW, Ca = h.shape
    _, L, C = x.shape
    bias2 = bias.reshape(1, C)
    return pl.pallas_call(
        _adapter_fc2_residual_kernel,
        grid=(BT,),
        in_specs=[
            pl.BlockSpec((1, HW, Ca), lambda b: (b, 0, 0)),
            pl.BlockSpec((Ca, C), lambda b: (0, 0)),
            pl.BlockSpec((1, C), lambda b: (0, 0)),
            pl.BlockSpec((1, L, C), lambda b: (b, 0, 0)),
        ],
        out_specs=pl.BlockSpec((1, L, C), lambda b: (b, 0, 0)),
        out_shape=jax.ShapeDtypeStruct((BT, L, C), x.dtype),
        input_output_aliases={3: 0},
        compiler_params=_cparams(("parallel",)),
    )(h, wt, bias2, x)


# --------------------------------------------------------------------------
# Module-level forward passes
# --------------------------------------------------------------------------

def adapter_forward(x, p, num_frames):
    """Adapter.forward: fc1 -> depthwise conv3d -> fc2 added to tokens 1..L-1."""
    BT, L, C = x.shape
    B = BT // num_frames
    kT, kH, kW = p["conv_w"].shape[:3]
    Ca = p["conv_w"].shape[-1]
    HW = L - 1
    Hs = int(round(math.sqrt(HW)))
    Ws = Hs
    assert Hs * Ws == HW

    tokens = x[:, 1:, :].reshape(BT * HW, C)
    h = linear(tokens, p["fc1_wt"], p["fc1_b"])              # (BT*HW, Ca)
    h = h.reshape(B, num_frames, Hs, Ws, Ca)                 # channels-last
    hc = dwconv3d(h, p["conv_w"], p["conv_b"], (kT, kH, kW)) # (B, T, H, W, Ca)
    hc = hc.reshape(BT, HW, Ca)
    return adapter_fc2_residual(hc, p["fc2_wt"], p["fc2_b"], x)


def residual_attention_block(x, params, *, n_head, num_frames):
    """Forward pass of ResidualAttentionBlock. x: (B*T, L, C)."""
    BT, L, C = x.shape

    if params["adapter_pre_attn"] is not None:
        x = adapter_forward(x, params["adapter_pre_attn"], num_frames)

    # ---- x = x + attention(ln_1(x)) ----
    x2d = x.reshape(BT * L, C)
    qkv = ln_linear(x2d, params["ln1_g"], params["ln1_b"],
                    params["in_proj_wt"], params["in_proj_b"])     # (BT*L, 3C)
    qkv = qkv.reshape(BT, L, 3 * C)
    o = attention(qkv, n_head)                                     # (BT, L, C)
    x2d = linear_residual(o.reshape(BT * L, C),
                          params["out_proj_wt"], params["out_proj_b"], x2d)
    x = x2d.reshape(BT, L, C)

    if params["adapter_pre_mlp"] is not None:
        x = adapter_forward(x, params["adapter_pre_mlp"], num_frames)

    # ---- x = x + mlp(ln_2(x)) ----
    x2d = x.reshape(BT * L, C)
    hidden = ln_linear(x2d, params["ln2_g"], params["ln2_b"],
                       params["c_fc_wt"], params["c_fc_b"],
                       activation="quick_gelu")                    # (BT*L, 4C)
    x2d = linear_residual(hidden, params["c_proj_wt"], params["c_proj_b"], x2d)
    return x2d.reshape(BT, L, C)


# --------------------------------------------------------------------------
# Deterministic parameter construction (weights stored pre-transposed (K, N))
# --------------------------------------------------------------------------

def _init_adapter(key, d_model, adapter_width, kernel_size):
    k1, k2 = jax.random.split(key)
    kT, kH, kW = kernel_size
    # Matches Adapter.__init__: conv weight/bias and fc biases are zeroed.
    return {
        "fc1_wt": 0.02 * jax.random.normal(k1, (d_model, adapter_width), jnp.float32),
        "fc1_b": jnp.zeros((adapter_width,), jnp.float32),
        "conv_w": jnp.zeros((kT, kH, kW, adapter_width), jnp.float32),
        "conv_b": jnp.zeros((adapter_width,), jnp.float32),
        "fc2_wt": 0.02 * jax.random.normal(k2, (adapter_width, d_model), jnp.float32),
        "fc2_b": jnp.zeros((d_model,), jnp.float32),
    }


def init_params(key, d_model, adapter_width, kernel_size,
                adapter_pre_attn=True, adapter_pre_mlp=True):
    ks = jax.random.split(key, 6)
    return {
        "in_proj_wt": 0.02 * jax.random.normal(ks[0], (d_model, 3 * d_model), jnp.float32),
        "in_proj_b": jnp.zeros((3 * d_model,), jnp.float32),
        "out_proj_wt": 0.02 * jax.random.normal(ks[1], (d_model, d_model), jnp.float32),
        "out_proj_b": jnp.zeros((d_model,), jnp.float32),
        "ln1_g": jnp.ones((d_model,), jnp.float32),
        "ln1_b": jnp.zeros((d_model,), jnp.float32),
        "ln2_g": jnp.ones((d_model,), jnp.float32),
        "ln2_b": jnp.zeros((d_model,), jnp.float32),
        "c_fc_wt": 0.02 * jax.random.normal(ks[2], (d_model, 4 * d_model), jnp.float32),
        "c_fc_b": jnp.zeros((4 * d_model,), jnp.float32),
        "c_proj_wt": 0.02 * jax.random.normal(ks[3], (4 * d_model, d_model), jnp.float32),
        "c_proj_b": jnp.zeros((d_model,), jnp.float32),
        "adapter_pre_attn": _init_adapter(ks[4], d_model, adapter_width, kernel_size)
                            if adapter_pre_attn else None,
        "adapter_pre_mlp": _init_adapter(ks[5], d_model, adapter_width, kernel_size)
                           if adapter_pre_mlp else None,
    }


# --------------------------------------------------------------------------

if __name__ == "__main__":
    d_model = 32
    n_head = 4
    adapter_width = 8
    adapter_kernel_size = (3, 3, 3)
    B, T = 2, 2                 # batch, frames
    Hs = Ws = 4                 # spatial grid of patch tokens
    L = Hs * Ws + 1             # +1 CLS token
    BT = B * T

    key = jax.random.PRNGKey(0)
    kx, kp = jax.random.split(key)
    x = jax.random.normal(kx, (BT, L, d_model), jnp.float32)

    params = init_params(kp, d_model, adapter_width, adapter_kernel_size,
                         adapter_pre_attn=True, adapter_pre_mlp=True)

    fwd = jax.jit(functools.partial(residual_attention_block,
                                    n_head=n_head, num_frames=T))
    out = jax.block_until_ready(fwd(x, params))

    assert out.shape == (BT, L, d_model)
    assert bool(jnp.all(jnp.isfinite(out)))
    print("KERNEL_OK")
</pallas_src>

<mosaic_0001>
module attributes {stable_mosaic.version = 11 : i64} {
  func.func @_linear_kernel(%arg0: i32, %arg1: i32, %arg2: i32, %arg3: memref<64x32xf32, #tpu.memory_space<vmem>>, %arg4: memref<32x8xf32, #tpu.memory_space<vmem>>, %arg5: memref<1x8xf32, #tpu.memory_space<vmem>>, %arg6: memref<64x8xf32, #tpu.memory_space<vmem>>, %arg7: memref<64x8xf32, #tpu.memory_space<vmem>>) attributes {dimension_semantics = [#tpu.dimension_semantics<parallel>, #tpu.dimension_semantics<parallel>, #tpu.dimension_semantics<arbitrary>], iteration_bounds = array<i64: 1, 1, 1>, scalar_prefetch = 0 : i64, scratch_operands = 1 : i64, tpu.core_type = #tpu.core_type<tc>, window_params = [{transform_indices = @transform_0, window_bounds = array<i64: 64, 32>}, {transform_indices = @transform_1, window_bounds = array<i64: 32, 8>}, {transform_indices = @transform_2, window_bounds = array<i64: 1, 8>}, {transform_indices = @transform_3, window_bounds = array<i64: 64, 8>}]} {
    %c0_i32 = arith.constant 0 : i32
    %0 = arith.cmpi eq, %arg2, %c0_i32 : i32
    %1 = arith.extui %0 : i1 to i32
    %c0_i32_0 = arith.constant 0 : i32
    %2 = arith.cmpi ne, %1, %c0_i32_0 : i32
    scf.if %2 {
      %cst_10 = arith.constant 0.000000e+00 : f32
      %12 = vector.broadcast %cst_10 : f32 to vector<64x8xf32>
      %c0_11 = arith.constant 0 : index
      %c0_12 = arith.constant 0 : index
      %13 = vector.load %arg7[%c0_11, %c0_12] : memref<64x8xf32, #tpu.memory_space<vmem>>, vector<64x8xf32>
      tpu.vector_store %arg7[%c0_11, %c0_12], %12 {strides = array<i32>} : memref<64x8xf32, #tpu.memory_space<vmem>>, vector<64x8xf32>,
    } else {
    }
    %c0 = arith.constant 0 : index
    %c0_1 = arith.constant 0 : index
    %3 = vector.load %arg7[%c0, %c0_1] : memref<64x8xf32, #tpu.memory_space<vmem>>, vector<64x8xf32>
    %c0_2 = arith.constant 0 : index
    %c0_3 = arith.constant 0 : index
    %4 = vector.load %arg3[%c0_2, %c0_3] : memref<64x32xf32, #tpu.memory_space<vmem>>, vector<64x32xf32>
    %c0_4 = arith.constant 0 : index
    %c0_5 = arith.constant 0 : index
    %5 = vector.load %arg4[%c0_4, %c0_5] : memref<32x8xf32, #tpu.memory_space<vmem>>, vector<32x8xf32>
    %cst = arith.constant dense<0.000000e+00> : vector<64x8xf32>
    %6 = tpu.matmul %4, %5, %cst {dimension_numbers = #tpu.dot_dimension_numbers<[1], [0], [0], [1], [0, 0, 1, 1], [], []>} : vector<64x32xf32>, vector<32x8xf32>, vector<64x8xf32> -> vector<64x8xf32>
    %7 = arith.addf %3, %6 : vector<64x8xf32>
    %c0_6 = arith.constant 0 : index
    %c0_7 = arith.constant 0 : index
    %8 = vector.load %arg7[%c0_6, %c0_7] : memref<64x8xf32, #tpu.memory_space<vmem>>, vector<64x8xf32>
    tpu.vector_store %arg7[%c0_6, %c0_7], %7 {strides = array<i32>} : memref<64x8xf32, #tpu.memory_space<vmem>>, vector<64x8xf32>,
    %c0_i32_8 = arith.constant 0 : i32
    %9 = arith.cmpi eq, %arg2, %c0_i32_8 : i32
    %10 = arith.extui %9 : i1 to i32
    %c0_i32_9 = arith.constant 0 : i32
    %11 = arith.cmpi ne, %10, %c0_i32_9 : i32
    scf.if %11 {
      %c0_10 = arith.constant 0 : index
      %c0_11 = arith.constant 0 : index
      %12 = vector.load %arg7[%c0_10, %c0_11] : memref<64x8xf32, #tpu.memory_space<vmem>>, vector<64x8xf32>
      %c0_12 = arith.constant 0 : index
      %c0_13 = arith.constant 0 : index
      %13 = vector.load %arg5[%c0_12, %c0_13] : memref<1x8xf32, #tpu.memory_space<vmem>>, vector<1x8xf32>
      %14 = vector.broadcast %13 : vector<1x8xf32> to vector<64x8xf32>
      %15 = arith.addf %12, %14 : vector<64x8xf32>
      %c0_14 = arith.constant 0 : index
      %c0_15 = arith.constant 0 : index
      %16 = vector.load %arg6[%c0_14, %c0_15] : memref<64x8xf32, #tpu.memory_space<vmem>>, vector<64x8xf32>
      tpu.vector_store %arg6[%c0_14, %c0_15], %15 {strides = array<i32>} : memref<64x8xf32, #tpu.memory_space<vmem>>, vector<64x8xf32>,
    } else {
    }
    return
  }
  func.func @transform_0(%arg0: i32, %arg1: i32, %arg2: i32) -> (i32, i32) {
    %c0_i32 = arith.constant 0 : i32
    return %arg0, %arg2 : i32, i32
  }
  func.func @transform_1(%arg0: i32, %arg1: i32, %arg2: i32) -> (i32, i32) {
    %c0_i32 = arith.constant 0 : i32
    return %arg2, %arg1 : i32, i32
  }
  func.func @transform_2(%arg0: i32, %arg1: i32, %arg2: i32) -> (i32, i32) {
    %c0_i32 = arith.constant 0 : i32
    %c0_i32_0 = arith.constant 0 : i32
    return %c0_i32, %arg1 : i32, i32
  }
  func.func @transform_3(%arg0: i32, %arg1: i32, %arg2: i32) -> (i32, i32) {
    %c0_i32 = arith.constant 0 : i32
    return %arg0, %arg1 : i32, i32
  }
}

module attributes {stable_mosaic.version = 11 : i64} {
  func.func @_dwconv3d_kernel(%arg0: i32, %arg1: memref<1x4x6x6x8xf32, #tpu.memory_space<vmem>>, %arg2: memref<27x4x8xf32, #tpu.memory_space<vmem>>, %arg3: memref<1x8xf32, #tpu.memory_space<vmem>>, %arg4: memref<1x2x4x4x8xf32, #tpu.memory_space<vmem>>) attributes {dimension_semantics = [#tpu.dimension_semantics<parallel>], iteration_bounds = array<i64: 2>, scalar_prefetch = 0 : i64, scratch_operands = 0 : i64, tpu.core_type = #tpu.core_type<tc>, window_params = [{transform_indices = @transform_0, window_bounds = array<i64: 1, 4, 6, 6, 8>}, {pipeline_mode = #tpu.pipeline_mode<synchronous>, transform_indices = @transform_1, window_bounds = array<i64: 27, 4, 8>}, {pipeline_mode = #tpu.pipeline_mode<synchronous>, transform_indices = @transform_2, window_bounds = array<i64: 1, 8>}, {transform_indices = @transform_3, window_bounds = array<i64: 1, 2, 4, 4, 8>}]} {
    %c0 = arith.constant 0 : index
    %c0_0 = arith.constant 0 : index
    %c0_1 = arith.constant 0 : index
    %c0_2 = arith.constant 0 : index
    %c0_3 = arith.constant 0 : index
    %0 = vector.load %arg1[%c0, %c0_0, %c0_1, %c0_2, %c0_3] : memref<1x4x6x6x8xf32, #tpu.memory_space<vmem>>, vector<1x4x6x6x8xf32>
    %1 = vector.shape_cast %0 : vector<1x4x6x6x8xf32> to vector<4x6x6x8xf32>
    %cst = arith.constant 0.000000e+00 : f32
    %2 = vector.broadcast %cst : f32 to vector<2x4x4x8xf32>
    %3 = vector.extract_strided_slice %1 {offsets = [0, 0, 0, 0], sizes = [2, 4, 4, 8], strides = [1, 1, 1, 1]} : vector<4x6x6x8xf32> to vector<2x4x4x8xf32>
    %c0_4 = arith.constant 0 : index
    %c0_5 = arith.constant 0 : index
    %c0_6 = arith.constant 0 : index
    %4 = vector.load %arg2[%c0_4, %c0_5, %c0_6] : memref<27x4x8xf32, #tpu.memory_space<vmem>>, vector<1x4x8xf32>
    %5 = vector.shape_cast %4 : vector<1x4x8xf32> to vector<4x8xf32>
    %6 = vector.shape_cast %5 : vector<4x8xf32> to vector<1x1x4x8xf32>
    %7 = vector.broadcast %6 : vector<1x1x4x8xf32> to vector<2x4x4x8xf32>
    %8 = arith.mulf %3, %7 : vector<2x4x4x8xf32>
    %9 = arith.addf %2, %8 : vector<2x4x4x8xf32>
    %10 = vector.extract_strided_slice %1 {offsets = [0, 0, 1, 0], sizes = [2, 4, 4, 8], strides = [1, 1, 1, 1]} : vector<4x6x6x8xf32> to vector<2x4x4x8xf32>
    %c1 = arith.constant 1 : index
    %c0_7 = arith.constant 0 : index
    %c0_8 = arith.constant 0 : index
    %11 = vector.load %arg2[%c1, %c0_7, %c0_8] : memref<27x4x8xf32, #tpu.memory_space<vmem>>, vector<1x4x8xf32>
    %12 = vector.shape_cast %11 : vector<1x4x8xf32> to vector<4x8xf32>
    %13 = vector.shape_cast %12 : vector<4x8xf32> to vector<1x1x4x8xf32>
    %14 = vector.broadcast %13 : vector<1x1x4x8xf32> to vector<2x4x4x8xf32>
    %15 = arith.mulf %10, %14 : vector<2x4x4x8xf32>
    %16 = arith.addf %9, %15 : vector<2x4x4x8xf32>
    %17 = vector.extract_strided_slice %1 {offsets = [0, 0, 2, 0], sizes = [2, 4, 4, 8], strides = [1, 1, 1, 1]} : vector<4x6x6x8xf32> to vector<2x4x4x8xf32>
    %c2 = arith.constant 2 : index
    %c0_9 = arith.constant 0 : index
    %c0_10 = arith.constant 0 : index
    %18 = vector.load %arg2[%c2, %c0_9, %c0_10] : memref<27x4x8xf32, #tpu.memory_space<vmem>>, vector<1x4x8xf32>
    %19 = vector.shape_cast %18 : vector<1x4x8xf32> to vector<4x8xf32>
    %20 = vector.shape_cast %19 : vector<4x8xf32> to vector<1x1x4x8xf32>
    %21 = vector.broadcast %20 : vector<1x1x4x8xf32> to vector<2x4x4x8xf32>
    %22 = arith.mulf %17, %21 : vector<2x4x4x8xf32>
    %23 = arith.addf %16, %22 : vector<2x4x4x8xf32>
    %24 = vector.extract_strided_slice %1 {offsets = [0, 1, 0, 0], sizes = [2, 4, 4, 8], strides = [1, 1, 1, 1]} : vector<4x6x6x8xf32> to vector<2x4x4x8xf32>
    %c3 = arith.constant 3 : index
    %c0_11 = arith.constant 0 : index
    %c0_12 = arith.constant 0 : index
    %25 = vector.load %arg2[%c3, %c0_11, %c0_12] : memref<27x4x8xf32, #tpu.memory_space<vmem>>, vector<1x4x8xf32>
    %26 = vector.shape_cast %25 : vector<1x4x8xf32> to vector<4x8xf32>
    %27 = vector.shape_cast %26 : vector<4x8xf32> to vector<1x1x4x8xf32>
    %28 = vector.broadcast %27 : vector<1x1x4x8xf32> to vector<2x4x4x8xf32>
    %29 = arith.mulf %24, %28 : vector<2x4x4x8xf32>
    %30 = arith.addf %23, %29 : vector<2x4x4x8xf32>
    %31 = vector.extract_strided_slice %1 {offsets = [0, 1, 1, 0], sizes = [2, 4, 4, 8], strides = [1, 1, 1, 1]} : vector<4x6x6x8xf32> to vector<2x4x4x8xf32>
    %c4 = arith.constant 4 : index
    %c0_13 = arith.constant 0 : index
    %c0_14 = arith.constant 0 : index
    %32 = vector.load %arg2[%c4, %c0_13, %c0_14] : memref<27x4x8xf32, #tpu.memory_space<vmem>>, vector<1x4x8xf32>
    %33 = vector.shape_cast %32 : vector<1x4x8xf32> to vector<4x8xf32>
    %34 = vector.shape_cast %33 : vector<4x8xf32> to vector<1x1x4x8xf32>
    %35 = vector.broadcast %34 : vector<1x1x4x8xf32> to vector<2x4x4x8xf32>
    %36 = arith.mulf %31, %35 : vector<2x4x4x8xf32>
    %37 = arith.addf %30, %36 : vector<2x4x4x8xf32>
    %38 = vector.extract_strided_slice %1 {offsets = [0, 1, 2, 0], sizes = [2, 4, 4, 8], strides = [1, 1, 1, 1]} : vector<4x6x6x8xf32> to vector<2x4x4x8xf32>
    %c5 = arith.constant 5 : index
    %c0_15 = arith.constant 0 : index
    %c0_16 = arith.constant 0 : index
    %39 = vector.load %arg2[%c5, %c0_15, %c0_16] : memref<27x4x8xf32, #tpu.memory_space<vmem>>, vector<1x4x8xf32>
    %40 = vector.shape_cast %39 : vector<1x4x8xf32> to vector<4x8xf32>
    %41 = vector.shape_cast %40 : vector<4x8xf32> to vector<1x1x4x8xf32>
    %42 = vector.broadcast %41 : vector<1x1x4x8xf32> to vector<2x4x4x8xf32>
    %43 = arith.mulf %38, %42 : vector<2x4x4x8xf32>
    %44 = arith.addf %37, %43 : vector<2x4x4x8xf32>
    %45 = vector.extract_strided_slice %1 {offsets = [0, 2, 0, 0], sizes = [2, 4, 4, 8], strides = [1, 1, 1, 1]} : vector<4x6x6x8xf32> to vector<2x4x4x8xf32>
    %c6 = arith.constant 6 : index
    %c0_17 = arith.constant 0 : index
    %c0_18 = arith.constant 0 : index
    %46 = vector.load %arg2[%c6, %c0_17, %c0_18] : memref<27x4x8xf32, #tpu.memory_space<vmem>>, vector<1x4x8xf32>
    %47 = vector.shape_cast %46 : vector<1x4x8xf32> to vector<4x8xf32>
    %48 = vector.shape_cast %47 : vector<4x8xf32> to vector<1x1x4x8xf32>
    %49 = vector.broadcast %48 : vector<1x1x4x8xf32> to vector<2x4x4x8xf32>
    %50 = arith.mulf %45, %49 : vector<2x4x4x8xf32>
    %51 = arith.addf %44, %50 : vector<2x4x4x8xf32>
    %52 = vector.extract_strided_slice %1 {offsets = [0, 2, 1, 0], sizes = [2, 4, 4, 8], strides = [1, 1, 1, 1]} : vector<4x6x6x8xf32> to vector<2x4x4x8xf32>
    %c7 = arith.constant 7 : index
    %c0_19 = arith.constant 0 : index
    %c0_20 = arith.constant 0 : index
    %53 = vector.load %arg2[%c7, %c0_19, %c0_20] : memref<27x4x8xf32, #tpu.memory_space<vmem>>, vector<1x4x8xf32>
    %54 = vector.shape_cast %53 : vector<1x4x8xf32> to vector<4x8xf32>
    %55 = vector.shape_cast %54 : vector<4x8xf32> to vector<1x1x4x8xf32>
    %56 = vector.broadcast %55 : vector<1x1x4x8xf32> to vector<2x4x4x8xf32>
    %57 = arith.mulf %52, %56 : vector<2x4x4x8xf32>
    %58 = arith.addf %51, %57 : vector<2x4x4x8xf32>
    %59 = vector.extract_strided_slice %1 {offsets = [0, 2, 2, 0], sizes = [2, 4, 4, 8], strides = [1, 1, 1, 1]} : vector<4x6x6x8xf32> to vector<2x4x4x8xf32>
    %c8 = arith.constant 8 : index
    %c0_21 = arith.constant 0 : index
    %c0_22 = arith.constant 0 : index
    %60 = vector.load %arg2[%c8, %c0_21, %c0_22] : memref<27x4x8xf32, #tpu.memory_space<vmem>>, vector<1x4x8xf32>
    %61 = vector.shape_cast %60 : vector<1x4x8xf32> to vector<4x8xf32>
    %62 = vector.shape_cast %61 : vector<4x8xf32> to vector<1x1x4x8xf32>
    %63 = vector.broadcast %62 : vector<1x1x4x8xf32> to vector<2x4x4x8xf32>
    %64 = arith.mulf %59, %63 : vector<2x4x4x8xf32>
    %65 = arith.addf %58, %64 : vector<2x4x4x8xf32>
    %66 = vector.extract_strided_slice %1 {offsets = [1, 0, 0, 0], sizes = [2, 4, 4, 8], strides = [1, 1, 1, 1]} : vector<4x6x6x8xf32> to vector<2x4x4x8xf32>
    %c9 = arith.constant 9 : index
    %c0_23 = arith.constant 0 : index
    %c0_24 = arith.constant 0 : index
    %67 = vector.load %arg2[%c9, %c0_23, %c0_24] : memref<27x4x8xf32, #tpu.memory_space<vmem>>, vector<1x4x8xf32>
    %68 = vector.shape_cast %67 : vector<1x4x8xf32> to vector<4x8xf32>
    %69 = vector.shape_cast %68 : vector<4x8xf32> to vector<1x1x4x8xf32>
    %70 = vector.broadcast %69 : vector<1x1x4x8xf32> to vector<2x4x4x8xf32>
    %71 = arith.mulf %66, %70 : vector<2x4x4x8xf32>
    %72 = arith.addf %65, %71 : vector<2x4x4x8xf32>
    %73 = vector.extract_strided_slice %1 {offsets = [1, 0, 1, 0], sizes = [2, 4, 4, 8], strides = [1, 1, 1, 1]} : vector<4x6x6x8xf32> to vector<2x4x4x8xf32>
    %c10 = arith.constant 10 : index
    %c0_25 = arith.constant 0 : index
    %c0_26 = arith.constant 0 : index
    %74 = vector.load %arg2[%c10, %c0_25, %c0_26] : memref<27x4x8xf32, #tpu.memory_space<vmem>>, vector<1x4x8xf32>
    %75 = vector.shape_cast %74 : vector<1x4x8xf32> to vector<4x8xf32>
    %76 = vector.shape_cast %75 : vector<4x8xf32> to vector<1x1x4x8xf32>
    %77 = vector.broadcast %76 : vector<1x1x4x8xf32> to vector<2x4x4x8xf32>
    %78 = arith.mulf %73, %77 : vector<2x4x4x8xf32>
    %79 = arith.addf %72, %78 : vector<2x4x4x8xf32>
    %80 = vector.extract_strided_slice %1 {offsets = [1, 0, 2, 0], sizes = [2, 4, 4, 8], strides = [1, 1, 1, 1]} : vector<4x6x6x8xf32> to vector<2x4x4x8xf32>
    %c11 = arith.constant 11 : index
    %c0_27 = arith.constant 0 : index
    %c0_28 = arith.constant 0 : index
    %81 = vector.load %arg2[%c11, %c0_27, %c0_28] : memref<27x4x8xf32, #tpu.memory_space<vmem>>, vector<1x4x8xf32>
    %82 = vector.shape_cast %81 : vector<1x4x8xf32> to vector<4x8xf32>
    %83 = vector.shape_cast %82 : vector<4x8xf32> to vector<1x1x4x8xf32>
    %84 = vector.broadcast %83 : vector<1x1x4x8xf32> to vector<2x4x4x8xf32>
    %85 = arith.mulf %80, %84 : vector<2x4x4x8xf32>
    %86 = arith.addf %79, %85 : vector<2x4x4x8xf32>
    %87 = vector.extract_strided_slice %1 {offsets = [1, 1, 0, 0], sizes = [2, 4, 4, 8], strides = [1, 1, 1, 1]} : vector<4x6x6x8xf32> to vector<2x4x4x8xf32>
    %c12 = arith.constant 12 : index
    %c0_29 = arith.constant 0 : index
    %c0_30 = arith.constant 0 : index
    %88 = vector.load %arg2[%c12, %c0_29, %c0_30] : memref<27x4x8xf32, #tpu.memory_space<vmem>>, vector<1x4x8xf32>
    %89 = vector.shape_cast %88 : vector<1x4x8xf32> to vector<4x8xf32>
    %90 = vector.shape_cast %89 : vector<4x8xf32> to vector<1x1x4x8xf32>
    %91 = vector.broadcast %90 : vector<1x1x4x8xf32> to vector<2x4x4x8xf32>
    %92 = arith.mulf %87, %91 : vector<2x4x4x8xf32>
    %93 = arith.addf %86, %92 : vector<2x4x4x8xf32>
    %94 = vector.extract_strided_slice %1 {offsets = [1, 1, 1, 0], sizes = [2, 4, 4, 8], strides = [1, 1, 1, 1]} : vector<4x6x6x8xf32> to vector<2x4x4x8xf32>
    %c13 = arith.constant 13 : index
    %c0_31 = arith.constant 0 : index
    %c0_32 = arith.constant 0 : index
    %95 = vector.load %arg2[%c13, %c0_31, %c0_32] : memref<27x4x8xf32, #tpu.memory_space<vmem>>, vector<1x4x8xf32>
    %96 = vector.shape_cast %95 : vector<1x4x8xf32> to vector<4x8xf32>
    %97 = vector.shape_cast %96 : vector<4x8xf32> to vector<1x1x4x8xf32>
    %98 = vector.broadcast %97 : vector<1x1x4x8xf32> to vector<2x4x4x8xf32>
    %99 = arith.mulf %94, %98 : vector<2x4x4x8xf32>
    %100 = arith.addf %93, %99 : vector<2x4x4x8xf32>
    %101 = vector.extract_strided_slice %1 {offsets = [1, 1, 2, 0], sizes = [2, 4, 4, 8], strides = [1, 1, 1, 1]} : vector<4x6x6x8xf32> to vector<2x4x4x8xf32>
    %c14 = arith.constant 14 : index
    %c0_33 = arith.constant 0 : index
    %c0_34 = arith.constant 0 : index
    %102 = vector.load %arg2[%c14, %c0_33, %c0_34] : memref<27x4x8xf32, #tpu.memory_space<vmem>>, vector<1x4x8xf32>
    %103 = vector.shape_cast %102 : vector<1x4x8xf32> to vector<4x8xf32>
    %104 = vector.shape_cast %103 : vector<4x8xf32> to vector<1x1x4x8xf32>
    %105 = vector.broadcast %104 : vector<1x1x4x8xf32> to vector<2x4x4x8xf32>
    %106 = arith.mulf %101, %105 : vector<2x4x4x8xf32>
    %107 = arith.addf %100, %106 : vector<2x4x4x8xf32>
    %108 = vector.extract_strided_slice %1 {offsets = [1, 2, 0, 0], sizes = [2, 4, 4, 8], strides = [1, 1, 1, 1]} : vector<4x6x6x8xf32> to vector<2x4x4x8xf32>
    %c15 = arith.constant 15 : index
    %c0_35 = arith.constant 0 : index
    %c0_36 = arith.constant 0 : index
    %109 = vector.load %arg2[%c15, %c0_35, %c0_36] : memref<27x4x8xf32, #tpu.memory_space<vmem>>, vector<1x4x8xf32>
    %110 = vector.shape_cast %109 : vector<1x4x8xf32> to vector<4x8xf32>
    %111 = vector.shape_cast %110 : vector<4x8xf32> to vector<1x1x4x8xf32>
    %112 = vector.broadcast %111 : vector<1x1x4x8xf32> to vector<2x4x4x8xf32>
    %113 = arith.mulf %108, %112 : vector<2x4x4x8xf32>
    %114 = arith.addf %107, %113 : vector<2x4x4x8xf32>
    %115 = vector.extract_strided_slice %1 {offsets = [1, 2, 1, 0], sizes = [2, 4, 4, 8], strides = [1, 1, 1, 1]} : vector<4x6x6x8xf32> to vector<2x4x4x8xf32>
    %c16 = arith.constant 16 : index
    %c0_37 = arith.constant 0 : index
    %c0_38 = arith.constant 0 : index
    %116 = vector.load %arg2[%c16, %c0_37, %c0_38] : memref<27x4x8xf32, #tpu.memory_space<vmem>>, vector<1x4x8xf32>
    %117 = vector.shape_cast %116 : vector<1x4x8xf32> to vector<4x8xf32>
    %118 = vector.shape_cast %117 : vector<4x8xf32> to vector<1x1x4x8xf32>
    %119 = vector.broadcast %118 : vector<1x1x4x8xf32> to vector<2x4x4x8xf32>
    %120 = arith.mulf %115, %119 : vector<2x4x4x8xf32>
    %121 = arith.addf %114, %120 : vector<2x4x4x8xf32>
    %122 = vector.extract_strided_slice %1 {offsets = [1, 2, 2, 0], sizes = [2, 4, 4, 8], strides = [1, 1, 1, 1]} : vector<4x6x6x8xf32> to vector<2x4x4x8xf32>
    %c17 = arith.constant 17 : index
    %c0_39 = arith.constant 0 : index
    %c0_40 = arith.constant 0 : index
    %123 = vector.load %arg2[%c17, %c0_39, %c0_40] : memref<27x4x8xf32, #tpu.memory_space<vmem>>, vector<1x4x8xf32>
    %124 = vector.shape_cast %123 : vector<1x4x8xf32> to vector<4x8xf32>
    %125 = vector.shape_cast %124 : vector<4x8xf32> to vector<1x1x4x8xf32>
    %126 = vector.broadcast %125 : vector<1x1x4x8xf32> to vector<2x4x4x8xf32>
    %127 = arith.mulf %122, %126 : vector<2x4x4x8xf32>
    %128 = arith.addf %121, %127 : vector<2x4x4x8xf32>
    %129 = vector.extract_strided_slice %1 {offsets = [2, 0, 0, 0], sizes = [2, 4, 4, 8], strides = [1, 1, 1, 1]} : vector<4x6x6x8xf32> to vector<2x4x4x8xf32>
    %c18 = arith.constant 18 : index
    %c0_41 = arith.constant 0 : index
    %c0_42 = arith.constant 0 : index
    %130 = vector.load %arg2[%c18, %c0_41, %c0_42] : memref<27x4x8xf32, #tpu.memory_space<vmem>>, vector<1x4x8xf32>
    %131 = vector.shape_cast %130 : vector<1x4x8xf32> to vector<4x8xf32>
    %132 = vector.shape_cast %131 : vector<4x8xf32> to vector<1x1x4x8xf32>
    %133 = vector.broadcast %132 : vector<1x1x4x8xf32> to vector<2x4x4x8xf32>
    %134 = arith.mulf %129, %133 : vector<2x4x4x8xf32>
    %135 = arith.addf %128, %134 : vector<2x4x4x8xf32>
    %136 = vector.extract_strided_slice %1 {offsets = [2, 0, 1, 0], sizes = [2, 4, 4, 8], strides = [1, 1, 1, 1]} : vector<4x6x6x8xf32> to vector<2x4x4x8xf32>
    %c19 = arith.constant 19 : index
    %c0_43 = arith.constant 0 : index
    %c0_44 = arith.constant 0 : index
    %137 = vector.load %arg2[%c19, %c0_43, %c0_44] : memref<27x4x8xf32, #tpu.memory_space<vmem>>, vector<1x4x8xf32>
    %138 = vector.shape_cast %137 : vector<1x4x8xf32> to vector<4x8xf32>
    %139 = vector.shape_cast %138 : vector<4x8xf32> to vector<1x1x4x8xf32>
    %140 = vector.broadcast %139 : vector<1x1x4x8xf32> to vector<2x4x4x8xf32>
    %141 = arith.mulf %136, %140 : vector<2x4x4x8xf32>
    %142 = arith.addf %135, %141 : vector<2x4x4x8xf32>
    %143 = vector.extract_strided_slice %1 {offsets = [2, 0, 2, 0], sizes = [2, 4, 4, 8], strides = [1, 1, 1, 1]} : vector<4x6x6x8xf32> to vector<2x4x4x8xf32>
    %c20 = arith.constant 20 : index
    %c0_45 = arith.constant 0 : index
    %c0_46 = arith.constant 0 : index
    %144 = vector.load %arg2[%c20, %c0_45, %c0_46] : memref<27x4x8xf32, #tpu.memory_space<vmem>>, vector<1x4x8xf32>
    %145 = vector.shape_cast %144 : vector<1x4x8xf32> to vector<4x8xf32>
    %146 = vector.shape_cast %145 : vector<4x8xf32> to vector<1x1x4x8xf32>
    %147 = vector.broadcast %146 : vector<1x1x4x8xf32> to vector<2x4x4x8xf32>
    %148 = arith.mulf %143, %147 : vector<2x4x4x8xf32>
    %149 = arith.addf %142, %148 : vector<2x4x4x8xf32>
    %150 = vector.extract_strided_slice %1 {offsets = [2, 1, 0, 0], sizes = [2, 4, 4, 8], strides = [1, 1, 1, 1]} : vector<4x6x6x8xf32> to vector<2x4x4x8xf32>
    %c21 = arith.constant 21 : index
    %c0_47 = arith.constant 0 : index
    %c0_48 = arith.constant 0 : index
    %151 = vector.load %arg2[%c21, %c0_47, %c0_48] : memref<27x4x8xf32, #tpu.memory_space<vmem>>, vector<1x4x8xf32>
    %152 = vector.shape_cast %151 : vector<1x4x8xf32> to vector<4x8xf32>
    %153 = vector.shape_cast %152 : vector<4x8xf32> to vector<1x1x4x8xf32>
    %154 = vector.broadcast %153 : vector<1x1x4x8xf32> to vector<2x4x4x8xf32>
    %155 = arith.mulf %150, %154 : vector<2x4x4x8xf32>
    %156 = arith.addf %149, %155 : vector<2x4x4x8xf32>
    %157 = vector.extract_strided_slice %1 {offsets = [2, 1, 1, 0], sizes = [2, 4, 4, 8], strides = [1, 1, 1, 1]} : vector<4x6x6x8xf32> to vector<2x4x4x8xf32>
    %c22 = arith.constant 22 : index
    %c0_49 = arith.constant 0 : index
    %c0_50 = arith.constant 0 : index
    %158 = vector.load %arg2[%c22, %c0_49, %c0_50] : memref<27x4x8xf32, #tpu.memory_space<vmem>>, vector<1x4x8xf32>
    %159 = vector.shape_cast %158 : vector<1x4x8xf32> to vector<4x8xf32>
    %160 = vector.shape_cast %159 : vector<4x8xf32> to vector<1x1x4x8xf32>
    %161 = vector.broadcast %160 : vector<1x1x4x8xf32> to vector<2x4x4x8xf32>
    %162 = arith.mulf %157, %161 : vector<2x4x4x8xf32>
    %163 = arith.addf %156, %162 : vector<2x4x4x8xf32>
    %164 = vector.extract_strided_slice %1 {offsets = [2, 1, 2, 0], sizes = [2, 4, 4, 8], strides = [1, 1, 1, 1]} : vector<4x6x6x8xf32> to vector<2x4x4x8xf32>
    %c23 = arith.constant 23 : index
    %c0_51 = arith.constant 0 : index
    %c0_52 = arith.constant 0 : index
    %165 = vector.load %arg2[%c23, %c0_51, %c0_52] : memref<27x4x8xf32, #tpu.memory_space<vmem>>, vector<1x4x8xf32>
    %166 = vector.shape_cast %165 : vector<1x4x8xf32> to vector<4x8xf32>
    %167 = vector.shape_cast %166 : vector<4x8xf32> to vector<1x1x4x8xf32>
    %168 = vector.broadcast %167 : vector<1x1x4x8xf32> to vector<2x4x4x8xf32>
    %169 = arith.mulf %164, %168 : vector<2x4x4x8xf32>
    %170 = arith.addf %163, %169 : vector<2x4x4x8xf32>
    %171 = vector.extract_strided_slice %1 {offsets = [2, 2, 0, 0], sizes = [2, 4, 4, 8], strides = [1, 1, 1, 1]} : vector<4x6x6x8xf32> to vector<2x4x4x8xf32>
    %c24 = arith.constant 24 : index
    %c0_53 = arith.constant 0 : index
    %c0_54 = arith.constant 0 : index
    %172 = vector.load %arg2[%c24, %c0_53, %c0_54] : memref<27x4x8xf32, #tpu.memory_space<vmem>>, vector<1x4x8xf32>
    %173 = vector.shape_cast %172 : vector<1x4x8xf32> to vector<4x8xf32>
    %174 = vector.shape_cast %173 : vector<4x8xf32> to vector<1x1x4x8xf32>
    %175 = vector.broadcast %174 : vector<1x1x4x8xf32> to vector<2x4x4x8xf32>
    %176 = arith.mulf %171, %175 : vector<2x4x4x8xf32>
    %177 = arith.addf %170, %176 : vector<2x4x4x8xf32>
    %178 = vector.extract_strided_slice %1 {offsets = [2, 2, 1, 0], sizes = [2, 4, 4, 8], strides = [1, 1, 1, 1]} : vector<4x6x6x8xf32> to vector<2x4x4x8xf32>
    %c25 = arith.constant 25 : index
    %c0_55 = arith.constant 0 : index
    %c0_56 = arith.constant 0 : index
    %179 = vector.load %arg2[%c25, %c0_55, %c0_56] : memref<27x4x8xf32, #tpu.memory_space<vmem>>, vector<1x4x8xf32>
    %180 = vector.shape_cast %179 : vector<1x4x8xf32> to vector<4x8xf32>
    %181 = vector.shape_cast %180 : vector<4x8xf32> to vector<1x1x4x8xf32>
    %182 = vector.broadcast %181 : vector<1x1x4x8xf32> to vector<2x4x4x8xf32>
    %183 = arith.mulf %178, %182 : vector<2x4x4x8xf32>
    %184 = arith.addf %177, %183 : vector<2x4x4x8xf32>
    %185 = vector.extract_strided_slice %1 {offsets = [2, 2, 2, 0], sizes = [2, 4, 4, 8], strides = [1, 1, 1, 1]} : vector<4x6x6x8xf32> to vector<2x4x4x8xf32>
    %c26 = arith.constant 26 : index
    %c0_57 = arith.constant 0 : index
    %c0_58 = arith.constant 0 : index
    %186 = vector.load %arg2[%c26, %c0_57, %c0_58] : memref<27x4x8xf32, #tpu.memory_space<vmem>>, vector<1x4x8xf32>
    %187 = vector.shape_cast %186 : vector<1x4x8xf32> to vector<4x8xf32>
    %188 = vector.shape_cast %187 : vector<4x8xf32> to vector<1x1x4x8xf32>
    %189 = vector.broadcast %188 : vector<1x1x4x8xf32> to vector<2x4x4x8xf32>
    %190 = arith.mulf %185, %189 : vector<2x4x4x8xf32>
    %191 = arith.addf %184, %190 : vector<2x4x4x8xf32>
    %c0_59 = arith.constant 0 : index
    %c0_60 = arith.constant 0 : index
    %192 = vector.load %arg3[%c0_59, %c0_60] : memref<1x8xf32, #tpu.memory_space<vmem>>, vector<1x8xf32>
    %193 = vector.shape_cast %192 : vector<1x8xf32> to vector<1x1x1x8xf32>
    %194 = vector.broadcast %193 : vector<1x1x1x8xf32> to vector<2x4x4x8xf32>
    %195 = arith.addf %191, %194 : vector<2x4x4x8xf32>
    %c0_61 = arith.constant 0 : index
    %c0_62 = arith.constant 0 : index
    %c0_63 = arith.constant 0 : index
    %c0_64 = arith.constant 0 : index
    %c0_65 = arith.constant 0 : index
    %196 = vector.load %arg4[%c0_61, %c0_62, %c0_63, %c0_64, %c0_65] : memref<1x2x4x4x8xf32, #tpu.memory_space<vmem>>, vector<1x2x4x4x8xf32>
    %197 = vector.shape_cast %196 : vector<1x2x4x4x8xf32> to vector<2x4x4x8xf32>
    %198 = vector.shape_cast %195 : vector<2x4x4x8xf32> to vector<1x2x4x4x8xf32>
    tpu.vector_store %arg4[%c0_61, %c0_62, %c0_63, %c0_64, %c0_65], %198 {strides = array<i32>} : memref<1x2x4x4x8xf32, #tpu.memory_space<vmem>>, vector<1x2x4x4x8xf32>,
    return
  }
  func.func @transform_0(%arg0: i32) -> (i32, i32, i32, i32, i32) {
    %c0_i32 = arith.constant 0 : i32
    %c0_i32_0 = arith.constant 0 : i32
    %c0_i32_1 = arith.constant 0 : i32
    %c0_i32_2 = arith.constant 0 : i32
    %c0_i32_3 = arith.constant 0 : i32
    return %arg0, %c0_i32, %c0_i32_0, %c0_i32_1, %c0_i32_2 : i32, i32, i32, i32, i32
  }
  func.func @transform_1(%arg0: i32) -> (i32, i32, i32) {
    %c0_i32 = arith.constant 0 : i32
    %c0_i32_0 = arith.constant 0 : i32
    %c0_i32_1 = arith.constant 0 : i32
    %c0_i32_2 = arith.constant 0 : i32
    return %c0_i32, %c0_i32_0, %c0_i32_1 : i32, i32, i32
  }
  func.func @transform_2(%arg0: i32) -> (i32, i32) {
    %c0_i32 = arith.constant 0 : i32
    %c0_i32_0 = arith.constant 0 : i32
    %c0_i32_1 = arith.constant 0 : i32
    return %c0_i32, %c0_i32_0 : i32, i32
  }
  func.func @transform_3(%arg0: i32) -> (i32, i32, i32, i32, i32) {
    %c0_i32 = arith.constant 0 : i32
    %c0_i32_0 = arith.constant 0 : i32
    %c0_i32_1 = arith.constant 0 : i32
    %c0_i32_2 = arith.constant 0 : i32
    %c0_i32_3 = arith.constant 0 : i32
    return %arg0, %c0_i32, %c0_i32_0, %c0_i32_1, %c0_i32_2 : i32, i32, i32, i32, i32
  }
}

module attributes {stable_mosaic.version = 11 : i64} {
  func.func @_adapter_fc2_residual_kernel(%arg0: i32, %arg1: memref<1x16x8xf32, #tpu.memory_space<vmem>>, %arg2: memref<8x32xf32, #tpu.memory_space<vmem>>, %arg3: memref<1x32xf32, #tpu.memory_space<vmem>>, %arg4: memref<1x17x32xf32, #tpu.memory_space<vmem>>, %arg5: memref<1x17x32xf32, #tpu.memory_space<vmem>>) attributes {dimension_semantics = [#tpu.dimension_semantics<parallel>], iteration_bounds = array<i64: 4>, scalar_prefetch = 0 : i64, scratch_operands = 0 : i64, tpu.core_type = #tpu.core_type<tc>, window_params = [{transform_indices = @transform_0, window_bounds = array<i64: 1, 16, 8>}, {pipeline_mode = #tpu.pipeline_mode<synchronous>, transform_indices = @transform_1, window_bounds = array<i64: 8, 32>}, {pipeline_mode = #tpu.pipeline_mode<synchronous>, transform_indices = @transform_2, window_bounds = array<i64: 1, 32>}, {transform_indices = @transform_3, window_bounds = array<i64: 1, 17, 32>}, {transform_indices = @transform_4, window_bounds = array<i64: 1, 17, 32>}]} {
    %c0 = arith.constant 0 : index
    %c0_0 = arith.constant 0 : index
    %c0_1 = arith.constant 0 : index
    %0 = vector.load %arg1[%c0, %c0_0, %c0_1] : memref<1x16x8xf32, #tpu.memory_space<vmem>>, vector<1x16x8xf32>
    %1 = vector.shape_cast %0 : vector<1x16x8xf32> to vector<16x8xf32>
    %c0_2 = arith.constant 0 : index
    %c0_3 = arith.constant 0 : index
    %2 = vector.load %arg2[%c0_2, %c0_3] : memref<8x32xf32, #tpu.memory_space<vmem>>, vector<8x32xf32>
    %cst = arith.constant dense<0.000000e+00> : vector<16x32xf32>
    %3 = tpu.matmul %1, %2, %cst {dimension_numbers = #tpu.dot_dimension_numbers<[1], [0], [0], [1], [0, 0, 1, 1], [], []>} : vector<16x8xf32>, vector<8x32xf32>, vector<16x32xf32> -> vector<16x32xf32>
    %c0_4 = arith.constant 0 : index
    %c0_5 = arith.constant 0 : index
    %4 = vector.load %arg3[%c0_4, %c0_5] : memref<1x32xf32, #tpu.memory_space<vmem>>, vector<1x32xf32>
    %5 = vector.broadcast %4 : vector<1x32xf32> to vector<16x32xf32>
    %6 = arith.addf %3, %5 : vector<16x32xf32>
    %c0_6 = arith.constant 0 : index
    %c0_7 = arith.constant 0 : index
    %c0_8 = arith.constant 0 : index
    %7 = vector.load %arg4[%c0_6, %c0_7, %c0_8] : memref<1x17x32xf32, #tpu.memory_space<vmem>>, vector<1x1x32xf32>
    %8 = vector.shape_cast %7 : vector<1x1x32xf32> to vector<1x32xf32>
    %c0_9 = arith.constant 0 : index
    %c0_10 = arith.constant 0 : index
    %c0_11 = arith.constant 0 : index
    %9 = vector.load %arg5[%c0_9, %c0_10, %c0_11] : memref<1x17x32xf32, #tpu.memory_space<vmem>>, vector<1x1x32xf32>
    %10 = vector.shape_cast %9 : vector<1x1x32xf32> to vector<1x32xf32>
    %11 = vector.shape_cast %8 : vector<1x32xf32> to vector<1x1x32xf32>
    tpu.vector_store %arg5[%c0_9, %c0_10, %c0_11], %11 {strides = array<i32>} : memref<1x17x32xf32, #tpu.memory_space<vmem>>, vector<1x1x32xf32>,
    %c0_12 = arith.constant 0 : index
    %c1 = arith.constant 1 : index
    %c0_13 = arith.constant 0 : index
    %12 = vector.load %arg4[%c0_12, %c1, %c0_13] : memref<1x17x32xf32, #tpu.memory_space<vmem>>, vector<1x16x32xf32>
    %13 = vector.shape_cast %12 : vector<1x16x32xf32> to vector<16x32xf32>
    %14 = arith.addf %13, %6 : vector<16x32xf32>
    %c0_14 = arith.constant 0 : index
    %c1_15 = arith.constant 1 : index
    %c0_16 = arith.constant 0 : index
    %15 = vector.load %arg5[%c0_14, %c1_15, %c0_16] : memref<1x17x32xf32, #tpu.memory_space<vmem>>, vector<1x16x32xf32>
    %16 = vector.shape_cast %15 : vector<1x16x32xf32> to vector<16x32xf32>
    %17 = vector.shape_cast %14 : vector<16x32xf32> to vector<1x16x32xf32>
    tpu.vector_store %arg5[%c0_14, %c1_15, %c0_16], %17 {strides = array<i32>} : memref<1x17x32xf32, #tpu.memory_space<vmem>>, vector<1x16x32xf32>,
    return
  }
  func.func @transform_0(%arg0: i32) -> (i32, i32, i32) {
    %c0_i32 = arith.constant 0 : i32
    %c0_i32_0 = arith.constant 0 : i32
    %c0_i32_1 = arith.constant 0 : i32
    return %arg0, %c0_i32, %c0_i32_0 : i32, i32, i32
  }
  func.func @transform_1(%arg0: i32) -> (i32, i32) {
    %c0_i32 = arith.constant 0 : i32
    %c0_i32_0 = arith.constant 0 : i32
    %c0_i32_1 = arith.constant 0 : i32
    return %c0_i32, %c0_i32_0 : i32, i32
  }
  func.func @transform_2(%arg0: i32) -> (i32, i32) {
    %c0_i32 = arith.constant 0 : i32
    %c0_i32_0 = arith.constant 0 : i32
    %c0_i32_1 = arith.constant 0 : i32
    return %c0_i32, %c0_i32_0 : i32, i32
  }
  func.func @transform_3(%arg0: i32) -> (i32, i32, i32) {
    %c0_i32 = arith.constant 0 : i32
    %c0_i32_0 = arith.constant 0 : i32
    %c0_i32_1 = arith.constant 0 : i32
    return %arg0, %c0_i32, %c0_i32_0 : i32, i32, i32
  }
  func.func @transform_4(%arg0: i32) -> (i32, i32, i32) {
    %c0_i32 = arith.constant 0 : i32
    %c0_i32_0 = arith.constant 0 : i32
    %c0_i32_1 = arith.constant 0 : i32
    return %arg0, %c0_i32, %c0_i32_0 : i32, i32, i32
  }
}

module attributes {stable_mosaic.version = 11 : i64} {
  func.func @_ln_linear_kernel(%arg0: i32, %arg1: i32, %arg2: memref<68x32xf32, #tpu.memory_space<vmem>>, %arg3: memref<1x32xf32, #tpu.memory_space<vmem>>, %arg4: memref<1x32xf32, #tpu.memory_space<vmem>>, %arg5: memref<32x96xf32, #tpu.memory_space<vmem>>, %arg6: memref<1x96xf32, #tpu.memory_space<vmem>>, %arg7: memref<68x96xf32, #tpu.memory_space<vmem>>) attributes {dimension_semantics = [#tpu.dimension_semantics<parallel>, #tpu.dimension_semantics<parallel>], iteration_bounds = array<i64: 1, 1>, scalar_prefetch = 0 : i64, scratch_operands = 0 : i64, tpu.core_type = #tpu.core_type<tc>, window_params = [{transform_indices = @transform_0, window_bounds = array<i64: 68, 32>}, {pipeline_mode = #tpu.pipeline_mode<synchronous>, transform_indices = @transform_1, window_bounds = array<i64: 1, 32>}, {pipeline_mode = #tpu.pipeline_mode<synchronous>, transform_indices = @transform_2, window_bounds = array<i64: 1, 32>}, {transform_indices = @transform_3, window_bounds = array<i64: 32, 96>}, {transform_indices = @transform_4, window_bounds = array<i64: 1, 96>}, {transform_indices = @transform_5, window_bounds = array<i64: 68, 96>}]} {
    %c0 = arith.constant 0 : index
    %c0_0 = arith.constant 0 : index
    %0 = vector.load %arg2[%c0, %c0_0] : memref<68x32xf32, #tpu.memory_space<vmem>>, vector<68x32xf32>
    %cst = arith.constant dense<0.000000e+00> : vector<68xf32>
    %1 = vector.multi_reduction <add>, %0, %cst [1] : vector<68x32xf32> to vector<68xf32>
    %2 = vector.shape_cast %1 : vector<68xf32> to vector<68x1xf32>
    %cst_1 = arith.constant 3.200000e+01 : f32
    %3 = vector.broadcast %cst_1 : f32 to vector<68x1xf32>
    %4 = arith.divf %2, %3 : vector<68x1xf32>
    %5 = vector.broadcast %4 : vector<68x1xf32> to vector<68x32xf32>
    %6 = arith.subf %0, %5 : vector<68x32xf32>
    %7 = arith.mulf %6, %6 : vector<68x32xf32>
    %cst_2 = arith.constant dense<0.000000e+00> : vector<68xf32>
    %8 = vector.multi_reduction <add>, %7, %cst_2 [1] : vector<68x32xf32> to vector<68xf32>
    %9 = vector.shape_cast %8 : vector<68xf32> to vector<68x1xf32>
    %cst_3 = arith.constant 3.200000e+01 : f32
    %10 = vector.broadcast %cst_3 : f32 to vector<68x1xf32>
    %11 = arith.divf %9, %10 : vector<68x1xf32>
    %cst_4 = arith.constant 9.99999974E-6 : f32
    %12 = vector.broadcast %cst_4 : f32 to vector<68x1xf32>
    %13 = arith.addf %11, %12 : vector<68x1xf32>
    %14 = math.rsqrt %13 : vector<68x1xf32>
    %15 = vector.broadcast %14 : vector<68x1xf32> to vector<68x32xf32>
    %16 = arith.mulf %6, %15 : vector<68x32xf32>
    %c0_5 = arith.constant 0 : index
    %c0_6 = arith.constant 0 : index
    %17 = vector.load %arg3[%c0_5, %c0_6] : memref<1x32xf32, #tpu.memory_space<vmem>>, vector<1x32xf32>
    %18 = vector.broadcast %17 : vector<1x32xf32> to vector<68x32xf32>
    %19 = arith.mulf %16, %18 : vector<68x32xf32>
    %c0_7 = arith.constant 0 : index
    %c0_8 = arith.constant 0 : index
    %20 = vector.load %arg4[%c0_7, %c0_8] : memref<1x32xf32, #tpu.memory_space<vmem>>, vector<1x32xf32>
    %21 = vector.broadcast %20 : vector<1x32xf32> to vector<68x32xf32>
    %22 = arith.addf %19, %21 : vector<68x32xf32>
    %c0_9 = arith.constant 0 : index
    %c0_10 = arith.constant 0 : index
    %23 = vector.load %arg5[%c0_9, %c0_10] : memref<32x96xf32, #tpu.memory_space<vmem>>, vector<32x96xf32>
    %cst_11 = arith.constant dense<0.000000e+00> : vector<68x96xf32>
    %24 = tpu.matmul %22, %23, %cst_11 {dimension_numbers = #tpu.dot_dimension_numbers<[1], [0], [0], [1], [0, 0, 1, 1], [], []>} : vector<68x32xf32>, vector<32x96xf32>, vector<68x96xf32> -> vector<68x96xf32>
    %c0_12 = arith.constant 0 : index
    %c0_13 = arith.constant 0 : index
    %25 = vector.load %arg6[%c0_12, %c0_13] : memref<1x96xf32, #tpu.memory_space<vmem>>, vector<1x96xf32>
    %26 = vector.broadcast %25 : vector<1x96xf32> to vector<68x96xf32>
    %27 = arith.addf %24, %26 : vector<68x96xf32>
    %c0_14 = arith.constant 0 : index
    %c0_15 = arith.constant 0 : index
    %28 = vector.load %arg7[%c0_14, %c0_15] : memref<68x96xf32, #tpu.memory_space<vmem>>, vector<68x96xf32>
    tpu.vector_store %arg7[%c0_14, %c0_15], %27 {strides = array<i32>} : memref<68x96xf32, #tpu.memory_space<vmem>>, vector<68x96xf32>,
    return
  }
  func.func @transform_0(%arg0: i32, %arg1: i32) -> (i32, i32) {
    %c0_i32 = arith.constant 0 : i32
    %c0_i32_0 = arith.constant 0 : i32
    return %arg0, %c0_i32 : i32, i32
  }
  func.func @transform_1(%arg0: i32, %arg1: i32) -> (i32, i32) {
    %c0_i32 = arith.constant 0 : i32
    %c0_i32_0 = arith.constant 0 : i32
    %c0_i32_1 = arith.constant 0 : i32
    return %c0_i32, %c0_i32_0 : i32, i32
  }
  func.func @transform_2(%arg0: i32, %arg1: i32) -> (i32, i32) {
    %c0_i32 = arith.constant 0 : i32
    %c0_i32_0 = arith.constant 0 : i32
    %c0_i32_1 = arith.constant 0 : i32
    return %c0_i32, %c0_i32_0 : i32, i32
  }
  func.func @transform_3(%arg0: i32, %arg1: i32) -> (i32, i32) {
    %c0_i32 = arith.constant 0 : i32
    %c0_i32_0 = arith.constant 0 : i32
    return %c0_i32, %arg1 : i32, i32
  }
  func.func @transform_4(%arg0: i32, %arg1: i32) -> (i32, i32) {
    %c0_i32 = arith.constant 0 : i32
    %c0_i32_0 = arith.constant 0 : i32
    return %c0_i32, %arg1 : i32, i32
  }
  func.func @transform_5(%arg0: i32, %arg1: i32) -> (i32, i32) {
    %c0_i32 = arith.constant 0 : i32
    return %arg0, %arg1 : i32, i32
  }
}

module attributes {stable_mosaic.version = 11 : i64} {
  func.func @_attention_kernel(%arg0: i32, %arg1: memref<1x17x96xf32, #tpu.memory_space<vmem>>, %arg2: memref<1x17x32xf32, #tpu.memory_space<vmem>>) attributes {dimension_semantics = [#tpu.dimension_semantics<parallel>], iteration_bounds = array<i64: 4>, scalar_prefetch = 0 : i64, scratch_operands = 0 : i64, tpu.core_type = #tpu.core_type<tc>, window_params = [{transform_indices = @transform_0, window_bounds = array<i64: 1, 17, 96>}, {transform_indices = @transform_1, window_bounds = array<i64: 1, 17, 32>}]} {
    %c0 = arith.constant 0 : index
    %c0_0 = arith.constant 0 : index
    %c0_1 = arith.constant 0 : index
    %0 = vector.load %arg1[%c0, %c0_0, %c0_1] : memref<1x17x96xf32, #tpu.memory_space<vmem>>, vector<1x17x96xf32>
    %1 = vector.shape_cast %0 : vector<1x17x96xf32> to vector<17x96xf32>
    %2 = vector.extract_strided_slice %1 {offsets = [0, 0], sizes = [17, 8], strides = [1, 1]} : vector<17x96xf32> to vector<17x8xf32>
    %3 = vector.extract_strided_slice %1 {offsets = [0, 32], sizes = [17, 8], strides = [1, 1]} : vector<17x96xf32> to vector<17x8xf32>
    %4 = vector.extract_strided_slice %1 {offsets = [0, 64], sizes = [17, 8], strides = [1, 1]} : vector<17x96xf32> to vector<17x8xf32>
    %cst = arith.constant dense<0.000000e+00> : vector<17x17xf32>
    %5 = tpu.matmul %2, %3, %cst {dimension_numbers = #tpu.dot_dimension_numbers<[1], [1], [0], [0], [0, 0, 1, 0], [], []>} : vector<17x8xf32>, vector<17x8xf32>, vector<17x17xf32> -> vector<17x17xf32>
    %cst_2 = arith.constant 0.353553385 : f32
    %6 = vector.broadcast %cst_2 : f32 to vector<17x17xf32>
    %7 = arith.mulf %5, %6 : vector<17x17xf32>
    %cst_3 = arith.constant dense<0xFF800000> : vector<17xf32>
    %8 = vector.multi_reduction <maximumf>, %7, %cst_3 [1] : vector<17x17xf32> to vector<17xf32>
    %9 = vector.shape_cast %8 : vector<17xf32> to vector<17x1xf32>
    %10 = vector.broadcast %9 : vector<17x1xf32> to vector<17x17xf32>
    %11 = arith.subf %7, %10 : vector<17x17xf32>
    %12 = math.exp %11 : vector<17x17xf32>
    %cst_4 = arith.constant dense<0.000000e+00> : vector<17xf32>
    %13 = vector.multi_reduction <add>, %12, %cst_4 [1] : vector<17x17xf32> to vector<17xf32>
    %14 = vector.shape_cast %13 : vector<17xf32> to vector<17x1xf32>
    %cst_5 = arith.constant dense<0.000000e+00> : vector<17x8xf32>
    %15 = tpu.matmul %12, %4, %cst_5 {dimension_numbers = #tpu.dot_dimension_numbers<[1], [0], [0], [1], [0, 0, 1, 1], [], []>} : vector<17x17xf32>, vector<17x8xf32>, vector<17x8xf32> -> vector<17x8xf32>
    %16 = tpu.reciprocal %14 {approx = true} : vector<17x1xf32> -> vector<17x1xf32>
    %17 = vector.broadcast %16 : vector<17x1xf32> to vector<17x8xf32>
    %18 = arith.mulf %15, %17 : vector<17x8xf32>
    %c0_6 = arith.constant 0 : index
    %c0_7 = arith.constant 0 : index
    %c0_8 = arith.constant 0 : index
    %19 = vector.load %arg2[%c0_6, %c0_7, %c0_8] : memref<1x17x32xf32, #tpu.memory_space<vmem>>, vector<1x17x8xf32>
    %20 = vector.shape_cast %19 : vector<1x17x8xf32> to vector<17x8xf32>
    %21 = vector.shape_cast %18 : vector<17x8xf32> to vector<1x17x8xf32>
    tpu.vector_store %arg2[%c0_6, %c0_7, %c0_8], %21 {strides = array<i32>} : memref<1x17x32xf32, #tpu.memory_space<vmem>>, vector<1x17x8xf32>,
    %22 = vector.extract_strided_slice %1 {offsets = [0, 8], sizes = [17, 8], strides = [1, 1]} : vector<17x96xf32> to vector<17x8xf32>
    %23 = vector.extract_strided_slice %1 {offsets = [0, 40], sizes = [17, 8], strides = [1, 1]} : vector<17x96xf32> to vector<17x8xf32>
    %24 = vector.extract_strided_slice %1 {offsets = [0, 72], sizes = [17, 8], strides = [1, 1]} : vector<17x96xf32> to vector<17x8xf32>
    %cst_9 = arith.constant dense<0.000000e+00> : vector<17x17xf32>
    %25 = tpu.matmul %22, %23, %cst_9 {dimension_numbers = #tpu.dot_dimension_numbers<[1], [1], [0], [0], [0, 0, 1, 0], [], []>} : vector<17x8xf32>, vector<17x8xf32>, vector<17x17xf32> -> vector<17x17xf32>
    %cst_10 = arith.constant 0.353553385 : f32
    %26 = vector.broadcast %cst_10 : f32 to vector<17x17xf32>
    %27 = arith.mulf %25, %26 : vector<17x17xf32>
    %cst_11 = arith.constant dense<0xFF800000> : vector<17xf32>
    %28 = vector.multi_reduction <maximumf>, %27, %cst_11 [1] : vector<17x17xf32> to vector<17xf32>
    %29 = vector.shape_cast %28 : vector<17xf32> to vector<17x1xf32>
    %30 = vector.broadcast %29 : vector<17x1xf32> to vector<17x17xf32>
    %31 = arith.subf %27, %30 : vector<17x17xf32>
    %32 = math.exp %31 : vector<17x17xf32>
    %cst_12 = arith.constant dense<0.000000e+00> : vector<17xf32>
    %33 = vector.multi_reduction <add>, %32, %cst_12 [1] : vector<17x17xf32> to vector<17xf32>
    %34 = vector.shape_cast %33 : vector<17xf32> to vector<17x1xf32>
    %cst_13 = arith.constant dense<0.000000e+00> : vector<17x8xf32>
    %35 = tpu.matmul %32, %24, %cst_13 {dimension_numbers = #tpu.dot_dimension_numbers<[1], [0], [0], [1], [0, 0, 1, 1], [], []>} : vector<17x17xf32>, vector<17x8xf32>, vector<17x8xf32> -> vector<17x8xf32>
    %36 = tpu.reciprocal %34 {approx = true} : vector<17x1xf32> -> vector<17x1xf32>
    %37 = vector.broadcast %36 : vector<17x1xf32> to vector<17x8xf32>
    %38 = arith.mulf %35, %37 : vector<17x8xf32>
    %c0_14 = arith.constant 0 : index
    %c0_15 = arith.constant 0 : index
    %c8 = arith.constant 8 : index
    %39 = vector.load %arg2[%c0_14, %c0_15, %c8] : memref<1x17x32xf32, #tpu.memory_space<vmem>>, vector<1x17x8xf32>
    %40 = vector.shape_cast %39 : vector<1x17x8xf32> to vector<17x8xf32>
    %41 = vector.shape_cast %38 : vector<17x8xf32> to vector<1x17x8xf32>
    tpu.vector_store %arg2[%c0_14, %c0_15, %c8], %41 {strides = array<i32>} : memref<1x17x32xf32, #tpu.memory_space<vmem>>, vector<1x17x8xf32>,
    %42 = vector.extract_strided_slice %1 {offsets = [0, 16], sizes = [17, 8], strides = [1, 1]} : vector<17x96xf32> to vector<17x8xf32>
    %43 = vector.extract_strided_slice %1 {offsets = [0, 48], sizes = [17, 8], strides = [1, 1]} : vector<17x96xf32> to vector<17x8xf32>
    %44 = vector.extract_strided_slice %1 {offsets = [0, 80], sizes = [17, 8], strides = [1, 1]} : vector<17x96xf32> to vector<17x8xf32>
    %cst_16 = arith.constant dense<0.000000e+00> : vector<17x17xf32>
    %45 = tpu.matmul %42, %43, %cst_16 {dimension_numbers = #tpu.dot_dimension_numbers<[1], [1], [0], [0], [0, 0, 1, 0], [], []>} : vector<17x8xf32>, vector<17x8xf32>, vector<17x17xf32> -> vector<17x17xf32>
    %cst_17 = arith.constant 0.353553385 : f32
    %46 = vector.broadcast %cst_17 : f32 to vector<17x17xf32>
    %47 = arith.mulf %45, %46 : vector<17x17xf32>
    %cst_18 = arith.constant dense<0xFF800000> : vector<17xf32>
    %48 = vector.multi_reduction <maximumf>, %47, %cst_18 [1] : vector<17x17xf32> to vector<17xf32>
    %49 = vector.shape_cast %48 : vector<17xf32> to vector<17x1xf32>
    %50 = vector.broadcast %49 : vector<17x1xf32> to vector<17x17xf32>
    %51 = arith.subf %47, %50 : vector<17x17xf32>
    %52 = math.exp %51 : vector<17x17xf32>
    %cst_19 = arith.constant dense<0.000000e+00> : vector<17xf32>
    %53 = vector.multi_reduction <add>, %52, %cst_19 [1] : vector<17x17xf32> to vector<17xf32>
    %54 = vector.shape_cast %53 : vector<17xf32> to vector<17x1xf32>
    %cst_20 = arith.constant dense<0.000000e+00> : vector<17x8xf32>
    %55 = tpu.matmul %52, %44, %cst_20 {dimension_numbers = #tpu.dot_dimension_numbers<[1], [0], [0], [1], [0, 0, 1, 1], [], []>} : vector<17x17xf32>, vector<17x8xf32>, vector<17x8xf32> -> vector<17x8xf32>
    %56 = tpu.reciprocal %54 {approx = true} : vector<17x1xf32> -> vector<17x1xf32>
    %57 = vector.broadcast %56 : vector<17x1xf32> to vector<17x8xf32>
    %58 = arith.mulf %55, %57 : vector<17x8xf32>
    %c0_21 = arith.constant 0 : index
    %c0_22 = arith.constant 0 : index
    %c16 = arith.constant 16 : index
    %59 = vector.load %arg2[%c0_21, %c0_22, %c16] : memref<1x17x32xf32, #tpu.memory_space<vmem>>, vector<1x17x8xf32>
    %60 = vector.shape_cast %59 : vector<1x17x8xf32> to vector<17x8xf32>
    %61 = vector.shape_cast %58 : vector<17x8xf32> to vector<1x17x8xf32>
    tpu.vector_store %arg2[%c0_21, %c0_22, %c16], %61 {strides = array<i32>} : memref<1x17x32xf32, #tpu.memory_space<vmem>>, vector<1x17x8xf32>,
    %62 = vector.extract_strided_slice %1 {offsets = [0, 24], sizes = [17, 8], strides = [1, 1]} : vector<17x96xf32> to vector<17x8xf32>
    %63 = vector.extract_strided_slice %1 {offsets = [0, 56], sizes = [17, 8], strides = [1, 1]} : vector<17x96xf32> to vector<17x8xf32>
    %64 = vector.extract_strided_slice %1 {offsets = [0, 88], sizes = [17, 8], strides = [1, 1]} : vector<17x96xf32> to vector<17x8xf32>
    %cst_23 = arith.constant dense<0.000000e+00> : vector<17x17xf32>
    %65 = tpu.matmul %62, %63, %cst_23 {dimension_numbers = #tpu.dot_dimension_numbers<[1], [1], [0], [0], [0, 0, 1, 0], [], []>} : vector<17x8xf32>, vector<17x8xf32>, vector<17x17xf32> -> vector<17x17xf32>
    %cst_24 = arith.constant 0.353553385 : f32
    %66 = vector.broadcast %cst_24 : f32 to vector<17x17xf32>
    %67 = arith.mulf %65, %66 : vector<17x17xf32>
    %cst_25 = arith.constant dense<0xFF800000> : vector<17xf32>
    %68 = vector.multi_reduction <maximumf>, %67, %cst_25 [1] : vector<17x17xf32> to vector<17xf32>
    %69 = vector.shape_cast %68 : vector<17xf32> to vector<17x1xf32>
    %70 = vector.broadcast %69 : vector<17x1xf32> to vector<17x17xf32>
    %71 = arith.subf %67, %70 : vector<17x17xf32>
    %72 = math.exp %71 : vector<17x17xf32>
    %cst_26 = arith.constant dense<0.000000e+00> : vector<17xf32>
    %73 = vector.multi_reduction <add>, %72, %cst_26 [1] : vector<17x17xf32> to vector<17xf32>
    %74 = vector.shape_cast %73 : vector<17xf32> to vector<17x1xf32>
    %cst_27 = arith.constant dense<0.000000e+00> : vector<17x8xf32>
    %75 = tpu.matmul %72, %64, %cst_27 {dimension_numbers = #tpu.dot_dimension_numbers<[1], [0], [0], [1], [0, 0, 1, 1], [], []>} : vector<17x17xf32>, vector<17x8xf32>, vector<17x8xf32> -> vector<17x8xf32>
    %76 = tpu.reciprocal %74 {approx = true} : vector<17x1xf32> -> vector<17x1xf32>
    %77 = vector.broadcast %76 : vector<17x1xf32> to vector<17x8xf32>
    %78 = arith.mulf %75, %77 : vector<17x8xf32>
    %c0_28 = arith.constant 0 : index
    %c0_29 = arith.constant 0 : index
    %c24 = arith.constant 24 : index
    %79 = vector.load %arg2[%c0_28, %c0_29, %c24] : memref<1x17x32xf32, #tpu.memory_space<vmem>>, vector<1x17x8xf32>
    %80 = vector.shape_cast %79 : vector<1x17x8xf32> to vector<17x8xf32>
    %81 = vector.shape_cast %78 : vector<17x8xf32> to vector<1x17x8xf32>
    tpu.vector_store %arg2[%c0_28, %c0_29, %c24], %81 {strides = array<i32>} : memref<1x17x32xf32, #tpu.memory_space<vmem>>, vector<1x17x8xf32>,
    return
  }
  func.func @transform_0(%arg0: i32) -> (i32, i32, i32) {
    %c0_i32 = arith.constant 0 : i32
    %c0_i32_0 = arith.constant 0 : i32
    %c0_i32_1 = arith.constant 0 : i32
    return %arg0, %c0_i32, %c0_i32_0 : i32, i32, i32
  }
  func.func @transform_1(%arg0: i32) -> (i32, i32, i32) {
    %c0_i32 = arith.constant 0 : i32
    %c0_i32_0 = arith.constant 0 : i32
    %c0_i32_1 = arith.constant 0 : i32
    return %arg0, %c0_i32, %c0_i32_0 : i32, i32, i32
  }
}

module attributes {stable_mosaic.version = 11 : i64} {
  func.func @_linear_residual_kernel(%arg0: i32, %arg1: i32, %arg2: i32, %arg3: memref<68x32xf32, #tpu.memory_space<vmem>>, %arg4: memref<32x32xf32, #tpu.memory_space<vmem>>, %arg5: memref<1x32xf32, #tpu.memory_space<vmem>>, %arg6: memref<68x32xf32, #tpu.memory_space<vmem>>, %arg7: memref<68x32xf32, #tpu.memory_space<vmem>>, %arg8: memref<68x32xf32, #tpu.memory_space<vmem>>) attributes {dimension_semantics = [#tpu.dimension_semantics<parallel>, #tpu.dimension_semantics<parallel>, #tpu.dimension_semantics<arbitrary>], iteration_bounds = array<i64: 1, 1, 1>, scalar_prefetch = 0 : i64, scratch_operands = 1 : i64, tpu.core_type = #tpu.core_type<tc>, window_params = [{transform_indices = @transform_0, window_bounds = array<i64: 68, 32>}, {transform_indices = @transform_1, window_bounds = array<i64: 32, 32>}, {transform_indices = @transform_2, window_bounds = array<i64: 1, 32>}, {transform_indices = @transform_3, window_bounds = array<i64: 68, 32>}, {transform_indices = @transform_4, window_bounds = array<i64: 68, 32>}]} {
    %c0_i32 = arith.constant 0 : i32
    %0 = arith.cmpi eq, %arg2, %c0_i32 : i32
    %1 = arith.extui %0 : i1 to i32
    %c0_i32_0 = arith.constant 0 : i32
    %2 = arith.cmpi ne, %1, %c0_i32_0 : i32
    scf.if %2 {
      %cst_10 = arith.constant 0.000000e+00 : f32
      %12 = vector.broadcast %cst_10 : f32 to vector<68x32xf32>
      %c0_11 = arith.constant 0 : index
      %c0_12 = arith.constant 0 : index
      %13 = vector.load %arg8[%c0_11, %c0_12] : memref<68x32xf32, #tpu.memory_space<vmem>>, vector<68x32xf32>
      tpu.vector_store %arg8[%c0_11, %c0_12], %12 {strides = array<i32>} : memref<68x32xf32, #tpu.memory_space<vmem>>, vector<68x32xf32>,
    } else {
    }
    %c0 = arith.constant 0 : index
    %c0_1 = arith.constant 0 : index
    %3 = vector.load %arg8[%c0, %c0_1] : memref<68x32xf32, #tpu.memory_space<vmem>>, vector<68x32xf32>
    %c0_2 = arith.constant 0 : index
    %c0_3 = arith.constant 0 : index
    %4 = vector.load %arg3[%c0_2, %c0_3] : memref<68x32xf32, #tpu.memory_space<vmem>>, vector<68x32xf32>
    %c0_4 = arith.constant 0 : index
    %c0_5 = arith.constant 0 : index
    %5 = vector.load %arg4[%c0_4, %c0_5] : memref<32x32xf32, #tpu.memory_space<vmem>>, vector<32x32xf32>
    %cst = arith.constant dense<0.000000e+00> : vector<68x32xf32>
    %6 = tpu.matmul %4, %5, %cst {dimension_numbers = #tpu.dot_dimension_numbers<[1], [0], [0], [1], [0, 0, 1, 1], [], []>} : vector<68x32xf32>, vector<32x32xf32>, vector<68x32xf32> -> vector<68x32xf32>
    %7 = arith.addf %3, %6 : vector<68x32xf32>
    %c0_6 = arith.constant 0 : index
    %c0_7 = arith.constant 0 : index
    %8 = vector.load %arg8[%c0_6, %c0_7] : memref<68x32xf32, #tpu.memory_space<vmem>>, vector<68x32xf32>
    tpu.vector_store %arg8[%c0_6, %c0_7], %7 {strides = array<i32>} : memref<68x32xf32, #tpu.memory_space<vmem>>, vector<68x32xf32>,
    %c0_i32_8 = arith.constant 0 : i32
    %9 = arith.cmpi eq, %arg2, %c0_i32_8 : i32
    %10 = arith.extui %9 : i1 to i32
    %c0_i32_9 = arith.constant 0 : i32
    %11 = arith.cmpi ne, %10, %c0_i32_9 : i32
    scf.if %11 {
      %c0_10 = arith.constant 0 : index
      %c0_11 = arith.constant 0 : index
      %12 = vector.load %arg8[%c0_10, %c0_11] : memref<68x32xf32, #tpu.memory_space<vmem>>, vector<68x32xf32>
      %c0_12 = arith.constant 0 : index
      %c0_13 = arith.constant 0 : index
      %13 = vector.load %arg5[%c0_12, %c0_13] : memref<1x32xf32, #tpu.memory_space<vmem>>, vector<1x32xf32>
      %14 = vector.broadcast %13 : vector<1x32xf32> to vector<68x32xf32>
      %15 = arith.addf %12, %14 : vector<68x32xf32>
      %c0_14 = arith.constant 0 : index
      %c0_15 = arith.constant 0 : index
      %16 = vector.load %arg6[%c0_14, %c0_15] : memref<68x32xf32, #tpu.memory_space<vmem>>, vector<68x32xf32>
      %17 = arith.addf %15, %16 : vector<68x32xf32>
      %c0_16 = arith.constant 0 : index
      %c0_17 = arith.constant 0 : index
      %18 = vector.load %arg7[%c0_16, %c0_17] : memref<68x32xf32, #tpu.memory_space<vmem>>, vector<68x32xf32>
      tpu.vector_store %arg7[%c0_16, %c0_17], %17 {strides = array<i32>} : memref<68x32xf32, #tpu.memory_space<vmem>>, vector<68x32xf32>,
    } else {
    }
    return
  }
  func.func @transform_0(%arg0: i32, %arg1: i32, %arg2: i32) -> (i32, i32) {
    %c0_i32 = arith.constant 0 : i32
    return %arg0, %arg2 : i32, i32
  }
  func.func @transform_1(%arg0: i32, %arg1: i32, %arg2: i32) -> (i32, i32) {
    %c0_i32 = arith.constant 0 : i32
    return %arg2, %arg1 : i32, i32
  }
  func.func @transform_2(%arg0: i32, %arg1: i32, %arg2: i32) -> (i32, i32) {
    %c0_i32 = arith.constant 0 : i32
    %c0_i32_0 = arith.constant 0 : i32
    return %c0_i32, %arg1 : i32, i32
  }
  func.func @transform_3(%arg0: i32, %arg1: i32, %arg2: i32) -> (i32, i32) {
    %c0_i32 = arith.constant 0 : i32
    return %arg0, %arg1 : i32, i32
  }
  func.func @transform_4(%arg0: i32, %arg1: i32, %arg2: i32) -> (i32, i32) {
    %c0_i32 = arith.constant 0 : i32
    return %arg0, %arg1 : i32, i32
  }
}

module attributes {stable_mosaic.version = 11 : i64} {
  func.func @_ln_linear_kernel(%arg0: i32, %arg1: i32, %arg2: memref<68x32xf32, #tpu.memory_space<vmem>>, %arg3: memref<1x32xf32, #tpu.memory_space<vmem>>, %arg4: memref<1x32xf32, #tpu.memory_space<vmem>>, %arg5: memref<32x128xf32, #tpu.memory_space<vmem>>, %arg6: memref<1x128xf32, #tpu.memory_space<vmem>>, %arg7: memref<68x128xf32, #tpu.memory_space<vmem>>) attributes {dimension_semantics = [#tpu.dimension_semantics<parallel>, #tpu.dimension_semantics<parallel>], iteration_bounds = array<i64: 1, 1>, scalar_prefetch = 0 : i64, scratch_operands = 0 : i64, tpu.core_type = #tpu.core_type<tc>, window_params = [{transform_indices = @transform_0, window_bounds = array<i64: 68, 32>}, {pipeline_mode = #tpu.pipeline_mode<synchronous>, transform_indices = @transform_1, window_bounds = array<i64: 1, 32>}, {pipeline_mode = #tpu.pipeline_mode<synchronous>, transform_indices = @transform_2, window_bounds = array<i64: 1, 32>}, {transform_indices = @transform_3, window_bounds = array<i64: 32, 128>}, {transform_indices = @transform_4, window_bounds = array<i64: 1, 128>}, {transform_indices = @transform_5, window_bounds = array<i64: 68, 128>}]} {
    %c0 = arith.constant 0 : index
    %c0_0 = arith.constant 0 : index
    %0 = vector.load %arg2[%c0, %c0_0] : memref<68x32xf32, #tpu.memory_space<vmem>>, vector<68x32xf32>
    %cst = arith.constant dense<0.000000e+00> : vector<68xf32>
    %1 = vector.multi_reduction <add>, %0, %cst [1] : vector<68x32xf32> to vector<68xf32>
    %2 = vector.shape_cast %1 : vector<68xf32> to vector<68x1xf32>
    %cst_1 = arith.constant 3.200000e+01 : f32
    %3 = vector.broadcast %cst_1 : f32 to vector<68x1xf32>
    %4 = arith.divf %2, %3 : vector<68x1xf32>
    %5 = vector.broadcast %4 : vector<68x1xf32> to vector<68x32xf32>
    %6 = arith.subf %0, %5 : vector<68x32xf32>
    %7 = arith.mulf %6, %6 : vector<68x32xf32>
    %cst_2 = arith.constant dense<0.000000e+00> : vector<68xf32>
    %8 = vector.multi_reduction <add>, %7, %cst_2 [1] : vector<68x32xf32> to vector<68xf32>
    %9 = vector.shape_cast %8 : vector<68xf32> to vector<68x1xf32>
    %cst_3 = arith.constant 3.200000e+01 : f32
    %10 = vector.broadcast %cst_3 : f32 to vector<68x1xf32>
    %11 = arith.divf %9, %10 : vector<68x1xf32>
    %cst_4 = arith.constant 9.99999974E-6 : f32
    %12 = vector.broadcast %cst_4 : f32 to vector<68x1xf32>
    %13 = arith.addf %11, %12 : vector<68x1xf32>
    %14 = math.rsqrt %13 : vector<68x1xf32>
    %15 = vector.broadcast %14 : vector<68x1xf32> to vector<68x32xf32>
    %16 = arith.mulf %6, %15 : vector<68x32xf32>
    %c0_5 = arith.constant 0 : index
    %c0_6 = arith.constant 0 : index
    %17 = vector.load %arg3[%c0_5, %c0_6] : memref<1x32xf32, #tpu.memory_space<vmem>>, vector<1x32xf32>
    %18 = vector.broadcast %17 : vector<1x32xf32> to vector<68x32xf32>
    %19 = arith.mulf %16, %18 : vector<68x32xf32>
    %c0_7 = arith.constant 0 : index
    %c0_8 = arith.constant 0 : index
    %20 = vector.load %arg4[%c0_7, %c0_8] : memref<1x32xf32, #tpu.memory_space<vmem>>, vector<1x32xf32>
    %21 = vector.broadcast %20 : vector<1x32xf32> to vector<68x32xf32>
    %22 = arith.addf %19, %21 : vector<68x32xf32>
    %c0_9 = arith.constant 0 : index
    %c0_10 = arith.constant 0 : index
    %23 = vector.load %arg5[%c0_9, %c0_10] : memref<32x128xf32, #tpu.memory_space<vmem>>, vector<32x128xf32>
    %cst_11 = arith.constant dense<0.000000e+00> : vector<68x128xf32>
    %24 = tpu.matmul %22, %23, %cst_11 {dimension_numbers = #tpu.dot_dimension_numbers<[1], [0], [0], [1], [0, 0, 1, 1], [], []>} : vector<68x32xf32>, vector<32x128xf32>, vector<68x128xf32> -> vector<68x128xf32>
    %c0_12 = arith.constant 0 : index
    %c0_13 = arith.constant 0 : index
    %25 = vector.load %arg6[%c0_12, %c0_13] : memref<1x128xf32, #tpu.memory_space<vmem>>, vector<1x128xf32>
    %26 = vector.broadcast %25 : vector<1x128xf32> to vector<68x128xf32>
    %27 = arith.addf %24, %26 : vector<68x128xf32>
    %cst_14 = arith.constant 1.702000e+00 : f32
    %28 = vector.broadcast %cst_14 : f32 to vector<68x128xf32>
    %29 = arith.mulf %28, %27 : vector<68x128xf32>
    %30 = arith.negf %29 : vector<68x128xf32>
    %31 = math.exp %30 : vector<68x128xf32>
    %cst_15 = arith.constant 1.000000e+00 : f32
    %32 = vector.broadcast %cst_15 : f32 to vector<68x128xf32>
    %33 = arith.addf %32, %31 : vector<68x128xf32>
    %34 = arith.divf %32, %33 : vector<68x128xf32>
    %35 = arith.mulf %27, %34 : vector<68x128xf32>
    %c0_16 = arith.constant 0 : index
    %c0_17 = arith.constant 0 : index
    %36 = vector.load %arg7[%c0_16, %c0_17] : memref<68x128xf32, #tpu.memory_space<vmem>>, vector<68x128xf32>
    tpu.vector_store %arg7[%c0_16, %c0_17], %35 {strides = array<i32>} : memref<68x128xf32, #tpu.memory_space<vmem>>, vector<68x128xf32>,
    return
  }
  func.func @transform_0(%arg0: i32, %arg1: i32) -> (i32, i32) {
    %c0_i32 = arith.constant 0 : i32
    %c0_i32_0 = arith.constant 0 : i32
    return %arg0, %c0_i32 : i32, i32
  }
  func.func @transform_1(%arg0: i32, %arg1: i32) -> (i32, i32) {
    %c0_i32 = arith.constant 0 : i32
    %c0_i32_0 = arith.constant 0 : i32
    %c0_i32_1 = arith.constant 0 : i32
    return %c0_i32, %c0_i32_0 : i32, i32
  }
  func.func @transform_2(%arg0: i32, %arg1: i32) -> (i32, i32) {
    %c0_i32 = arith.constant 0 : i32
    %c0_i32_0 = arith.constant 0 : i32
    %c0_i32_1 = arith.constant 0 : i32
    return %c0_i32, %c0_i32_0 : i32, i32
  }
  func.func @transform_3(%arg0: i32, %arg1: i32) -> (i32, i32) {
    %c0_i32 = arith.constant 0 : i32
    %c0_i32_0 = arith.constant 0 : i32
    return %c0_i32, %arg1 : i32, i32
  }
  func.func @transform_4(%arg0: i32, %arg1: i32) -> (i32, i32) {
    %c0_i32 = arith.constant 0 : i32
    %c0_i32_0 = arith.constant 0 : i32
    return %c0_i32, %arg1 : i32, i32
  }
  func.func @transform_5(%arg0: i32, %arg1: i32) -> (i32, i32) {
    %c0_i32 = arith.constant 0 : i32
    return %arg0, %arg1 : i32, i32
  }
}

module attributes {stable_mosaic.version = 11 : i64} {
  func.func @_linear_residual_kernel(%arg0: i32, %arg1: i32, %arg2: i32, %arg3: memref<68x128xf32, #tpu.memory_space<vmem>>, %arg4: memref<128x32xf32, #tpu.memory_space<vmem>>, %arg5: memref<1x32xf32, #tpu.memory_space<vmem>>, %arg6: memref<68x32xf32, #tpu.memory_space<vmem>>, %arg7: memref<68x32xf32, #tpu.memory_space<vmem>>, %arg8: memref<68x32xf32, #tpu.memory_space<vmem>>) attributes {dimension_semantics = [#tpu.dimension_semantics<parallel>, #tpu.dimension_semantics<parallel>, #tpu.dimension_semantics<arbitrary>], iteration_bounds = array<i64: 1, 1, 1>, scalar_prefetch = 0 : i64, scratch_operands = 1 : i64, tpu.core_type = #tpu.core_type<tc>, window_params = [{transform_indices = @transform_0, window_bounds = array<i64: 68, 128>}, {transform_indices = @transform_1, window_bounds = array<i64: 128, 32>}, {transform_indices = @transform_2, window_bounds = array<i64: 1, 32>}, {transform_indices = @transform_3, window_bounds = array<i64: 68, 32>}, {transform_indices = @transform_4, window_bounds = array<i64: 68, 32>}]} {
    %c0_i32 = arith.constant 0 : i32
    %0 = arith.cmpi eq, %arg2, %c0_i32 : i32
    %1 = arith.extui %0 : i1 to i32
    %c0_i32_0 = arith.constant 0 : i32
    %2 = arith.cmpi ne, %1, %c0_i32_0 : i32
    scf.if %2 {
      %cst_10 = arith.constant 0.000000e+00 : f32
      %12 = vector.broadcast %cst_10 : f32 to vector<68x32xf32>
      %c0_11 = arith.constant 0 : index
      %c0_12 = arith.constant 0 : index
      %13 = vector.load %arg8[%c0_11, %c0_12] : memref<68x32xf32, #tpu.memory_space<vmem>>, vector<68x32xf32>
      tpu.vector_store %arg8[%c0_11, %c0_12], %12 {strides = array<i32>} : memref<68x32xf32, #tpu.memory_space<vmem>>, vector<68x32xf32>,
    } else {
    }
    %c0 = arith.constant 0 : index
    %c0_1 = arith.constant 0 : index
    %3 = vector.load %arg8[%c0, %c0_1] : memref<68x32xf32, #tpu.memory_space<vmem>>, vector<68x32xf32>
    %c0_2 = arith.constant 0 : index
    %c0_3 = arith.constant 0 : index
    %4 = vector.load %arg3[%c0_2, %c0_3] : memref<68x128xf32, #tpu.memory_space<vmem>>, vector<68x128xf32>
    %c0_4 = arith.constant 0 : index
    %c0_5 = arith.constant 0 : index
    %5 = vector.load %arg4[%c0_4, %c0_5] : memref<128x32xf32, #tpu.memory_space<vmem>>, vector<128x32xf32>
    %cst = arith.constant dense<0.000000e+00> : vector<68x32xf32>
    %6 = tpu.matmul %4, %5, %cst {dimension_numbers = #tpu.dot_dimension_numbers<[1], [0], [0], [1], [0, 0, 1, 1], [], []>} : vector<68x128xf32>, vector<128x32xf32>, vector<68x32xf32> -> vector<68x32xf32>
    %7 = arith.addf %3, %6 : vector<68x32xf32>
    %c0_6 = arith.constant 0 : index
    %c0_7 = arith.constant 0 : index
    %8 = vector.load %arg8[%c0_6, %c0_7] : memref<68x32xf32, #tpu.memory_space<vmem>>, vector<68x32xf32>
    tpu.vector_store %arg8[%c0_6, %c0_7], %7 {strides = array<i32>} : memref<68x32xf32, #tpu.memory_space<vmem>>, vector<68x32xf32>,
    %c0_i32_8 = arith.constant 0 : i32
    %9 = arith.cmpi eq, %arg2, %c0_i32_8 : i32
    %10 = arith.extui %9 : i1 to i32
    %c0_i32_9 = arith.constant 0 : i32
    %11 = arith.cmpi ne, %10, %c0_i32_9 : i32
    scf.if %11 {
      %c0_10 = arith.constant 0 : index
      %c0_11 = arith.constant 0 : index
      %12 = vector.load %arg8[%c0_10, %c0_11] : memref<68x32xf32, #tpu.memory_space<vmem>>, vector<68x32xf32>
      %c0_12 = arith.constant 0 : index
      %c0_13 = arith.constant 0 : index
      %13 = vector.load %arg5[%c0_12, %c0_13] : memref<1x32xf32, #tpu.memory_space<vmem>>, vector<1x32xf32>
      %14 = vector.broadcast %13 : vector<1x32xf32> to vector<68x32xf32>
      %15 = arith.addf %12, %14 : vector<68x32xf32>
      %c0_14 = arith.constant 0 : index
      %c0_15 = arith.constant 0 : index
      %16 = vector.load %arg6[%c0_14, %c0_15] : memref<68x32xf32, #tpu.memory_space<vmem>>, vector<68x32xf32>
      %17 = arith.addf %15, %16 : vector<68x32xf32>
      %c0_16 = arith.constant 0 : index
      %c0_17 = arith.constant 0 : index
      %18 = vector.load %arg7[%c0_16, %c0_17] : memref<68x32xf32, #tpu.memory_space<vmem>>, vector<68x32xf32>
      tpu.vector_store %arg7[%c0_16, %c0_17], %17 {strides = array<i32>} : memref<68x32xf32, #tpu.memory_space<vmem>>, vector<68x32xf32>,
    } else {
    }
    return
  }
  func.func @transform_0(%arg0: i32, %arg1: i32, %arg2: i32) -> (i32, i32) {
    %c0_i32 = arith.constant 0 : i32
    return %arg0, %arg2 : i32, i32
  }
  func.func @transform_1(%arg0: i32, %arg1: i32, %arg2: i32) -> (i32, i32) {
    %c0_i32 = arith.constant 0 : i32
    return %arg2, %arg1 : i32, i32
  }
  func.func @transform_2(%arg0: i32, %arg1: i32, %arg2: i32) -> (i32, i32) {
    %c0_i32 = arith.constant 0 : i32
    %c0_i32_0 = arith.constant 0 : i32
    return %c0_i32, %arg1 : i32, i32
  }
  func.func @transform_3(%arg0: i32, %arg1: i32, %arg2: i32) -> (i32, i32) {
    %c0_i32 = arith.constant 0 : i32
    return %arg0, %arg1 : i32, i32
  }
  func.func @transform_4(%arg0: i32, %arg1: i32, %arg2: i32) -> (i32, i32) {
    %c0_i32 = arith.constant 0 : i32
    return %arg0, %arg1 : i32, i32
  }
}

</mosaic_0001>

<llo_original>
// kernel: residual_attention_block.11
$region0: #{residual_attention_block.11}
  #allocation0 [shape = 'u32[]', space=smem, size = 0x4, offset = 0x4, fixed_abs, tag = 'smem constant byte address 0x4 - core index']
  #allocation1 [shape = 'u32[72,128]{1,0:T(1,128)}', space=vmem, size = 0x9000, scoped, tag = 'internal scratch']
  #allocation2 [shape = 'f32[64,8]{1,0:T(8,128)}', space=vmem, size = 0x8000, scoped, tag = 'scratch operand']
  %s0 = inlined_call_operand.vmem [shape: f32[64,32], index: 0, kind: input, shape index: {}]
  %s1 = inlined_call_operand.vmem [shape: f32[32,8], index: 1, kind: input, shape index: {}]
  %s2 = inlined_call_operand.vmem [shape: f32[1,8], index: 2, kind: input, shape index: {}]
  %s3 = inlined_call_operand.vmem [shape: f32[64,8], index: 3, kind: output, shape index: {}]
  %s4 = sld [smem:[#allocation0]]
  $region30: #{residual_attention_block.11} parent=0
    _
  %s6 = ssub.s32 1, %s4
  %s7 = scalar_select 0, %s6, %s4
  // Predicated region
  $region2: #{residual_attention_block.11} parent=0 // pred_check
    _
  $region3: #{residual_attention_block.11} parent=0 // pred_check_branch
    %9 = sbr.rel (0) target = $region5
  $region4: #{residual_attention_block.11} parent=0 // pred_region
    _
  $region5: #{residual_attention_block.11} parent=0 // pred_fallthru
    _
  // Predicated region
  $region6: #{residual_attention_block.11} parent=0 // pred_check
    _
  $region7: #{residual_attention_block.11} parent=0 // pred_check_branch
    %11 = sbr.rel (0) target = $region9
  $region8: #{residual_attention_block.11} parent=0 // pred_region
    _
  $region9: #{residual_attention_block.11} parent=0 // pred_fallthru
    _
  // Predicated region
  $region10: #{residual_attention_block.11} parent=0 // pred_check
    _
  $region11: #{residual_attention_block.11} parent=0 // pred_check_branch
    %13 = sbr.rel (0) target = $region13
  $region12: #{residual_attention_block.11} parent=0 // pred_region
    _
  $region13: #{residual_attention_block.11} parent=0 // pred_fallthru
    _
  %p14 = scmp.eq.s32.totalorder 0, 0
  // Predicated region
  $region14: #{residual_attention_block.11} parent=0 // pred_check
    %p15 = pneg %p14
  $region15: #{residual_attention_block.11} parent=0 // pred_check_branch
    %17 = sbr.rel (%p15) target = $region17
  $region16: #{residual_attention_block.11} parent=0 // pred_region
    %vm18 = vcmask 64512
    %19 = vst.msk [vmem:[#allocation2] sm:$0xff] %vm18, 0.0
    %20 = vst.msk [vmem:[#allocation2 + $0x8] sm:$0xff] %vm18, 0.0
    %21 = vst.msk [vmem:[#allocation2 + $0x10] sm:$0xff] %vm18, 0.0
    %22 = vst.msk [vmem:[#allocation2 + $0x18] sm:$0xff] %vm18, 0.0
    %23 = vst.msk [vmem:[#allocation2 + $0x20] sm:$0xff] %vm18, 0.0
    %24 = vst.msk [vmem:[#allocation2 + $0x28] sm:$0xff] %vm18, 0.0
    %25 = vst.msk [vmem:[#allocation2 + $0x30] sm:$0xff] %vm18, 0.0
    %26 = vst.msk [vmem:[#allocation2 + $0x38] sm:$0xff] %vm18, 0.0
  $region17: #{residual_attention_block.11} parent=0 // pred_fallthru
    _
  %v27 = vld [vmem:[#allocation2] sm:$0xff]
  %v28 = vld [vmem:[#allocation2 + $0x8] sm:$0xff]
  %v29 = vld [vmem:[#allocation2 + $0x10] sm:$0xff]
  %v30 = vld [vmem:[#allocation2 + $0x18] sm:$0xff]
  %v31 = vld [vmem:[#allocation2 + $0x20] sm:$0xff]
  %v32 = vld [vmem:[#allocation2 + $0x28] sm:$0xff]
  %v33 = vld [vmem:[#allocation2 + $0x30] sm:$0xff]
  %v34 = vld [vmem:[#allocation2 + $0x38] sm:$0xff]
  %v35 = vld [vmem:[%s0] sm:$0xff]
  %v36 = vld [vmem:[%s0 + $0x8] sm:$0xff]
  %v37 = vld [vmem:[%s0 + $0x10] sm:$0xff]
  %v38 = vld [vmem:[%s0 + $0x18] sm:$0xff]
  %v39 = vld [vmem:[%s0 + $0x20] sm:$0xff]
  %v40 = vld [vmem:[%s0 + $0x28] sm:$0xff]
  %v41 = vld [vmem:[%s0 + $0x30] sm:$0xff]
  %v42 = vld [vmem:[%s0 + $0x38] sm:$0xff]
  %v43 = vld [vmem:[%s1] sm:$0xff]
  %v44 = vld [vmem:[%s1 + $0x8] sm:$0xff]
  %v45 = vld [vmem:[%s1 + $0x10] sm:$0xff]
  %v46 = vld [vmem:[%s1 + $0x18] sm:$0xff]
  %vm47 = vcmask 261120
  %v49 = vsel %vm47, %v35, 0
  %v52 = vsel %vm47, %v36, 0
  %v55 = vsel %vm47, %v37, 0
  %v58 = vsel %vm47, %v38, 0
  %v61 = vsel %vm47, %v39, 0
  %v64 = vsel %vm47, %v40, 0
  %v67 = vsel %vm47, %v41, 0
  %v70 = vsel %vm47, %v42, 0
  %72 = vmatpush.msra.mxu0 0.0
  %73 = vmatpush.msra.mxu0 0.0
  %74 = vmatpush.msra.mxu0 0.0
  %75 = vmatpush.msra.mxu0 0.0
  %76 = vmatpush.msra.mxu0 0.0
  %77 = vmatpush.msra.mxu0 0.0
  %78 = vmatpush.msra.mxu0 0.0
  %79 = vmatpush.msra.mxu0 0.0
  %80 = vmatpush.msra.mxu0 0.0
  %81 = vmatpush.msra.mxu0 0.0
  %82 = vmatpush.msra.mxu0 0.0
  %83 = vmatpush.msra.mxu0 0.0
  %84 = vmatpush.msra.mxu0 %v46
  %85 = vmatpush.msra.mxu0 %v45
  %86 = vmatpush.msra.mxu0 %v44
  %87 = vmatpush.msra.mxu0 %v43
  %88 = vmatmul.f32.gmra.mxu0 %v49
  %v89 = vpop.f32.mrf.mxu0
  %v90 = vadd.f32 0.0, %v89
  %91 = vmatmul.f32.gmra.mxu0 %v52
  %v92 = vpop.f32.mrf.mxu0
  %v93 = vadd.f32 0.0, %v92
  %94 = vmatmul.f32.gmra.mxu0 %v55
  %v95 = vpop.f32.mrf.mxu0
  %v96 = vadd.f32 0.0, %v95
  %97 = vmatmul.f32.gmra.mxu0 %v58
  %v98 = vpop.f32.mrf.mxu0
  %v99 = vadd.f32 0.0, %v98
  %100 = vmatmul.f32.gmra.mxu0 %v61
  %v101 = vpop.f32.mrf.mxu0
  %v102 = vadd.f32 0.0, %v101
  %103 = vmatmul.f32.gmra.mxu0 %v64
  %v104 = vpop.f32.mrf.mxu0
  %v105 = vadd.f32 0.0, %v104
  %106 = vmatmul.f32.gmra.mxu0 %v67
  %v107 = vpop.f32.mrf.mxu0
  %v108 = vadd.f32 0.0, %v107
  %109 = vmatmul.f32.gmra.mxu0 %v70
  %v110 = vpop.f32.mrf.mxu0
  %v111 = vadd.f32 0.0, %v110
  %112 = vdwg.mxu0
  %v113 = vadd.f32 %v27, %v90
  %v114 = vadd.f32 %v28, %v93
  %v115 = vadd.f32 %v29, %v96
  %v116 = vadd.f32 %v30, %v99
  %v117 = vadd.f32 %v31, %v102
  %v118 = vadd.f32 %v32, %v105
  %v119 = vadd.f32 %v33, %v108
  %v120 = vadd.f32 %v34, %v111
  %vm121 = vcmask 64512
  %122 = vst.msk [vmem:[#allocation2] sm:$0xff] %vm121, %v113
  %123 = vst.msk [vmem:[#allocation2 + $0x8] sm:$0xff] %vm121, %v114
  %124 = vst.msk [vmem:[#allocation2 + $0x10] sm:$0xff] %vm121, %v115
  %125 = vst.msk [vmem:[#allocation2 + $0x18] sm:$0xff] %vm121, %v116
  %126 = vst.msk [vmem:[#allocation2 + $0x20] sm:$0xff] %vm121, %v117
  %127 = vst.msk [vmem:[#allocation2 + $0x28] sm:$0xff] %vm121, %v118
  %128 = vst.msk [vmem:[#allocation2 + $0x30] sm:$0xff] %vm121, %v119
  %129 = vst.msk [vmem:[#allocation2 + $0x38] sm:$0xff] %vm121, %v120
  // Predicated region
  $region18: #{residual_attention_block.11} parent=0 // pred_check
    %p130 = pneg %p14
  $region19: #{residual_attention_block.11} parent=0 // pred_check_branch
    %132 = sbr.rel (%p130) target = $region21
  $region20: #{residual_attention_block.11} parent=0 // pred_region
    %v133 = vld [vmem:[#allocation2] sm:$0xff]
    %v134 = vld [vmem:[#allocation2 + $0x8] sm:$0xff]
    %v135 = vld [vmem:[#allocation2 + $0x10] sm:$0xff]
    %v136 = vld [vmem:[#allocation2 + $0x18] sm:$0xff]
    %v137 = vld [vmem:[#allocation2 + $0x20] sm:$0xff]
    %v138 = vld [vmem:[#allocation2 + $0x28] sm:$0xff]
    %v139 = vld [vmem:[#allocation2 + $0x30] sm:$0xff]
    %v140 = vld [vmem:[#allocation2 + $0x38] sm:$0xff]
    %v141 = vld [vmem:[%s2] sm:$0x1]
    %v143 = vperm.slane %v141, 0
    %v145 = vadd.f32 %v133, %v143
    %v146 = vadd.f32 %v134, %v143
    %v147 = vadd.f32 %v135, %v143
    %v148 = vadd.f32 %v136, %v143
    %v149 = vadd.f32 %v137, %v143
    %v150 = vadd.f32 %v138, %v143
    %v151 = vadd.f32 %v139, %v143
    %v152 = vadd.f32 %v140, %v143
    %153 = vst.msk [vmem:[%s3] sm:$0xff] %vm121, %v145
    %154 = vst.msk [vmem:[%s3 + $0x8] sm:$0xff] %vm121, %v146
    %155 = vst.msk [vmem:[%s3 + $0x10] sm:$0xff] %vm121, %v147
    %156 = vst.msk [vmem:[%s3 + $0x18] sm:$0xff] %vm121, %v148
    %157 = vst.msk [vmem:[%s3 + $0x20] sm:$0xff] %vm121, %v149
    %158 = vst.msk [vmem:[%s3 + $0x28] sm:$0xff] %vm121, %v150
    %159 = vst.msk [vmem:[%s3 + $0x30] sm:$0xff] %vm121, %v151
    %160 = vst.msk [vmem:[%s3 + $0x38] sm:$0xff] %vm121, %v152
  $region21: #{residual_attention_block.11} parent=0 // pred_fallthru
    _
  // Predicated region
  $region22: #{residual_attention_block.11} parent=0 // pred_check
    _
  $region23: #{residual_attention_block.11} parent=0 // pred_check_branch
    %162 = sbr.rel (0) target = $region25
  $region24: #{residual_attention_block.11} parent=0 // pred_region
    _
  $region25: #{residual_attention_block.11} parent=0 // pred_fallthru
    _
  // Predicated region
  $region26: #{residual_attention_block.11} parent=0 // pred_check
    _
  $region27: #{residual_attention_block.11} parent=0 // pred_check_branch
    %164 = sbr.rel (0) target = $region29
  $region28: #{residual_attention_block.11} parent=0 // pred_region
    _
  $region29: #{residual_attention_block.11} parent=0 // pred_fallthru
    _

// kernel: residual_attention_block.13
$region0: #{residual_attention_block.13}
  #allocation0 [shape = 'u32[]', space=smem, size = 0x4, offset = 0x4, fixed_abs, tag = 'smem constant byte address 0x4 - core index']
  #allocation1 [shape = 'u32[72,128]{1,0:T(1,128)}', space=vmem, size = 0x9000, scoped, tag = 'internal scratch']
  %s0 = inlined_call_operand.vmem [shape: f32[4,16,8], index: 0, kind: input, shape index: {}]
  %s1 = inlined_call_operand.vmem [shape: f32[8,32], index: 1, kind: input, shape index: {}]
  %s2 = inlined_call_operand.vmem [shape: f32[1,32], index: 2, kind: input, shape index: {}]
  %s3 = inlined_call_operand.vmem [shape: f32[4,17,32], index: 3, kind: input, shape index: {}, may-alias: {3,4}]
  %s4 = inlined_call_operand.vmem [shape: f32[4,17,32], index: 4, kind: output, shape index: {}, may-alias: {3,4}]
  %s5 = sld [smem:[#allocation0]]
  $region49: #{residual_attention_block.13} parent=0
    _
  %s7 = ssub.s32 1, %s5
  %s8 = scalar_select 0, %s7, %s5
  loop: start=0, step=1, limit=6
  $region2: #{residual_attention_block.13} parent=0 // loop_pre_header
    _
  $region3: #{residual_attention_block.13} parent=0 // loop_header
    %s10 = sphi 0, %s14
    %p11 = scmp.ge.s32.totalorder %s10, 6
    %s20 = sphi 0, %s22
    %s23 = sphi 0, %s20
    %s24 = sphi 0, %s23
    %s40 = sphi 0, %s24
    %s44 = sphi 0, %s44
    %s46 = sphi 0, %s44
    %s47 = sphi 0, %s46
    %s61 = sphi 0, %s47
    %s65 = sphi 0, %s65
    %s67 = sphi 0, %s65
    %s68 = sphi 0, %s67
    %s82 = sphi 0, %s68
    %s88 = sphi 0, %s90
    %s91 = sphi 0, %s88
    %s92 = sphi 0, %s91
    %s108 = sphi 0, %s92
    %s114 = sphi 0, %s116
    %s117 = sphi 0, %s114
    %s118 = sphi 0, %s117
    %s134 = sphi 0, %s118
  $region4: #{residual_attention_block.13} parent=0 // loop_header_branch
    %13 = sbr.rel (%p11) target = $region8
  $region5: #{residual_attention_block.13} parent=0 // loop_body
    %s15 = ssub.s32 %s10, 1
    %s16 = ssub.s32 %s10, 2
    %s17 = sadd.s32 %s10, 1
    %s18 = ssub.s32 %s10, %s17
    %p19 = scmp.eq.s32.totalorder %s18, 0
    %s21 = sadd.s32 %s20, 1
    %s22 = scalar_select %p19, %s20, %s21
    %p25 = pneg %p19
    %p26 = scmp.eq.s32.totalorder %s10, 3
    %p27 = por %p25, %p26
    %p28 = scmp.ne.s32.totalorder %s20, %s23
    %p29 = scmp.eq.s32.totalorder %s10, 0
    %p30 = por %p28, %p29
    %p31 = scmp.ne.s32.totalorder %s20, %s23
    %p32 = scmp.eq.s32.totalorder %s15, 3
    %p33 = por %p31, %p32
    %p34 = scmp.ne.s32.totalorder %s23, %s24
    %p35 = scmp.eq.s32.totalorder %s15, 0
    %p36 = por %p34, %p35
    %p37 = scmp.ne.s32.totalorder %s23, %s24
    %p38 = scmp.eq.s32.totalorder %s16, 3
    %p39 = por %p37, %p38
    %p41 = scmp.ne.s32.totalorder %s24, %s40
    %p42 = scmp.eq.s32.totalorder %s16, 0
    %p43 = por %p41, %p42
    %s45 = sadd.s32 %s44, 1
    %p48 = scmp.eq.s32.totalorder %s10, 3
    %p49 = scmp.ne.s32.totalorder %s44, %s46
    %p50 = scmp.eq.s32.totalorder %s10, 0
    %p51 = por %p49, %p50
    %p52 = scmp.ne.s32.totalorder %s44, %s46
    %p53 = scmp.eq.s32.totalorder %s15, 3
    %p54 = por %p52, %p53
    %p55 = scmp.ne.s32.totalorder %s46, %s47
    %p56 = scmp.eq.s32.totalorder %s15, 0
    %p57 = por %p55, %p56
    %p58 = scmp.ne.s32.totalorder %s46, %s47
    %p59 = scmp.eq.s32.totalorder %s16, 3
    %p60 = por %p58, %p59
    %p62 = scmp.ne.s32.totalorder %s47, %s61
    %p63 = scmp.eq.s32.totalorder %s16, 0
    %p64 = por %p62, %p63
    %s66 = sadd.s32 %s65, 1
    %p69 = scmp.eq.s32.totalorder %s10, 3
    %p70 = scmp.ne.s32.totalorder %s65, %s67
    %p71 = scmp.eq.s32.totalorder %s10, 0
    %p72 = por %p70, %p71
    %p73 = scmp.ne.s32.totalorder %s65, %s67
    %p74 = scmp.eq.s32.totalorder %s15, 3
    %p75 = por %p73, %p74
    %p76 = scmp.ne.s32.totalorder %s67, %s68
    %p77 = scmp.eq.s32.totalorder %s15, 0
    %p78 = por %p76, %p77
    %p79 = scmp.ne.s32.totalorder %s67, %s68
    %p80 = scmp.eq.s32.totalorder %s16, 3
    %p81 = por %p79, %p80
    %p83 = scmp.ne.s32.totalorder %s68, %s82
    %p84 = scmp.eq.s32.totalorder %s16, 0
    %p85 = por %p83, %p84
    %s86 = ssub.s32 %s10, %s17
    %p87 = scmp.eq.s32.totalorder %s86, 0
    %s89 = sadd.s32 %s88, 1
    %s90 = scalar_select %p87, %s88, %s89
    %p93 = pneg %p87
    %p94 = scmp.eq.s32.totalorder %s10, 3
    %p95 = por %p93, %p94
    %p96 = scmp.ne.s32.totalorder %s88, %s91
    %p97 = scmp.eq.s32.totalorder %s10, 0
    %p98 = por %p96, %p97
    %p99 = scmp.ne.s32.totalorder %s88, %s91
    %p100 = scmp.eq.s32.totalorder %s15, 3
    %p101 = por %p99, %p100
    %p102 = scmp.ne.s32.totalorder %s91, %s92
    %p103 = scmp.eq.s32.totalorder %s15, 0
    %p104 = por %p102, %p103
    %p105 = scmp.ne.s32.totalorder %s91, %s92
    %p106 = scmp.eq.s32.totalorder %s16, 3
    %p107 = por %p105, %p106
    %p109 = scmp.ne.s32.totalorder %s92, %s108
    %p110 = scmp.eq.s32.totalorder %s16, 0
    %p111 = por %p109, %p110
    %s112 = ssub.s32 %s10, %s17
    %p113 = scmp.eq.s32.totalorder %s112, 0
    %s115 = sadd.s32 %s114, 1
    %s116 = scalar_select %p113, %s114, %s115
    %p119 = pneg %p113
    %p120 = scmp.eq.s32.totalorder %s10, 3
    %p121 = por %p119, %p120
    %p122 = scmp.ne.s32.totalorder %s114, %s117
    %p123 = scmp.eq.s32.totalorder %s10, 0
    %p124 = por %p122, %p123
    %p125 = scmp.ne.s32.totalorder %s114, %s117
    %p126 = scmp.eq.s32.totalorder %s15, 3
    %p127 = por %p125, %p126
    %p128 = scmp.ne.s32.totalorder %s117, %s118
    %p129 = scmp.eq.s32.totalorder %s15, 0
    %p130 = por %p128, %p129
    %p131 = scmp.ne.s32.totalorder %s117, %s118
    %p132 = scmp.eq.s32.totalorder %s16, 3
    %p133 = por %p131, %p132
    %p135 = scmp.ne.s32.totalorder %s118, %s134
    %p136 = scmp.eq.s32.totalorder %s16, 0
    %p137 = por %p135, %p136
    %p138 = scmp.le.s32.totalorder 1, %s10
    %p139 = scmp.lt.s32.totalorder %s10, 5
    %p140 = pnand %p138, %p139
    %p141 = pneg %p140
    // Predicated region
    $region9: #{residual_attention_block.13} parent=5 // pred_check
      _
    $region10: #{residual_attention_block.13} parent=5 // pred_check_branch
      %143 = sbr.rel (%p140) target = $region12
    $region11: #{residual_attention_block.13} parent=5 // pred_region
      %s144 = ssub.s32 %s10, 1
      // Predicated region
      $region13: #{residual_attention_block.13} parent=11 // pred_check
        %p145 = pneg %p57
      $region14: #{residual_attention_block.13} parent=11 // pred_check_branch
        %147 = sbr.rel (%p145) target = $region16
      $region15: #{residual_attention_block.13} parent=11 // pred_region
        _
      $region16: #{residual_attention_block.13} parent=11 // pred_fallthru
        _
      // Predicated region
      $region17: #{residual_attention_block.13} parent=11 // pred_check
        %p148 = pneg %p78
      $region18: #{residual_attention_block.13} parent=11 // pred_check_branch
        %150 = sbr.rel (%p148) target = $region20
      $region19: #{residual_attention_block.13} parent=11 // pred_region
        _
      $region20: #{residual_attention_block.13} parent=11 // pred_fallthru
        _
    $region12: #{residual_attention_block.13} parent=5 // pred_fallthru
      _
    %p151 = scmp.lt.s32.totalorder %s10, 4
    // Predicated region
    $region21: #{residual_attention_block.13} parent=5 // pred_check
      %p152 = pneg %p151
    $region22: #{residual_attention_block.13} parent=5 // pred_check_branch
      %154 = sbr.rel (%p152) target = $region24
    $region23: #{residual_attention_block.13} parent=5 // pred_region
      // Predicated region
      $region25: #{residual_attention_block.13} parent=23 // pred_check
        %p155 = pneg %p30
      $region26: #{residual_attention_block.13} parent=23 // pred_check_branch
        %157 = sbr.rel (%p155) target = $region28
      $region27: #{residual_attention_block.13} parent=23 // pred_region
        %p158 = scmp.lt.s32.totalorder %s10, 3
        %s159 = scalar_select %p158, %s10, 3
        %s160 = smul.addr %s159, 2
        %s161 = smul.addr %s160, 8
        %s162 = scalar_lea.vmem %s0, %s161
      $region28: #{residual_attention_block.13} parent=23 // pred_fallthru
        _
      // Predicated region
      $region29: #{residual_attention_block.13} parent=23 // pred_check
        %p163 = pneg %p98
      $region30: #{residual_attention_block.13} parent=23 // pred_check_branch
        %165 = sbr.rel (%p163) target = $region32
      $region31: #{residual_attention_block.13} parent=23 // pred_region
        %p166 = scmp.lt.s32.totalorder %s10, 3
        %s167 = scalar_select %p166, %s10, 3
        %s168 = smul.addr %s167, 3
        %s169 = smul.addr %s168, 8
        %s170 = scalar_lea.vmem %s3, %s169
      $region32: #{residual_attention_block.13} parent=23 // pred_fallthru
        _
    $region24: #{residual_attention_block.13} parent=5 // pred_fallthru
      _
    %p171 = scmp.le.s32.totalorder 1, %s10
    %p172 = scmp.lt.s32.totalorder %s10, 5
    %p173 = pnand %p171, %p172
    %p174 = pneg %p173
    // Predicated region
    $region33: #{residual_attention_block.13} parent=5 // pred_check
      _
    $region34: #{residual_attention_block.13} parent=5 // pred_check_branch
      %176 = sbr.rel (%p173) target = $region36
    $region35: #{residual_attention_block.13} parent=5 // pred_region
      %s177 = ssub.s32 %s10, 1
      %p178 = scmp.lt.s32.totalorder %s15, 3
      %s179 = scalar_select %p178, %s15, 3
      %s180 = smul.addr %s179, 2
      %s181 = smul.addr %s180, 8
      %s182 = scalar_lea.vmem %s0, %s181
      %p183 = pneg %p36
      %p184 = pneg %p33
      %p185 = pneg %p57
      %p186 = pneg %p54
      %p187 = pneg %p78
      %p188 = pneg %p75
      %p189 = scmp.lt.s32.totalorder %s15, 3
      %s190 = scalar_select %p189, %s15, 3
      %s191 = smul.addr %s190, 3
      %s192 = smul.addr %s191, 8
      %s193 = scalar_lea.vmem %s3, %s192
      %p194 = pneg %p104
      %p195 = pneg %p101
      %p196 = pneg %p130
      %p197 = pneg %p127
      %p198 = scmp.lt.s32.totalorder %s15, 3
      %s199 = scalar_select %p198, %s15, 3
      %s200 = smul.addr %s199, 3
      %s201 = smul.addr %s200, 8
      %s202 = scalar_lea.vmem %s4, %s201
      %p203 = scmp.lt.s32.totalorder %s15, 3
      %s204 = scalar_select %p203, %s15, 3
      %s205 = smul.addr %s204, 2
      %s206 = smul.addr %s205, 8
      %s207 = scalar_lea.vmem %s0, %s206
      %p208 = scmp.lt.s32.totalorder %s15, 3
      %s209 = scalar_select %p208, %s15, 3
      %s210 = smul.addr %s209, 3
      %s211 = smul.addr %s210, 8
      %s212 = scalar_lea.vmem %s3, %s211
      %p213 = scmp.lt.s32.totalorder %s15, 3
      %s214 = scalar_select %p213, %s15, 3
      %s215 = smul.addr %s214, 3
      %s216 = smul.addr %s215, 8
      %s217 = scalar_lea.vmem %s4, %s216
      %v218 = vld [vmem:[%s207] sm:$0xff]
      %v219 = vld [vmem:[%s207 + $0x8] sm:$0xff]
      %v220 = vld [vmem:[%s1] sm:$0xff]
      %v221 = vld [vmem:[%s2] sm:$0x1]
      %v223 = vperm.slane %v221, 0
      %vm225 = vcmask 64512
      %v227 = vsel %vm225, %v218, 0
      %v230 = vsel %vm225, %v219, 0
      %232 = vmatpush.msra.mxu0 0.0
      %233 = vmatpush.msra.mxu0 0.0
      %234 = vmatpush.msra.mxu0 0.0
      %235 = vmatpush.msra.mxu0 0.0
      %236 = vmatpush.msra.mxu0 0.0
      %237 = vmatpush.msra.mxu0 0.0
      %238 = vmatpush.msra.mxu0 0.0
      %239 = vmatpush.msra.mxu0 0.0
      %240 = vmatpush.msra.mxu0 0.0
      %241 = vmatpush.msra.mxu0 0.0
      %242 = vmatpush.msra.mxu0 0.0
      %243 = vmatpush.msra.mxu0 0.0
      %244 = vmatpush.msra.mxu0 0.0
      %245 = vmatpush.msra.mxu0 0.0
      %246 = vmatpush.msra.mxu0 0.0
      %247 = vmatpush.msra.mxu0 %v220
      %248 = vmatmul.f32.gmra.mxu0 %v227
      %v249 = vpop.f32.mrf.mxu0
      %v250 = vadd.f32 %v223, %v249
      %251 = vmatmul.f32.gmra.mxu0 %v230
      %v252 = vpop.f32.mrf.mxu0
      %v253 = vadd.f32 %v223, %v252
      %254 = vdwg.mxu0
      %v255 = vld [vmem:[%s212] sm:$0x1]
      %vm256 = vcmask 253952
      %257 = vst.msk [vmem:[%s217] sm:$0x1] %vm256, %v255
      %v258 = vld [vmem:[%s212 + $0x1] sm:$0xff]
      %v259 = vld [vmem:[%s212 + $0x9] sm:$0xff]
      %v260 = vadd.f32 %v258, %v250
      %v261 = vadd.f32 %v259, %v253
      %vm262 = vcmask 261120
      %263 = vst.msk [vmem:[%s217 + $0x1] sm:$0xff] %vm262, %v260
      %264 = vst.msk [vmem:[%s217 + $0x9] sm:$0xff] %vm262, %v261
      %p265 = scmp.lt.s32.totalorder %s15, 3
      %s266 = scalar_select %p265, %s15, 3
      %s267 = smul.addr %s266, 3
      %s268 = smul.addr %s267, 8
      %s269 = scalar_lea.vmem %s4, %s268
      // Predicated region
      $region37: #{residual_attention_block.13} parent=35 // pred_check
        %p270 = pneg %p127
      $region38: #{residual_attention_block.13} parent=35 // pred_check_branch
        %272 = sbr.rel (%p270) target = $region40
      $region39: #{residual_attention_block.13} parent=35 // pred_region
        _
      $region40: #{residual_attention_block.13} parent=35 // pred_fallthru
        _
    $region36: #{residual_attention_block.13} parent=5 // pred_fallthru
      _
    %p273 = scmp.le.s32.totalorder 2, %s10
    // Predicated region
    $region41: #{residual_attention_block.13} parent=5 // pred_check
      %p274 = pneg %p273
    $region42: #{residual_attention_block.13} parent=5 // pred_check_branch
      %276 = sbr.rel (%p274) target = $region44
    $region43: #{residual_attention_block.13} parent=5 // pred_region
      %s277 = ssub.s32 %s10, 2
      // Predicated region
      $region45: #{residual_attention_block.13} parent=43 // pred_check
        %p278 = pneg %p133
      $region46: #{residual_attention_block.13} parent=43 // pred_check_branch
        %280 = sbr.rel (%p278) target = $region48
      $region47: #{residual_attention_block.13} parent=43 // pred_region
        %p281 = scmp.lt.s32.totalorder %s16, 3
        %s282 = scalar_select %p281, %s16, 3
        %s283 = smul.addr %s282, 3
        %s284 = smul.addr %s283, 8
        %s285 = scalar_lea.vmem %s4, %s284
      $region48: #{residual_attention_block.13} parent=43 // pred_fallthru
        _
    $region44: #{residual_attention_block.13} parent=5 // pred_fallthru
      _
  $region6: #{residual_attention_block.13} parent=0 // loop_footer
    %s14 = sadd.s32 1, %s10
  $region7: #{residual_attention_block.13} parent=0 // loop_footer_branch
    %9 = sbr.rel target = $region3
  $region8: #{residual_attention_block.13} parent=0 // loop_exit
    _

// kernel: residual_attention_block.14
$region0: #{residual_attention_block.14}
  #allocation0 [shape = 'u32[]', space=smem, size = 0x4, offset = 0x4, fixed_abs, tag = 'smem constant byte address 0x4 - core index']
  #allocation1 [shape = 'u32[72,128]{1,0:T(1,128)}', space=vmem, size = 0x9000, scoped, tag = 'internal scratch']
  %s0 = inlined_call_operand.vmem [shape: f32[68,32], index: 0, kind: input, shape index: {}]
  %s1 = inlined_call_operand.vmem [shape: f32[1,32], index: 1, kind: input, shape index: {}]
  %s2 = inlined_call_operand.vmem [shape: f32[1,32], index: 2, kind: input, shape index: {}]
  %s3 = inlined_call_operand.vmem [shape: f32[32,96], index: 3, kind: input, shape index: {}]
  %s4 = inlined_call_operand.vmem [shape: f32[1,96], index: 4, kind: input, shape index: {}]
  %s5 = inlined_call_operand.vmem [shape: f32[68,96], index: 5, kind: output, shape index: {}]
  %s6 = sld [smem:[#allocation0]]
  $region30: #{residual_attention_block.14} parent=0
    _
  %s8 = ssub.s32 1, %s6
  %s9 = scalar_select 0, %s8, %s6
  // Predicated region
  $region2: #{residual_attention_block.14} parent=0 // pred_check
    _
  $region3: #{residual_attention_block.14} parent=0 // pred_check_branch
    %11 = sbr.rel (0) target = $region5
  $region4: #{residual_attention_block.14} parent=0 // pred_region
    _
  $region5: #{residual_attention_block.14} parent=0 // pred_fallthru
    _
  // Predicated region
  $region6: #{residual_attention_block.14} parent=0 // pred_check
    _
  $region7: #{residual_attention_block.14} parent=0 // pred_check_branch
    %13 = sbr.rel (0) target = $region9
  $region8: #{residual_attention_block.14} parent=0 // pred_region
    _
  $region9: #{residual_attention_block.14} parent=0 // pred_fallthru
    _
  // Predicated region
  $region10: #{residual_attention_block.14} parent=0 // pred_check
    _
  $region11: #{residual_attention_block.14} parent=0 // pred_check_branch
    %15 = sbr.rel (0) target = $region13
  $region12: #{residual_attention_block.14} parent=0 // pred_region
    _
  $region13: #{residual_attention_block.14} parent=0 // pred_fallthru
    _
  // Predicated region
  $region14: #{residual_attention_block.14} parent=0 // pred_check
    _
  $region15: #{residual_attention_block.14} parent=0 // pred_check_branch
    %17 = sbr.rel (0) target = $region17
  $region16: #{residual_attention_block.14} parent=0 // pred_region
    _
  $region17: #{residual_attention_block.14} parent=0 // pred_fallthru
    _
  // Predicated region
  $region18: #{residual_attention_block.14} parent=0 // pred_check
    _
  $region19: #{residual_attention_block.14} parent=0 // pred_check_branch
    %19 = sbr.rel (0) target = $region21
  $region20: #{residual_attention_block.14} parent=0 // pred_region
    _
  $region21: #{residual_attention_block.14} parent=0 // pred_fallthru
    _
  %v20 = vld [vmem:[%s0] sm:$0xff]
  %v21 = vld [vmem:[%s0 + $0x8] sm:$0xff]
  %v22 = vld [vmem:[%s0 + $0x10] sm:$0xff]
  %v23 = vld [vmem:[%s0 + $0x18] sm:$0xff]
  %v24 = vld [vmem:[%s0 + $0x20] sm:$0xff]
  %v25 = vld [vmem:[%s0 + $0x28] sm:$0xff]
  %v26 = vld [vmem:[%s0 + $0x30] sm:$0xff]
  %v27 = vld [vmem:[%s0 + $0x38] sm:$0xff]
  %v28 = vld [vmem:[%s0 + $0x40] sm:$0xf]
  %vm29 = vcmask 261120
  %v30 = vsel %vm29, %v20, 0.0
  %31 = vadd.xlane.f32.xlu0 %v30
  %v32 = vpop.xlane.xlu0 %31
  %v33 = vsel %vm29, %v21, 0.0
  %34 = vadd.xlane.f32.xlu0 %v33
  %v35 = vpop.xlane.xlu0 %34
  %v36 = vsel %vm29, %v22, 0.0
  %37 = vadd.xlane.f32.xlu0 %v36
  %v38 = vpop.xlane.xlu0 %37
  %v39 = vsel %vm29, %v23, 0.0
  %40 = vadd.xlane.f32.xlu0 %v39
  %v41 = vpop.xlane.xlu0 %40
  %v42 = vsel %vm29, %v24, 0.0
  %43 = vadd.xlane.f32.xlu0 %v42
  %v44 = vpop.xlane.xlu0 %43
  %v45 = vsel %vm29, %v25, 0.0
  %46 = vadd.xlane.f32.xlu0 %v45
  %v47 = vpop.xlane.xlu0 %46
  %v48 = vsel %vm29, %v26, 0.0
  %49 = vadd.xlane.f32.xlu0 %v48
  %v50 = vpop.xlane.xlu0 %49
  %v51 = vsel %vm29, %v27, 0.0
  %52 = vadd.xlane.f32.xlu0 %v51
  %v53 = vpop.xlane.xlu0 %52
  %vm54 = vcmask 257024
  %v55 = vsel %vm54, %v28, 0.0
  %56 = vadd.xlane.f32.xlu0 %v55
  %v57 = vpop.xlane.xlu0 %56
  %v58 = vrcp.pop 32.0
  %v59 = vmul.f32 32.0, %v58
  %v60 = vsub.f32 1.0, %v59
  %v61 = vmul.f32 %v58, %v60
  %v62 = vadd.f32 %v58, %v61
  %vm63 = vweird.f32 %v58
  %v64 = vsel %vm63, %v58, %v62
  %v65 = vmul.f32 %v32, %v64
  %v66 = vmul.f32 %v35, %v64
  %v67 = vmul.f32 %v38, %v64
  %v68 = vmul.f32 %v41, %v64
  %v69 = vmul.f32 %v44, %v64
  %v70 = vmul.f32 %v47, %v64
  %v71 = vmul.f32 %v50, %v64
  %v72 = vmul.f32 %v53, %v64
  %v73 = vmul.f32 %v57, %v64
  %v74 = vsub.f32 %v20, %v65
  %v75 = vsub.f32 %v21, %v66
  %v76 = vsub.f32 %v22, %v67
  %v77 = vsub.f32 %v23, %v68
  %v78 = vsub.f32 %v24, %v69
  %v79 = vsub.f32 %v25, %v70
  %v80 = vsub.f32 %v26, %v71
  %v81 = vsub.f32 %v27, %v72
  %v82 = vsub.f32 %v28, %v73
  %v83 = vmul.f32 %v74, %v74
  %v84 = vmul.f32 %v75, %v75
  %v85 = vmul.f32 %v76, %v76
  %v86 = vmul.f32 %v77, %v77
  %v87 = vmul.f32 %v78, %v78
  %v88 = vmul.f32 %v79, %v79
  %v89 = vmul.f32 %v80, %v80
  %v90 = vmul.f32 %v81, %v81
  %v91 = vmul.f32 %v82, %v82
  %v92 = vsel %vm29, %v83, 0.0
  %93 = vadd.xlane.f32.xlu0 %v92
  %v94 = vpop.xlane.xlu0 %93
  %v95 = vsel %vm29, %v84, 0.0
  %96 = vadd.xlane.f32.xlu0 %v95
  %v97 = vpop.xlane.xlu0 %96
  %v98 = vsel %vm29, %v85, 0.0
  %99 = vadd.xlane.f32.xlu0 %v98
  %v100 = vpop.xlane.xlu0 %99
  %v101 = vsel %vm29, %v86, 0.0
  %102 = vadd.xlane.f32.xlu0 %v101
  %v103 = vpop.xlane.xlu0 %102
  %v104 = vsel %vm29, %v87, 0.0
  %105 = vadd.xlane.f32.xlu0 %v104
  %v106 = vpop.xlane.xlu0 %105
  %v107 = vsel %vm29, %v88, 0.0
  %108 = vadd.xlane.f32.xlu0 %v107
  %v109 = vpop.xlane.xlu0 %108
  %v110 = vsel %vm29, %v89, 0.0
  %111 = vadd.xlane.f32.xlu0 %v110
  %v112 = vpop.xlane.xlu0 %111
  %v113 = vsel %vm29, %v90, 0.0
  %114 = vadd.xlane.f32.xlu0 %v113
  %v115 = vpop.xlane.xlu0 %114
  %v116 = vsel %vm54, %v91, 0.0
  %117 = vadd.xlane.f32.xlu0 %v116
  %v118 = vpop.xlane.xlu0 %117
  %v119 = vmul.f32 %v94, %v64
  %v120 = vmul.f32 %v97, %v64
  %v121 = vmul.f32 %v100, %v64
  %v122 = vmul.f32 %v103, %v64
  %v123 = vmul.f32 %v106, %v64
  %v124 = vmul.f32 %v109, %v64
  %v125 = vmul.f32 %v112, %v64
  %v126 = vmul.f32 %v115, %v64
  %v127 = vmul.f32 %v118, %v64
  %v128 = vadd.f32 %v119, 1e-05
  %v129 = vadd.f32 %v120, 1e-05
  %v130 = vadd.f32 %v121, 1e-05
  %v131 = vadd.f32 %v122, 1e-05
  %v132 = vadd.f32 %v123, 1e-05
  %v133 = vadd.f32 %v124, 1e-05
  %v134 = vadd.f32 %v125, 1e-05
  %v135 = vadd.f32 %v126, 1e-05
  %v136 = vadd.f32 %v127, 1e-05
  %v137 = vrsqrt.pop %v128
  %v138 = vmul.f32 %v137, %v128
  %v139 = vmul.f32 %v138, %v137
  %v140 = vmul.f32 0.5, %v139
  %v141 = vsub.f32 1.5, %v140
  %v142 = vmul.f32 %v137, %v141
  %vm143 = vweird.f32 %v128
  %vm144 = vweird.f32 %v137
  %vm145 = vmor %vm143, %vm144
  %v146 = vsel %vm145, %v137, %v142
  %v147 = vrsqrt.pop %v129
  %v148 = vmul.f32 %v147, %v129
  %v149 = vmul.f32 %v148, %v147
  %v150 = vmul.f32 0.5, %v149
  %v151 = vsub.f32 1.5, %v150
  %v152 = vmul.f32 %v147, %v151
  %vm153 = vweird.f32 %v129
  %vm154 = vweird.f32 %v147
  %vm155 = vmor %vm153, %vm154
  %v156 = vsel %vm155, %v147, %v152
  %v157 = vrsqrt.pop %v130
  %v158 = vmul.f32 %v157, %v130
  %v159 = vmul.f32 %v158, %v157
  %v160 = vmul.f32 0.5, %v159
  %v161 = vsub.f32 1.5, %v160
  %v162 = vmul.f32 %v157, %v161
  %vm163 = vweird.f32 %v130
  %vm164 = vweird.f32 %v157
  %vm165 = vmor %vm163, %vm164
  %v166 = vsel %vm165, %v157, %v162
  %v167 = vrsqrt.pop %v131
  %v168 = vmul.f32 %v167, %v131
  %v169 = vmul.f32 %v168, %v167
  %v170 = vmul.f32 0.5, %v169
  %v171 = vsub.f32 1.5, %v170
  %v172 = vmul.f32 %v167, %v171
  %vm173 = vweird.f32 %v131
  %vm174 = vweird.f32 %v167
  %vm175 = vmor %vm173, %vm174
  %v176 = vsel %vm175, %v167, %v172
  %v177 = vrsqrt.pop %v132
  %v178 = vmul.f32 %v177, %v132
  %v179 = vmul.f32 %v178, %v177
  %v180 = vmul.f32 0.5, %v179
  %v181 = vsub.f32 1.5, %v180
  %v182 = vmul.f32 %v177, %v181
  %vm183 = vweird.f32 %v132
  %vm184 = vweird.f32 %v177
  %vm185 = vmor %vm183, %vm184
  %v186 = vsel %vm185, %v177, %v182
  %v187 = vrsqrt.pop %v133
  %v188 = vmul.f32 %v187, %v133
  %v189 = vmul.f32 %v188, %v187
  %v190 = vmul.f32 0.5, %v189
  %v191 = vsub.f32 1.5, %v190
  %v192 = vmul.f32 %v187, %v191
  %vm193 = vweird.f32 %v133
  %vm194 = vweird.f32 %v187
  %vm195 = vmor %vm193, %vm194
  %v196 = vsel %vm195, %v187, %v192
  %v197 = vrsqrt.pop %v134
  %v198 = vmul.f32 %v197, %v134
  %v199 = vmul.f32 %v198, %v197
  %v200 = vmul.f32 0.5, %v199
  %v201 = vsub.f32 1.5, %v200
  %v202 = vmul.f32 %v197, %v201
  %vm203 = vweird.f32 %v134
  %vm204 = vweird.f32 %v197
  %vm205 = vmor %vm203, %vm204
  %v206 = vsel %vm205, %v197, %v202
  %v207 = vrsqrt.pop %v135
  %v208 = vmul.f32 %v207, %v135
  %v209 = vmul.f32 %v208, %v207
  %v210 = vmul.f32 0.5, %v209
  %v211 = vsub.f32 1.5, %v210
  %v212 = vmul.f32 %v207, %v211
  %vm213 = vweird.f32 %v135
  %vm214 = vweird.f32 %v207
  %vm215 = vmor %vm213, %vm214
  %v216 = vsel %vm215, %v207, %v212
  %v217 = vrsqrt.pop %v136
  %v218 = vmul.f32 %v217, %v136
  %v219 = vmul.f32 %v218, %v217
  %v220 = vmul.f32 0.5, %v219
  %v221 = vsub.f32 1.5, %v220
  %v222 = vmul.f32 %v217, %v221
  %vm223 = vweird.f32 %v136
  %vm224 = vweird.f32 %v217
  %vm225 = vmor %vm223, %vm224
  %v226 = vsel %vm225, %v217, %v222
  %v227 = vmul.f32 %v74, %v146
  %v228 = vmul.f32 %v75, %v156
  %v229 = vmul.f32 %v76, %v166
  %v230 = vmul.f32 %v77, %v176
  %v231 = vmul.f32 %v78, %v186
  %v232 = vmul.f32 %v79, %v196
  %v233 = vmul.f32 %v80, %v206
  %v234 = vmul.f32 %v81, %v216
  %v235 = vmul.f32 %v82, %v226
  %v236 = vld [vmem:[%s1] sm:$0x1]
  %v238 = vperm.slane %v236, 0
  %v240 = vmul.f32 %v227, %v238
  %v241 = vmul.f32 %v228, %v238
  %v242 = vmul.f32 %v229, %v238
  %v243 = vmul.f32 %v230, %v238
  %v244 = vmul.f32 %v231, %v238
  %v245 = vmul.f32 %v232, %v238
  %v246 = vmul.f32 %v233, %v238
  %v247 = vmul.f32 %v234, %v238
  %v248 = vmul.f32 %v235, %v238
  %v249 = vld [vmem:[%s2] sm:$0x1]
  %v251 = vperm.slane %v249, 0
  %v253 = vadd.f32 %v240, %v251
  %v254 = vadd.f32 %v241, %v251
  %v255 = vadd.f32 %v242, %v251
  %v256 = vadd.f32 %v243, %v251
  %v257 = vadd.f32 %v244, %v251
  %v258 = vadd.f32 %v245, %v251
  %v259 = vadd.f32 %v246, %v251
  %v260 = vadd.f32 %v247, %v251
  %v261 = vadd.f32 %v248, %v251
  %v262 = vld [vmem:[%s3] sm:$0xff]
  %v263 = vld [vmem:[%s3 + $0x8] sm:$0xff]
  %v264 = vld [vmem:[%s3 + $0x10] sm:$0xff]
  %v265 = vld [vmem:[%s3 + $0x18] sm:$0xff]
  %v266 = vld [vmem:[%s4] sm:$0x1]
  %v268 = vperm.slane %v266, 0
  %v271 = vsel %vm29, %v253, 0
  %v274 = vsel %vm29, %v254, 0
  %v277 = vsel %vm29, %v255, 0
  %v280 = vsel %vm29, %v256, 0
  %v283 = vsel %vm29, %v257, 0
  %v286 = vsel %vm29, %v258, 0
  %v289 = vsel %vm29, %v259, 0
  %v292 = vsel %vm29, %v260, 0
  %v295 = vsel %vm29, %v261, 0
  %297 = vmatpush.msra.mxu0 0.0
  %298 = vmatpush.msra.mxu0 0.0
  %299 = vmatpush.msra.mxu0 0.0
  %300 = vmatpush.msra.mxu0 0.0
  %301 = vmatpush.msra.mxu0 0.0
  %302 = vmatpush.msra.mxu0 0.0
  %303 = vmatpush.msra.mxu0 0.0
  %304 = vmatpush.msra.mxu0 0.0
  %305 = vmatpush.msra.mxu0 0.0
  %306 = vmatpush.msra.mxu0 0.0
  %307 = vmatpush.msra.mxu0 0.0
  %308 = vmatpush.msra.mxu0 0.0
  %309 = vmatpush.msra.mxu0 %v265
  %310 = vmatpush.msra.mxu0 %v264
  %311 = vmatpush.msra.mxu0 %v263
  %312 = vmatpush.msra.mxu0 %v262
  %313 = vmatmul.f32.gmra.mxu0 %v271
  %v314 = vpop.f32.mrf.mxu0
  %v315 = vadd.f32 %v268, %v314
  %316 = vmatmul.f32.gmra.mxu0 %v274
  %v317 = vpop.f32.mrf.mxu0
  %v318 = vadd.f32 %v268, %v317
  %319 = vmatmul.f32.gmra.mxu0 %v277
  %v320 = vpop.f32.mrf.mxu0
  %v321 = vadd.f32 %v268, %v320
  %322 = vmatmul.f32.gmra.mxu0 %v280
  %v323 = vpop.f32.mrf.mxu0
  %v324 = vadd.f32 %v268, %v323
  %325 = vmatmul.f32.gmra.mxu0 %v283
  %v326 = vpop.f32.mrf.mxu0
  %v327 = vadd.f32 %v268, %v326
  %328 = vmatmul.f32.gmra.mxu0 %v286
  %v329 = vpop.f32.mrf.mxu0
  %v330 = vadd.f32 %v268, %v329
  %331 = vmatmul.f32.gmra.mxu0 %v289
  %v332 = vpop.f32.mrf.mxu0
  %v333 = vadd.f32 %v268, %v332
  %334 = vmatmul.f32.gmra.mxu0 %v292
  %v335 = vpop.f32.mrf.mxu0
  %v336 = vadd.f32 %v268, %v335
  %337 = vmatmul.f32.gmra.mxu0 %v295
  %v338 = vpop.f32.mrf.mxu0
  %v339 = vadd.f32 %v268, %v338
  %340 = vdwg.mxu0
  %vm341 = vcmask 785408
  %342 = vst.msk [vmem:[%s5] sm:$0xff] %vm341, %v315
  %343 = vst.msk [vmem:[%s5 + $0x8] sm:$0xff] %vm341, %v318
  %344 = vst.msk [vmem:[%s5 + $0x10] sm:$0xff] %vm341, %v321
  %345 = vst.msk [vmem:[%s5 + $0x18] sm:$0xff] %vm341, %v324
  %346 = vst.msk [vmem:[%s5 + $0x20] sm:$0xff] %vm341, %v327
  %347 = vst.msk [vmem:[%s5 + $0x28] sm:$0xff] %vm341, %v330
  %348 = vst.msk [vmem:[%s5 + $0x30] sm:$0xff] %vm341, %v333
  %349 = vst.msk [vmem:[%s5 + $0x38] sm:$0xff] %vm341, %v336
  %vm350 = vcmask 781312
  %351 = vst.msk [vmem:[%s5 + $0x40] sm:$0xf] %vm350, %v339
  // Predicated region
  $region22: #{residual_attention_block.14} parent=0 // pred_check
    _
  $region23: #{residual_attention_block.14} parent=0 // pred_check_branch
    %353 = sbr.rel (0) target = $region25
  $region24: #{residual_attention_block.14} parent=0 // pred_region
    _
  $region25: #{residual_attention_block.14} parent=0 // pred_fallthru
    _
  // Predicated region
  $region26: #{residual_attention_block.14} parent=0 // pred_check
    _
  $region27: #{residual_attention_block.14} parent=0 // pred_check_branch
    %355 = sbr.rel (0) target = $region29
  $region28: #{residual_attention_block.14} parent=0 // pred_region
    _
  $region29: #{residual_attention_block.14} parent=0 // pred_fallthru
    _

// kernel: residual_attention_block.15
$region0: #{residual_attention_block.15}
  #allocation0 [shape = 'u32[]', space=smem, size = 0x4, offset = 0x4, fixed_abs, tag = 'smem constant byte address 0x4 - core index']
  #allocation1 [shape = 'u32[72,128]{1,0:T(1,128)}', space=vmem, size = 0x9000, scoped, tag = 'internal scratch']
  %s0 = inlined_call_operand.vmem [shape: f32[4,17,96], index: 0, kind: input, shape index: {}]
  %s1 = inlined_call_operand.vmem [shape: f32[4,17,32], index: 1, kind: output, shape index: {}]
  %s2 = sld [smem:[#allocation0]]
  $region37: #{residual_attention_block.15} parent=0
    _
  %s4 = ssub.s32 1, %s2
  %s5 = scalar_select 0, %s4, %s2
  loop: start=0, step=1, limit=6
  $region2: #{residual_attention_block.15} parent=0 // loop_pre_header
    _
  $region3: #{residual_attention_block.15} parent=0 // loop_header
    %s7 = sphi 0, %s11
    %p8 = scmp.ge.s32.totalorder %s7, 6
    %s17 = sphi 0, %s19
    %s20 = sphi 0, %s17
    %s21 = sphi 0, %s20
    %s37 = sphi 0, %s21
    %s43 = sphi 0, %s45
    %s46 = sphi 0, %s43
    %s47 = sphi 0, %s46
    %s63 = sphi 0, %s47
  $region4: #{residual_attention_block.15} parent=0 // loop_header_branch
    %10 = sbr.rel (%p8) target = $region8
  $region5: #{residual_attention_block.15} parent=0 // loop_body
    %s12 = ssub.s32 %s7, 1
    %s13 = ssub.s32 %s7, 2
    %s14 = sadd.s32 %s7, 1
    %s15 = ssub.s32 %s7, %s14
    %p16 = scmp.eq.s32.totalorder %s15, 0
    %s18 = sadd.s32 %s17, 1
    %s19 = scalar_select %p16, %s17, %s18
    %p22 = pneg %p16
    %p23 = scmp.eq.s32.totalorder %s7, 3
    %p24 = por %p22, %p23
    %p25 = scmp.ne.s32.totalorder %s17, %s20
    %p26 = scmp.eq.s32.totalorder %s7, 0
    %p27 = por %p25, %p26
    %p28 = scmp.ne.s32.totalorder %s17, %s20
    %p29 = scmp.eq.s32.totalorder %s12, 3
    %p30 = por %p28, %p29
    %p31 = scmp.ne.s32.totalorder %s20, %s21
    %p32 = scmp.eq.s32.totalorder %s12, 0
    %p33 = por %p31, %p32
    %p34 = scmp.ne.s32.totalorder %s20, %s21
    %p35 = scmp.eq.s32.totalorder %s13, 3
    %p36 = por %p34, %p35
    %p38 = scmp.ne.s32.totalorder %s21, %s37
    %p39 = scmp.eq.s32.totalorder %s13, 0
    %p40 = por %p38, %p39
    %s41 = ssub.s32 %s7, %s14
    %p42 = scmp.eq.s32.totalorder %s41, 0
    %s44 = sadd.s32 %s43, 1
    %s45 = scalar_select %p42, %s43, %s44
    %p48 = pneg %p42
    %p49 = scmp.eq.s32.totalorder %s7, 3
    %p50 = por %p48, %p49
    %p51 = scmp.ne.s32.totalorder %s43, %s46
    %p52 = scmp.eq.s32.totalorder %s7, 0
    %p53 = por %p51, %p52
    %p54 = scmp.ne.s32.totalorder %s43, %s46
    %p55 = scmp.eq.s32.totalorder %s12, 3
    %p56 = por %p54, %p55
    %p57 = scmp.ne.s32.totalorder %s46, %s47
    %p58 = scmp.eq.s32.totalorder %s12, 0
    %p59 = por %p57, %p58
    %p60 = scmp.ne.s32.totalorder %s46, %s47
    %p61 = scmp.eq.s32.totalorder %s13, 3
    %p62 = por %p60, %p61
    %p64 = scmp.ne.s32.totalorder %s47, %s63
    %p65 = scmp.eq.s32.totalorder %s13, 0
    %p66 = por %p64, %p65
    %p67 = scmp.le.s32.totalorder 1, %s7
    %p68 = scmp.lt.s32.totalorder %s7, 5
    %p69 = pnand %p67, %p68
    %p70 = pneg %p69
    // Predicated region
    $region9: #{residual_attention_block.15} parent=5 // pred_check
      _
    $region10: #{residual_attention_block.15} parent=5 // pred_check_branch
      %72 = sbr.rel (%p69) target = $region12
    $region11: #{residual_attention_block.15} parent=5 // pred_region
      %s73 = ssub.s32 %s7, 1
    $region12: #{residual_attention_block.15} parent=5 // pred_fallthru
      _
    %p74 = scmp.lt.s32.totalorder %s7, 4
    // Predicated region
    $region13: #{residual_attention_block.15} parent=5 // pred_check
      %p75 = pneg %p74
    $region14: #{residual_attention_block.15} parent=5 // pred_check_branch
      %77 = sbr.rel (%p75) target = $region16
    $region15: #{residual_attention_block.15} parent=5 // pred_region
      // Predicated region
      $region17: #{residual_attention_block.15} parent=15 // pred_check
        %p78 = pneg %p27
      $region18: #{residual_attention_block.15} parent=15 // pred_check_branch
        %80 = sbr.rel (%p78) target = $region20
      $region19: #{residual_attention_block.15} parent=15 // pred_region
        %p81 = scmp.lt.s32.totalorder %s7, 3
        %s82 = scalar_select %p81, %s7, 3
        %s83 = smul.addr %s82, 3
        %s84 = smul.addr %s83, 8
        %s85 = scalar_lea.vmem %s0, %s84
      $region20: #{residual_attention_block.15} parent=15 // pred_fallthru
        _
    $region16: #{residual_attention_block.15} parent=5 // pred_fallthru
      _
    %p86 = scmp.le.s32.totalorder 1, %s7
    %p87 = scmp.lt.s32.totalorder %s7, 5
    %p88 = pnand %p86, %p87
    %p89 = pneg %p88
    // Predicated region
    $region21: #{residual_attention_block.15} parent=5 // pred_check
      _
    $region22: #{residual_attention_block.15} parent=5 // pred_check_branch
      %91 = sbr.rel (%p88) target = $region24
    $region23: #{residual_attention_block.15} parent=5 // pred_region
      %s92 = ssub.s32 %s7, 1
      %p93 = scmp.lt.s32.totalorder %s12, 3
      %s94 = scalar_select %p93, %s12, 3
      %s95 = smul.addr %s94, 3
      %s96 = smul.addr %s95, 8
      %s97 = scalar_lea.vmem %s0, %s96
      %p98 = pneg %p33
      %p99 = pneg %p30
      %p100 = pneg %p59
      %p101 = pneg %p56
      %p102 = scmp.lt.s32.totalorder %s12, 3
      %s103 = scalar_select %p102, %s12, 3
      %s104 = smul.addr %s103, 3
      %s105 = smul.addr %s104, 8
      %s106 = scalar_lea.vmem %s1, %s105
      %p107 = scmp.lt.s32.totalorder %s12, 3
      %s108 = scalar_select %p107, %s12, 3
      %s109 = smul.addr %s108, 3
      %s110 = smul.addr %s109, 8
      %s111 = scalar_lea.vmem %s0, %s110
      %p112 = scmp.lt.s32.totalorder %s12, 3
      %s113 = scalar_select %p112, %s12, 3
      %s114 = smul.addr %s113, 3
      %s115 = smul.addr %s114, 8
      %s116 = scalar_lea.vmem %s1, %s115
      %v117 = vld [vmem:[%s111] sm:$0xff]
      %v118 = vld [vmem:[%s111 + $0x8] sm:$0xff]
      %v119 = vld [vmem:[%s111 + $0x10] sm:$0x1]
      %123 = vrot.lane.b32.xlu0 %v117, 96
      %v124 = vpop.permute.xlu0 %123
      %125 = vrot.lane.b32.xlu0 %v118, 96
      %v126 = vpop.permute.xlu0 %125
      %127 = vrot.lane.b32.xlu0 %v119, 96
      %v128 = vpop.permute.xlu0 %127
      %vm129 = vcmask 64512
      %v130 = vsel %vm129, %v117, 0
      %v132 = vsel %vm129, %v118, 0
      %v134 = vsel %vm129, %v119, 0
      %v136 = vsel %vm129, %v124, 0
      %v138 = vsel %vm129, %v126, 0
      %v140 = vsel %vm129, %v128, 0
      %142 = vmatpush.xpose.msra.mxu0 0.0
      %143 = vmatpush.xpose.msra.mxu0 0.0
      %144 = vmatpush.xpose.msra.mxu0 0.0
      %145 = vmatpush.xpose.msra.mxu0 0.0
      %146 = vmatpush.xpose.msra.mxu0 0.0
      %147 = vmatpush.xpose.msra.mxu0 0.0
      %148 = vmatpush.xpose.msra.mxu0 0.0
      %149 = vmatpush.xpose.msra.mxu0 0.0
      %150 = vmatpush.xpose.msra.mxu0 0.0
      %151 = vmatpush.xpose.msra.mxu0 0.0
      %152 = vmatpush.xpose.msra.mxu0 0.0
      %153 = vmatpush.xpose.msra.mxu0 0.0
      %154 = vmatpush.xpose.msra.mxu0 0.0
      %155 = vmatpush.xpose.msra.mxu0 %v140
      %156 = vmatpush.xpose.msra.mxu0 %v138
      %157 = vmatpush.xpose.msra.mxu0 %v136
      %158 = vmatmul.f32.gmra.mxu0 %v130
      %v159 = vpop.f32.mrf.mxu0
      %v160 = vadd.f32 0.0, %v159
      %161 = vmatmul.f32.gmra.mxu0 %v132
      %v162 = vpop.f32.mrf.mxu0
      %v163 = vadd.f32 0.0, %v162
      %164 = vmatmul.f32.gmra.mxu0 %v134
      %v165 = vpop.f32.mrf.mxu0
      %v166 = vadd.f32 0.0, %v165
      %167 = vdwg.mxu0
      %v168 = vmul.f32 %v160, 0.35355338
      %v169 = vmul.f32 %v163, 0.35355338
      %v170 = vmul.f32 %v166, 0.35355338
      %vm171 = vcmask 138240
      %v172 = vsel %vm171, %v168, -inf
      %173 = vmax.xlane.f32.xlu0 %v172
      %v174 = vpop.xlane.xlu0 %173
      %v175 = vsel %vm171, %v169, -inf
      %176 = vmax.xlane.f32.xlu0 %v175
      %v177 = vpop.xlane.xlu0 %176
      %vm178 = vcmask 131072
      %v179 = vsel %vm178, %v170, -inf
      %180 = vmax.xlane.f32.xlu0 %v179
      %v181 = vpop.xlane.xlu0 %180
      %v182 = vsub.f32 %v168, %v174
      %v183 = vsub.f32 %v169, %v177
      %v184 = vsub.f32 %v170, %v181
      %v185 = vmul.f32 %v182, 1.442695
      %v186 = vpow.pop %v185
      %v187 = vmul.f32 %v183, 1.442695
      %v188 = vpow.pop %v187
      %v189 = vmul.f32 %v184, 1.442695
      %v190 = vpow.pop %v189
      %v191 = vsel %vm171, %v186, 0.0
      %192 = vadd.xlane.f32.xlu0 %v191
      %v193 = vpop.xlane.xlu0 %192
      %v194 = vsel %vm171, %v188, 0.0
      %195 = vadd.xlane.f32.xlu0 %v194
      %v196 = vpop.xlane.xlu0 %195
      %v197 = vsel %vm178, %v190, 0.0
      %198 = vadd.xlane.f32.xlu0 %v197
      %v199 = vpop.xlane.xlu0 %198
      %200 = vrot.lane.b32.xlu0 %v117, 64
      %v201 = vpop.permute.xlu0 %200
      %202 = vrot.lane.b32.xlu0 %v118, 64
      %v203 = vpop.permute.xlu0 %202
      %204 = vrot.lane.b32.xlu0 %v119, 64
      %v205 = vpop.permute.xlu0 %204
      %v209 = vsel %vm171, %v186, 0
      %v212 = vsel %vm171, %v188, 0
      %v215 = vsel %vm171, %v190, 0
      %vm217 = vcmask 1040384
      %v218 = vsel %vm217, %v205, 0
      %220 = vmatpush.msra.mxu0 0.0
      %221 = vmatpush.msra.mxu0 0.0
      %222 = vmatpush.msra.mxu0 0.0
      %223 = vmatpush.msra.mxu0 0.0
      %224 = vmatpush.msra.mxu0 0.0
      %225 = vmatpush.msra.mxu0 0.0
      %226 = vmatpush.msra.mxu0 0.0
      %227 = vmatpush.msra.mxu0 0.0
      %228 = vmatpush.msra.mxu0 0.0
      %229 = vmatpush.msra.mxu0 0.0
      %230 = vmatpush.msra.mxu0 0.0
      %231 = vmatpush.msra.mxu0 0.0
      %232 = vmatpush.msra.mxu0 0.0
      %233 = vmatpush.msra.mxu0 %v218
      %234 = vmatpush.msra.mxu0 %v203
      %235 = vmatpush.msra.mxu0 %v201
      %236 = vmatmul.f32.gmra.mxu0 %v209
      %v237 = vpop.f32.mrf.mxu0
      %v238 = vadd.f32 0.0, %v237
      %239 = vmatmul.f32.gmra.mxu0 %v212
      %v240 = vpop.f32.mrf.mxu0
      %v241 = vadd.f32 0.0, %v240
      %242 = vmatmul.f32.gmra.mxu0 %v215
      %v243 = vpop.f32.mrf.mxu0
      %v244 = vadd.f32 0.0, %v243
      %245 = vdwg.mxu0
      %v246 = vrcp.pop %v193
      %v247 = vrcp.pop %v196
      %v248 = vrcp.pop %v199
      %v249 = vmul.f32 %v238, %v246
      %v250 = vmul.f32 %v241, %v247
      %v251 = vmul.f32 %v244, %v248
      %252 = vst.msk [vmem:[%s116] sm:$0xff] %vm129, %v249
      %253 = vst.msk [vmem:[%s116 + $0x8] sm:$0xff] %vm129, %v250
      %vm254 = vcmask 57344
      %255 = vst.msk [vmem:[%s116 + $0x10] sm:$0x1] %vm254, %v251
      %256 = vrot.lane.b32.xlu0 %v117, 120
      %v257 = vpop.permute.xlu0 %256
      %258 = vrot.lane.b32.xlu0 %v118, 120
      %v259 = vpop.permute.xlu0 %258
      %260 = vrot.lane.b32.xlu0 %v119, 120
      %v261 = vpop.permute.xlu0 %260
      %262 = vrot.lane.b32.xlu0 %v117, 88
      %v263 = vpop.permute.xlu0 %262
      %264 = vrot.lane.b32.xlu0 %v118, 88
      %v265 = vpop.permute.xlu0 %264
      %266 = vrot.lane.b32.xlu0 %v119, 88
      %v267 = vpop.permute.xlu0 %266
      %v268 = vsel %vm129, %v257, 0
      %v270 = vsel %vm129, %v259, 0
      %v272 = vsel %vm129, %v261, 0
      %v274 = vsel %vm129, %v263, 0
      %v276 = vsel %vm129, %v265, 0
      %v278 = vsel %vm129, %v267, 0
      %280 = vmatpush.xpose.msra.mxu0 0.0
      %281 = vmatpush.xpose.msra.mxu0 0.0
      %282 = vmatpush.xpose.msra.mxu0 0.0
      %283 = vmatpush.xpose.msra.mxu0 0.0
      %284 = vmatpush.xpose.msra.mxu0 0.0
      %285 = vmatpush.xpose.msra.mxu0 0.0
      %286 = vmatpush.xpose.msra.mxu0 0.0
      %287 = vmatpush.xpose.msra.mxu0 0.0
      %288 = vmatpush.xpose.msra.mxu0 0.0
      %289 = vmatpush.xpose.msra.mxu0 0.0
      %290 = vmatpush.xpose.msra.mxu0 0.0
      %291 = vmatpush.xpose.msra.mxu0 0.0
      %292 = vmatpush.xpose.msra.mxu0 0.0
      %293 = vmatpush.xpose.msra.mxu0 %v278
      %294 = vmatpush.xpose.msra.mxu0 %v276
      %295 = vmatpush.xpose.msra.mxu0 %v274
      %296 = vmatmul.f32.gmra.mxu0 %v268
      %v297 = vpop.f32.mrf.mxu0
      %v298 = vadd.f32 0.0, %v297
      %299 = vmatmul.f32.gmra.mxu0 %v270
      %v300 = vpop.f32.mrf.mxu0
      %v301 = vadd.f32 0.0, %v300
      %302 = vmatmul.f32.gmra.mxu0 %v272
      %v303 = vpop.f32.mrf.mxu0
      %v304 = vadd.f32 0.0, %v303
      %305 = vdwg.mxu0
      %v306 = vmul.f32 %v298, 0.35355338
      %v307 = vmul.f32 %v301, 0.35355338
      %v308 = vmul.f32 %v304, 0.35355338
      %v309 = vsel %vm171, %v306, -inf
      %310 = vmax.xlane.f32.xlu0 %v309
      %v311 = vpop.xlane.xlu0 %310
      %v312 = vsel %vm171, %v307, -inf
      %313 = vmax.xlane.f32.xlu0 %v312
      %v314 = vpop.xlane.xlu0 %313
      %v315 = vsel %vm178, %v308, -inf
      %316 = vmax.xlane.f32.xlu0 %v315
      %v317 = vpop.xlane.xlu0 %316
      %v318 = vsub.f32 %v306, %v311
      %v319 = vsub.f32 %v307, %v314
      %v320 = vsub.f32 %v308, %v317
      %v321 = vmul.f32 %v318, 1.442695
      %v322 = vpow.pop %v321
      %v323 = vmul.f32 %v319, 1.442695
      %v324 = vpow.pop %v323
      %v325 = vmul.f32 %v320, 1.442695
      %v326 = vpow.pop %v325
      %v327 = vsel %vm171, %v322, 0.0
      %328 = vadd.xlane.f32.xlu0 %v327
      %v329 = vpop.xlane.xlu0 %328
      %v330 = vsel %vm171, %v324, 0.0
      %331 = vadd.xlane.f32.xlu0 %v330
      %v332 = vpop.xlane.xlu0 %331
      %v333 = vsel %vm178, %v326, 0.0
      %334 = vadd.xlane.f32.xlu0 %v333
      %v335 = vpop.xlane.xlu0 %334
      %336 = vrot.lane.b32.xlu0 %v117, 56
      %v337 = vpop.permute.xlu0 %336
      %338 = vrot.lane.b32.xlu0 %v118, 56
      %v339 = vpop.permute.xlu0 %338
      %340 = vrot.lane.b32.xlu0 %v119, 56
      %v341 = vpop.permute.xlu0 %340
      %v345 = vsel %vm171, %v322, 0
      %v348 = vsel %vm171, %v324, 0
      %v351 = vsel %vm171, %v326, 0
      %v353 = vsel %vm217, %v341, 0
      %355 = vmatpush.msra.mxu0 0.0
      %356 = vmatpush.msra.mxu0 0.0
      %357 = vmatpush.msra.mxu0 0.0
      %358 = vmatpush.msra.mxu0 0.0
      %359 = vmatpush.msra.mxu0 0.0
      %360 = vmatpush.msra.mxu0 0.0
      %361 = vmatpush.msra.mxu0 0.0
      %362 = vmatpush.msra.mxu0 0.0
      %363 = vmatpush.msra.mxu0 0.0
      %364 = vmatpush.msra.mxu0 0.0
      %365 = vmatpush.msra.mxu0 0.0
      %366 = vmatpush.msra.mxu0 0.0
      %367 = vmatpush.msra.mxu0 0.0
      %368 = vmatpush.msra.mxu0 %v353
      %369 = vmatpush.msra.mxu0 %v339
      %370 = vmatpush.msra.mxu0 %v337
      %371 = vmatmul.f32.gmra.mxu0 %v345
      %v372 = vpop.f32.mrf.mxu0
      %v373 = vadd.f32 0.0, %v372
      %374 = vmatmul.f32.gmra.mxu0 %v348
      %v375 = vpop.f32.mrf.mxu0
      %v376 = vadd.f32 0.0, %v375
      %377 = vmatmul.f32.gmra.mxu0 %v351
      %v378 = vpop.f32.mrf.mxu0
      %v379 = vadd.f32 0.0, %v378
      %380 = vdwg.mxu0
      %v381 = vrcp.pop %v329
      %v382 = vrcp.pop %v332
      %v383 = vrcp.pop %v335
      %v384 = vmul.f32 %v373, %v381
      %v385 = vmul.f32 %v376, %v382
      %v386 = vmul.f32 %v379, %v383
      %390 = vrot.lane.b32.xlu0 %v384, 8
      %v391 = vpop.permute.xlu0 %390
      %392 = vrot.lane.b32.xlu0 %v385, 8
      %v393 = vpop.permute.xlu0 %392
      %394 = vrot.lane.b32.xlu0 %v386, 8
      %v395 = vpop.permute.xlu0 %394
      %vm399 = vcmask 130112
      %400 = vst.msk [vmem:[%s116] sm:$0xff] %vm399, %v391
      %401 = vst.msk [vmem:[%s116 + $0x8] sm:$0xff] %vm399, %v393
      %vm402 = vcmask 122944
      %403 = vst.msk [vmem:[%s116 + $0x10] sm:$0x1] %vm402, %v395
      %404 = vrot.lane.b32.xlu0 %v117, 112
      %v405 = vpop.permute.xlu0 %404
      %406 = vrot.lane.b32.xlu0 %v118, 112
      %v407 = vpop.permute.xlu0 %406
      %408 = vrot.lane.b32.xlu0 %v119, 112
      %v409 = vpop.permute.xlu0 %408
      %410 = vrot.lane.b32.xlu0 %v117, 80
      %v411 = vpop.permute.xlu0 %410
      %412 = vrot.lane.b32.xlu0 %v118, 80
      %v413 = vpop.permute.xlu0 %412
      %414 = vrot.lane.b32.xlu0 %v119, 80
      %v415 = vpop.permute.xlu0 %414
      %v416 = vsel %vm129, %v405, 0
      %v418 = vsel %vm129, %v407, 0
      %v420 = vsel %vm129, %v409, 0
      %v422 = vsel %vm129, %v411, 0
      %v424 = vsel %vm129, %v413, 0
      %v426 = vsel %vm129, %v415, 0
      %428 = vmatpush.xpose.msra.mxu0 0.0
      %429 = vmatpush.xpose.msra.mxu0 0.0
      %430 = vmatpush.xpose.msra.mxu0 0.0
      %431 = vmatpush.xpose.msra.mxu0 0.0
      %432 = vmatpush.xpose.msra.mxu0 0.0
      %433 = vmatpush.xpose.msra.mxu0 0.0
      %434 = vmatpush.xpose.msra.mxu0 0.0
      %435 = vmatpush.xpose.msra.mxu0 0.0
      %436 = vmatpush.xpose.msra.mxu0 0.0
      %437 = vmatpush.xpose.msra.mxu0 0.0
      %438 = vmatpush.xpose.msra.mxu0 0.0
      %439 = vmatpush.xpose.msra.mxu0 0.0
      %440 = vmatpush.xpose.msra.mxu0 0.0
      %441 = vmatpush.xpose.msra.mxu0 %v426
      %442 = vmatpush.xpose.msra.mxu0 %v424
      %443 = vmatpush.xpose.msra.mxu0 %v422
      %444 = vmatmul.f32.gmra.mxu0 %v416
      %v445 = vpop.f32.mrf.mxu0
      %v446 = vadd.f32 0.0, %v445
      %447 = vmatmul.f32.gmra.mxu0 %v418
      %v448 = vpop.f32.mrf.mxu0
      %v449 = vadd.f32 0.0, %v448
      %450 = vmatmul.f32.gmra.mxu0 %v420
      %v451 = vpop.f32.mrf.mxu0
      %v452 = vadd.f32 0.0, %v451
      %453 = vdwg.mxu0
      %v454 = vmul.f32 %v446, 0.35355338
      %v455 = vmul.f32 %v449, 0.35355338
      %v456 = vmul.f32 %v452, 0.35355338
      %v457 = vsel %vm171, %v454, -inf
      %458 = vmax.xlane.f32.xlu0 %v457
      %v459 = vpop.xlane.xlu0 %458
      %v460 = vsel %vm171, %v455, -inf
      %461 = vmax.xlane.f32.xlu0 %v460
      %v462 = vpop.xlane.xlu0 %461
      %v463 = vsel %vm178, %v456, -inf
      %464 = vmax.xlane.f32.xlu0 %v463
      %v465 = vpop.xlane.xlu0 %464
      %v466 = vsub.f32 %v454, %v459
      %v467 = vsub.f32 %v455, %v462
      %v468 = vsub.f32 %v456, %v465
      %v469 = vmul.f32 %v466, 1.442695
      %v470 = vpow.pop %v469
      %v471 = vmul.f32 %v467, 1.442695
      %v472 = vpow.pop %v471
      %v473 = vmul.f32 %v468, 1.442695
      %v474 = vpow.pop %v473
      %v475 = vsel %vm171, %v470, 0.0
      %476 = vadd.xlane.f32.xlu0 %v475
      %v477 = vpop.xlane.xlu0 %476
      %v478 = vsel %vm171, %v472, 0.0
      %479 = vadd.xlane.f32.xlu0 %v478
      %v480 = vpop.xlane.xlu0 %479
      %v481 = vsel %vm178, %v474, 0.0
      %482 = vadd.xlane.f32.xlu0 %v481
      %v483 = vpop.xlane.xlu0 %482
      %484 = vrot.lane.b32.xlu0 %v117, 48
      %v485 = vpop.permute.xlu0 %484
      %486 = vrot.lane.b32.xlu0 %v118, 48
      %v487 = vpop.permute.xlu0 %486
      %488 = vrot.lane.b32.xlu0 %v119, 48
      %v489 = vpop.permute.xlu0 %488
      %v493 = vsel %vm171, %v470, 0
      %v496 = vsel %vm171, %v472, 0
      %v499 = vsel %vm171, %v474, 0
      %v501 = vsel %vm217, %v489, 0
      %503 = vmatpush.msra.mxu0 0.0
      %504 = vmatpush.msra.mxu0 0.0
      %505 = vmatpush.msra.mxu0 0.0
      %506 = vmatpush.msra.mxu0 0.0
      %507 = vmatpush.msra.mxu0 0.0
      %508 = vmatpush.msra.mxu0 0.0
      %509 = vmatpush.msra.mxu0 0.0
      %510 = vmatpush.msra.mxu0 0.0
      %511 = vmatpush.msra.mxu0 0.0
      %512 = vmatpush.msra.mxu0 0.0
      %513 = vmatpush.msra.mxu0 0.0
      %514 = vmatpush.msra.mxu0 0.0
      %515 = vmatpush.msra.mxu0 0.0
      %516 = vmatpush.msra.mxu0 %v501
      %517 = vmatpush.msra.mxu0 %v487
      %518 = vmatpush.msra.mxu0 %v485
      %519 = vmatmul.f32.gmra.mxu0 %v493
      %v520 = vpop.f32.mrf.mxu0
      %v521 = vadd.f32 0.0, %v520
      %522 = vmatmul.f32.gmra.mxu0 %v496
      %v523 = vpop.f32.mrf.mxu0
      %v524 = vadd.f32 0.0, %v523
      %525 = vmatmul.f32.gmra.mxu0 %v499
      %v526 = vpop.f32.mrf.mxu0
      %v527 = vadd.f32 0.0, %v526
      %528 = vdwg.mxu0
      %v529 = vrcp.pop %v477
      %v530 = vrcp.pop %v480
      %v531 = vrcp.pop %v483
      %v532 = vmul.f32 %v521, %v529
      %v533 = vmul.f32 %v524, %v530
      %v534 = vmul.f32 %v527, %v531
      %538 = vrot.lane.b32.xlu0 %v532, 16
      %v539 = vpop.permute.xlu0 %538
      %540 = vrot.lane.b32.xlu0 %v533, 16
      %v541 = vpop.permute.xlu0 %540
      %542 = vrot.lane.b32.xlu0 %v534, 16
      %v543 = vpop.permute.xlu0 %542
      %vm547 = vcmask 195712
      %548 = vst.msk [vmem:[%s116] sm:$0xff] %vm547, %v539
      %549 = vst.msk [vmem:[%s116 + $0x8] sm:$0xff] %vm547, %v541
      %vm550 = vcmask 188544
      %551 = vst.msk [vmem:[%s116 + $0x10] sm:$0x1] %vm550, %v543
      %552 = vrot.lane.b32.xlu0 %v117, 104
      %v553 = vpop.permute.xlu0 %552
      %554 = vrot.lane.b32.xlu0 %v118, 104
      %v555 = vpop.permute.xlu0 %554
      %556 = vrot.lane.b32.xlu0 %v119, 104
      %v557 = vpop.permute.xlu0 %556
      %558 = vrot.lane.b32.xlu0 %v117, 72
      %v559 = vpop.permute.xlu0 %558
      %560 = vrot.lane.b32.xlu0 %v118, 72
      %v561 = vpop.permute.xlu0 %560
      %562 = vrot.lane.b32.xlu0 %v119, 72
      %v563 = vpop.permute.xlu0 %562
      %v564 = vsel %vm129, %v553, 0
      %v566 = vsel %vm129, %v555, 0
      %v568 = vsel %vm129, %v557, 0
      %v570 = vsel %vm129, %v559, 0
      %v572 = vsel %vm129, %v561, 0
      %v574 = vsel %vm129, %v563, 0
      %576 = vmatpush.xpose.msra.mxu0 0.0
      %577 = vmatpush.xpose.msra.mxu0 0.0
      %578 = vmatpush.xpose.msra.mxu0 0.0
      %579 = vmatpush.xpose.msra.mxu0 0.0
      %580 = vmatpush.xpose.msra.mxu0 0.0
      %581 = vmatpush.xpose.msra.mxu0 0.0
      %582 = vmatpush.xpose.msra.mxu0 0.0
      %583 = vmatpush.xpose.msra.mxu0 0.0
      %584 = vmatpush.xpose.msra.mxu0 0.0
      %585 = vmatpush.xpose.msra.mxu0 0.0
      %586 = vmatpush.xpose.msra.mxu0 0.0
      %587 = vmatpush.xpose.msra.mxu0 0.0
      %588 = vmatpush.xpose.msra.mxu0 0.0
      %589 = vmatpush.xpose.msra.mxu0 %v574
      %590 = vmatpush.xpose.msra.mxu0 %v572
      %591 = vmatpush.xpose.msra.mxu0 %v570
      %592 = vmatmul.f32.gmra.mxu0 %v564
      %v593 = vpop.f32.mrf.mxu0
      %v594 = vadd.f32 0.0, %v593
      %595 = vmatmul.f32.gmra.mxu0 %v566
      %v596 = vpop.f32.mrf.mxu0
      %v597 = vadd.f32 0.0, %v596
      %598 = vmatmul.f32.gmra.mxu0 %v568
      %v599 = vpop.f32.mrf.mxu0
      %v600 = vadd.f32 0.0, %v599
      %601 = vdwg.mxu0
      %v602 = vmul.f32 %v594, 0.35355338
      %v603 = vmul.f32 %v597, 0.35355338
      %v604 = vmul.f32 %v600, 0.35355338
      %v605 = vsel %vm171, %v602, -inf
      %606 = vmax.xlane.f32.xlu0 %v605
      %v607 = vpop.xlane.xlu0 %606
      %v608 = vsel %vm171, %v603, -inf
      %609 = vmax.xlane.f32.xlu0 %v608
      %v610 = vpop.xlane.xlu0 %609
      %v611 = vsel %vm178, %v604, -inf
      %612 = vmax.xlane.f32.xlu0 %v611
      %v613 = vpop.xlane.xlu0 %612
      %v614 = vsub.f32 %v602, %v607
      %v615 = vsub.f32 %v603, %v610
      %v616 = vsub.f32 %v604, %v613
      %v617 = vmul.f32 %v614, 1.442695
      %v618 = vpow.pop %v617
      %v619 = vmul.f32 %v615, 1.442695
      %v620 = vpow.pop %v619
      %v621 = vmul.f32 %v616, 1.442695
      %v622 = vpow.pop %v621
      %v623 = vsel %vm171, %v618, 0.0
      %624 = vadd.xlane.f32.xlu0 %v623
      %v625 = vpop.xlane.xlu0 %624
      %v626 = vsel %vm171, %v620, 0.0
      %627 = vadd.xlane.f32.xlu0 %v626
      %v628 = vpop.xlane.xlu0 %627
      %v629 = vsel %vm178, %v622, 0.0
      %630 = vadd.xlane.f32.xlu0 %v629
      %v631 = vpop.xlane.xlu0 %630
      %632 = vrot.lane.b32.xlu0 %v117, 40
      %v633 = vpop.permute.xlu0 %632
      %634 = vrot.lane.b32.xlu0 %v118, 40
      %v635 = vpop.permute.xlu0 %634
      %636 = vrot.lane.b32.xlu0 %v119, 40
      %v637 = vpop.permute.xlu0 %636
      %v641 = vsel %vm171, %v618, 0
      %v644 = vsel %vm171, %v620, 0
      %v647 = vsel %vm171, %v622, 0
      %v649 = vsel %vm217, %v637, 0
      %651 = vmatpush.msra.mxu0 0.0
      %652 = vmatpush.msra.mxu0 0.0
      %653 = vmatpush.msra.mxu0 0.0
      %654 = vmatpush.msra.mxu0 0.0
      %655 = vmatpush.msra.mxu0 0.0
      %656 = vmatpush.msra.mxu0 0.0
      %657 = vmatpush.msra.mxu0 0.0
      %658 = vmatpush.msra.mxu0 0.0
      %659 = vmatpush.msra.mxu0 0.0
      %660 = vmatpush.msra.mxu0 0.0
      %661 = vmatpush.msra.mxu0 0.0
      %662 = vmatpush.msra.mxu0 0.0
      %663 = vmatpush.msra.mxu0 0.0
      %664 = vmatpush.msra.mxu0 %v649
      %665 = vmatpush.msra.mxu0 %v635
      %666 = vmatpush.msra.mxu0 %v633
      %667 = vmatmul.f32.gmra.mxu0 %v641
      %v668 = vpop.f32.mrf.mxu0
      %v669 = vadd.f32 0.0, %v668
      %670 = vmatmul.f32.gmra.mxu0 %v644
      %v671 = vpop.f32.mrf.mxu0
      %v672 = vadd.f32 0.0, %v671
      %673 = vmatmul.f32.gmra.mxu0 %v647
      %v674 = vpop.f32.mrf.mxu0
      %v675 = vadd.f32 0.0, %v674
      %676 = vdwg.mxu0
      %v677 = vrcp.pop %v625
      %v678 = vrcp.pop %v628
      %v679 = vrcp.pop %v631
      %v680 = vmul.f32 %v669, %v677
      %v681 = vmul.f32 %v672, %v678
      %v682 = vmul.f32 %v675, %v679
      %686 = vrot.lane.b32.xlu0 %v680, 24
      %v687 = vpop.permute.xlu0 %686
      %688 = vrot.lane.b32.xlu0 %v681, 24
      %v689 = vpop.permute.xlu0 %688
      %690 = vrot.lane.b32.xlu0 %v682, 24
      %v691 = vpop.permute.xlu0 %690
      %vm695 = vcmask 261312
      %696 = vst.msk [vmem:[%s116] sm:$0xff] %vm695, %v687
      %697 = vst.msk [vmem:[%s116 + $0x8] sm:$0xff] %vm695, %v689
      %vm698 = vcmask 254144
      %699 = vst.msk [vmem:[%s116 + $0x10] sm:$0x1] %vm698, %v691
      %p700 = scmp.lt.s32.totalorder %s12, 3
      %s701 = scalar_select %p700, %s12, 3
      %s702 = smul.addr %s701, 3
      %s703 = smul.addr %s702, 8
      %s704 = scalar_lea.vmem %s1, %s703
      // Predicated region
      $region25: #{residual_attention_block.15} parent=23 // pred_check
        %p705 = pneg %p56
      $region26: #{residual_attention_block.15} parent=23 // pred_check_branch
        %707 = sbr.rel (%p705) target = $region28
      $region27: #{residual_attention_block.15} parent=23 // pred_region
        _
      $region28: #{residual_attention_block.15} parent=23 // pred_fallthru
        _
    $region24: #{residual_attention_block.15} parent=5 // pred_fallthru
      _
    %p708 = scmp.le.s32.totalorder 2, %s7
    // Predicated region
    $region29: #{residual_attention_block.15} parent=5 // pred_check
      %p709 = pneg %p708
    $region30: #{residual_attention_block.15} parent=5 // pred_check_branch
      %711 = sbr.rel (%p709) target = $region32
    $region31: #{residual_attention_block.15} parent=5 // pred_region
      %s712 = ssub.s32 %s7, 2
      // Predicated region
      $region33: #{residual_attention_block.15} parent=31 // pred_check
        %p713 = pneg %p62
      $region34: #{residual_attention_block.15} parent=31 // pred_check_branch
        %715 = sbr.rel (%p713) target = $region36
      $region35: #{residual_attention_block.15} parent=31 // pred_region
        %p716 = scmp.lt.s32.totalorder %s13, 3
        %s717 = scalar_select %p716, %s13, 3
        %s718 = smul.addr %s717, 3
        %s719 = smul.addr %s718, 8
        %s720 = scalar_lea.vmem %s1, %s719
      $region36: #{residual_attention_block.15} parent=31 // pred_fallthru
        _
    $region32: #{residual_attention_block.15} parent=5 // pred_fallthru
      _
  $region6: #{residual_attention_block.15} parent=0 // loop_footer
    %s11 = sadd.s32 1, %s7
  $region7: #{residual_attention_block.15} parent=0 // loop_footer_branch
    %6 = sbr.rel target = $region3
  $region8: #{residual_attention_block.15} parent=0 // loop_exit
    _

// kernel: residual_attention_block.16
$region0: #{residual_attention_block.16}
  #allocation0 [shape = 'u32[]', space=smem, size = 0x4, offset = 0x4, fixed_abs, tag = 'smem constant byte address 0x4 - core index']
  #allocation1 [shape = 'u32[72,128]{1,0:T(1,128)}', space=vmem, size = 0x9000, scoped, tag = 'internal scratch']
  #allocation2 [shape = 'f32[68,32]{1,0:T(8,128)}', space=vmem, size = 0x9000, scoped, tag = 'scratch operand']
  %s0 = inlined_call_operand.vmem [shape: f32[68,32], index: 0, kind: input, shape index: {}]
  %s1 = inlined_call_operand.vmem [shape: f32[32,32], index: 1, kind: input, shape index: {}]
  %s2 = inlined_call_operand.vmem [shape: f32[1,32], index: 2, kind: input, shape index: {}]
  %s3 = inlined_call_operand.vmem [shape: f32[68,32], index: 3, kind: input, shape index: {}]
  %s4 = inlined_call_operand.vmem [shape: f32[68,32], index: 4, kind: output, shape index: {}]
  %s5 = sld [smem:[#allocation0]]
  $region34: #{residual_attention_block.16} parent=0
    _
  %s7 = ssub.s32 1, %s5
  %s8 = scalar_select 0, %s7, %s5
  // Predicated region
  $region2: #{residual_attention_block.16} parent=0 // pred_check
    _
  $region3: #{residual_attention_block.16} parent=0 // pred_check_branch
    %10 = sbr.rel (0) target = $region5
  $region4: #{residual_attention_block.16} parent=0 // pred_region
    _
  $region5: #{residual_attention_block.16} parent=0 // pred_fallthru
    _
  // Predicated region
  $region6: #{residual_attention_block.16} parent=0 // pred_check
    _
  $region7: #{residual_attention_block.16} parent=0 // pred_check_branch
    %12 = sbr.rel (0) target = $region9
  $region8: #{residual_attention_block.16} parent=0 // pred_region
    _
  $region9: #{residual_attention_block.16} parent=0 // pred_fallthru
    _
  // Predicated region
  $region10: #{residual_attention_block.16} parent=0 // pred_check
    _
  $region11: #{residual_attention_block.16} parent=0 // pred_check_branch
    %14 = sbr.rel (0) target = $region13
  $region12: #{residual_attention_block.16} parent=0 // pred_region
    _
  $region13: #{residual_attention_block.16} parent=0 // pred_fallthru
    _
  // Predicated region
  $region14: #{residual_attention_block.16} parent=0 // pred_check
    _
  $region15: #{residual_attention_block.16} parent=0 // pred_check_branch
    %16 = sbr.rel (0) target = $region17
  $region16: #{residual_attention_block.16} parent=0 // pred_region
    _
  $region17: #{residual_attention_block.16} parent=0 // pred_fallthru
    _
  %p17 = scmp.eq.s32.totalorder 0, 0
  // Predicated region
  $region18: #{residual_attention_block.16} parent=0 // pred_check
    %p18 = pneg %p17
  $region19: #{residual_attention_block.16} parent=0 // pred_check_branch
    %20 = sbr.rel (%p18) target = $region21
  $region20: #{residual_attention_block.16} parent=0 // pred_region
    %vm21 = vcmask 261120
    %22 = vst.msk [vmem:[#allocation2] sm:$0xff] %vm21, 0.0
    %23 = vst.msk [vmem:[#allocation2 + $0x8] sm:$0xff] %vm21, 0.0
    %24 = vst.msk [vmem:[#allocation2 + $0x10] sm:$0xff] %vm21, 0.0
    %25 = vst.msk [vmem:[#allocation2 + $0x18] sm:$0xff] %vm21, 0.0
    %26 = vst.msk [vmem:[#allocation2 + $0x20] sm:$0xff] %vm21, 0.0
    %27 = vst.msk [vmem:[#allocation2 + $0x28] sm:$0xff] %vm21, 0.0
    %28 = vst.msk [vmem:[#allocation2 + $0x30] sm:$0xff] %vm21, 0.0
    %29 = vst.msk [vmem:[#allocation2 + $0x38] sm:$0xff] %vm21, 0.0
    %vm30 = vcmask 257024
    %31 = vst.msk [vmem:[#allocation2 + $0x40] sm:$0xf] %vm30, 0.0
  $region21: #{residual_attention_block.16} parent=0 // pred_fallthru
    _
  %v32 = vld [vmem:[#allocation2] sm:$0xff]
  %v33 = vld [vmem:[#allocation2 + $0x8] sm:$0xff]
  %v34 = vld [vmem:[#allocation2 + $0x10] sm:$0xff]
  %v35 = vld [vmem:[#allocation2 + $0x18] sm:$0xff]
  %v36 = vld [vmem:[#allocation2 + $0x20] sm:$0xff]
  %v37 = vld [vmem:[#allocation2 + $0x28] sm:$0xff]
  %v38 = vld [vmem:[#allocation2 + $0x30] sm:$0xff]
  %v39 = vld [vmem:[#allocation2 + $0x38] sm:$0xff]
  %v40 = vld [vmem:[#allocation2 + $0x40] sm:$0xf]
  %v41 = vld [vmem:[%s0] sm:$0xff]
  %v42 = vld [vmem:[%s0 + $0x8] sm:$0xff]
  %v43 = vld [vmem:[%s0 + $0x10] sm:$0xff]
  %v44 = vld [vmem:[%s0 + $0x18] sm:$0xff]
  %v45 = vld [vmem:[%s0 + $0x20] sm:$0xff]
  %v46 = vld [vmem:[%s0 + $0x28] sm:$0xff]
  %v47 = vld [vmem:[%s0 + $0x30] sm:$0xff]
  %v48 = vld [vmem:[%s0 + $0x38] sm:$0xff]
  %v49 = vld [vmem:[%s0 + $0x40] sm:$0xf]
  %v50 = vld [vmem:[%s1] sm:$0xff]
  %v51 = vld [vmem:[%s1 + $0x8] sm:$0xff]
  %v52 = vld [vmem:[%s1 + $0x10] sm:$0xff]
  %v53 = vld [vmem:[%s1 + $0x18] sm:$0xff]
  %vm54 = vcmask 261120
  %v56 = vsel %vm54, %v41, 0
  %v59 = vsel %vm54, %v42, 0
  %v62 = vsel %vm54, %v43, 0
  %v65 = vsel %vm54, %v44, 0
  %v68 = vsel %vm54, %v45, 0
  %v71 = vsel %vm54, %v46, 0
  %v74 = vsel %vm54, %v47, 0
  %v77 = vsel %vm54, %v48, 0
  %v80 = vsel %vm54, %v49, 0
  %82 = vmatpush.msra.mxu0 0.0
  %83 = vmatpush.msra.mxu0 0.0
  %84 = vmatpush.msra.mxu0 0.0
  %85 = vmatpush.msra.mxu0 0.0
  %86 = vmatpush.msra.mxu0 0.0
  %87 = vmatpush.msra.mxu0 0.0
  %88 = vmatpush.msra.mxu0 0.0
  %89 = vmatpush.msra.mxu0 0.0
  %90 = vmatpush.msra.mxu0 0.0
  %91 = vmatpush.msra.mxu0 0.0
  %92 = vmatpush.msra.mxu0 0.0
  %93 = vmatpush.msra.mxu0 0.0
  %94 = vmatpush.msra.mxu0 %v53
  %95 = vmatpush.msra.mxu0 %v52
  %96 = vmatpush.msra.mxu0 %v51
  %97 = vmatpush.msra.mxu0 %v50
  %98 = vmatmul.f32.gmra.mxu0 %v56
  %v99 = vpop.f32.mrf.mxu0
  %v100 = vadd.f32 0.0, %v99
  %101 = vmatmul.f32.gmra.mxu0 %v59
  %v102 = vpop.f32.mrf.mxu0
  %v103 = vadd.f32 0.0, %v102
  %104 = vmatmul.f32.gmra.mxu0 %v62
  %v105 = vpop.f32.mrf.mxu0
  %v106 = vadd.f32 0.0, %v105
  %107 = vmatmul.f32.gmra.mxu0 %v65
  %v108 = vpop.f32.mrf.mxu0
  %v109 = vadd.f32 0.0, %v108
  %110 = vmatmul.f32.gmra.mxu0 %v68
  %v111 = vpop.f32.mrf.mxu0
  %v112 = vadd.f32 0.0, %v111
  %113 = vmatmul.f32.gmra.mxu0 %v71
  %v114 = vpop.f32.mrf.mxu0
  %v115 = vadd.f32 0.0, %v114
  %116 = vmatmul.f32.gmra.mxu0 %v74
  %v117 = vpop.f32.mrf.mxu0
  %v118 = vadd.f32 0.0, %v117
  %119 = vmatmul.f32.gmra.mxu0 %v77
  %v120 = vpop.f32.mrf.mxu0
  %v121 = vadd.f32 0.0, %v120
  %122 = vmatmul.f32.gmra.mxu0 %v80
  %v123 = vpop.f32.mrf.mxu0
  %v124 = vadd.f32 0.0, %v123
  %125 = vdwg.mxu0
  %v126 = vadd.f32 %v32, %v100
  %v127 = vadd.f32 %v33, %v103
  %v128 = vadd.f32 %v34, %v106
  %v129 = vadd.f32 %v35, %v109
  %v130 = vadd.f32 %v36, %v112
  %v131 = vadd.f32 %v37, %v115
  %v132 = vadd.f32 %v38, %v118
  %v133 = vadd.f32 %v39, %v121
  %v134 = vadd.f32 %v40, %v124
  %135 = vst.msk [vmem:[#allocation2] sm:$0xff] %vm54, %v126
  %136 = vst.msk [vmem:[#allocation2 + $0x8] sm:$0xff] %vm54, %v127
  %137 = vst.msk [vmem:[#allocation2 + $0x10] sm:$0xff] %vm54, %v128
  %138 = vst.msk [vmem:[#allocation2 + $0x18] sm:$0xff] %vm54, %v129
  %139 = vst.msk [vmem:[#allocation2 + $0x20] sm:$0xff] %vm54, %v130
  %140 = vst.msk [vmem:[#allocation2 + $0x28] sm:$0xff] %vm54, %v131
  %141 = vst.msk [vmem:[#allocation2 + $0x30] sm:$0xff] %vm54, %v132
  %142 = vst.msk [vmem:[#allocation2 + $0x38] sm:$0xff] %vm54, %v133
  %vm143 = vcmask 257024
  %144 = vst.msk [vmem:[#allocation2 + $0x40] sm:$0xf] %vm143, %v134
  // Predicated region
  $region22: #{residual_attention_block.16} parent=0 // pred_check
    %p145 = pneg %p17
  $region23: #{residual_attention_block.16} parent=0 // pred_check_branch
    %147 = sbr.rel (%p145) target = $region25
  $region24: #{residual_attention_block.16} parent=0 // pred_region
    %v148 = vld [vmem:[#allocation2] sm:$0xff]
    %v149 = vld [vmem:[#allocation2 + $0x8] sm:$0xff]
    %v150 = vld [vmem:[#allocation2 + $0x10] sm:$0xff]
    %v151 = vld [vmem:[#allocation2 + $0x18] sm:$0xff]
    %v152 = vld [vmem:[#allocation2 + $0x20] sm:$0xff]
    %v153 = vld [vmem:[#allocation2 + $0x28] sm:$0xff]
    %v154 = vld [vmem:[#allocation2 + $0x30] sm:$0xff]
    %v155 = vld [vmem:[#allocation2 + $0x38] sm:$0xff]
    %v156 = vld [vmem:[#allocation2 + $0x40] sm:$0xf]
    %v157 = vld [vmem:[%s2] sm:$0x1]
    %v159 = vperm.slane %v157, 0
    %v161 = vadd.f32 %v148, %v159
    %v162 = vadd.f32 %v149, %v159
    %v163 = vadd.f32 %v150, %v159
    %v164 = vadd.f32 %v151, %v159
    %v165 = vadd.f32 %v152, %v159
    %v166 = vadd.f32 %v153, %v159
    %v167 = vadd.f32 %v154, %v159
    %v168 = vadd.f32 %v155, %v159
    %v169 = vadd.f32 %v156, %v159
    %v170 = vld [vmem:[%s3] sm:$0xff]
    %v171 = vld [vmem:[%s3 + $0x8] sm:$0xff]
    %v172 = vld [vmem:[%s3 + $0x10] sm:$0xff]
    %v173 = vld [vmem:[%s3 + $0x18] sm:$0xff]
    %v174 = vld [vmem:[%s3 + $0x20] sm:$0xff]
    %v175 = vld [vmem:[%s3 + $0x28] sm:$0xff]
    %v176 = vld [vmem:[%s3 + $0x30] sm:$0xff]
    %v177 = vld [vmem:[%s3 + $0x38] sm:$0xff]
    %v178 = vld [vmem:[%s3 + $0x40] sm:$0xf]
    %v179 = vadd.f32 %v161, %v170
    %v180 = vadd.f32 %v162, %v171
    %v181 = vadd.f32 %v163, %v172
    %v182 = vadd.f32 %v164, %v173
    %v183 = vadd.f32 %v165, %v174
    %v184 = vadd.f32 %v166, %v175
    %v185 = vadd.f32 %v167, %v176
    %v186 = vadd.f32 %v168, %v177
    %v187 = vadd.f32 %v169, %v178
    %188 = vst.msk [vmem:[%s4] sm:$0xff] %vm54, %v179
    %189 = vst.msk [vmem:[%s4 + $0x8] sm:$0xff] %vm54, %v180
    %190 = vst.msk [vmem:[%s4 + $0x10] sm:$0xff] %vm54, %v181
    %191 = vst.msk [vmem:[%s4 + $0x18] sm:$0xff] %vm54, %v182
    %192 = vst.msk [vmem:[%s4 + $0x20] sm:$0xff] %vm54, %v183
    %193 = vst.msk [vmem:[%s4 + $0x28] sm:$0xff] %vm54, %v184
    %194 = vst.msk [vmem:[%s4 + $0x30] sm:$0xff] %vm54, %v185
    %195 = vst.msk [vmem:[%s4 + $0x38] sm:$0xff] %vm54, %v186
    %196 = vst.msk [vmem:[%s4 + $0x40] sm:$0xf] %vm143, %v187
  $region25: #{residual_attention_block.16} parent=0 // pred_fallthru
    _
  // Predicated region
  $region26: #{residual_attention_block.16} parent=0 // pred_check
    _
  $region27: #{residual_attention_block.16} parent=0 // pred_check_branch
    %198 = sbr.rel (0) target = $region29
  $region28: #{residual_attention_block.16} parent=0 // pred_region
    _
  $region29: #{residual_attention_block.16} parent=0 // pred_fallthru
    _
  // Predicated region
  $region30: #{residual_attention_block.16} parent=0 // pred_check
    _
  $region31: #{residual_attention_block.16} parent=0 // pred_check_branch
    %200 = sbr.rel (0) target = $region33
  $region32: #{residual_attention_block.16} parent=0 // pred_region
    _
  $region33: #{residual_attention_block.16} parent=0 // pred_fallthru
    _

// kernel: residual_attention_block.12
$region0: #{residual_attention_block.12}
  #allocation0 [shape = 'u32[]', space=smem, size = 0x4, offset = 0x4, fixed_abs, tag = 'smem constant byte address 0x4 - core index']
  #allocation1 [shape = 'u32[72,128]{1,0:T(1,128)}', space=vmem, size = 0x9000, scoped, tag = 'internal scratch']
  %s0 = inlined_call_operand.vmem [shape: f32[2,4,6,6,8], index: 0, kind: input, shape index: {}]
  %s1 = inlined_call_operand.vmem [shape: f32[27,4,8], index: 1, kind: input, shape index: {}]
  %s2 = inlined_call_operand.vmem [shape: f32[1,8], index: 2, kind: input, shape index: {}]
  %s3 = inlined_call_operand.vmem [shape: f32[2,2,4,4,8], index: 3, kind: output, shape index: {}]
  %s4 = sld [smem:[#allocation0]]
  $region45: #{residual_attention_block.12} parent=0
    _
  %s6 = ssub.s32 1, %s4
  %s7 = scalar_select 0, %s6, %s4
  loop: start=0, step=1, limit=4
  $region2: #{residual_attention_block.12} parent=0 // loop_pre_header
    _
  $region3: #{residual_attention_block.12} parent=0 // loop_header
    %s9 = sphi 0, %s13
    %p10 = scmp.ge.s32.totalorder %s9, 4
    %s19 = sphi 0, %s21
    %s22 = sphi 0, %s19
    %s23 = sphi 0, %s22
    %s39 = sphi 0, %s23
    %s43 = sphi 0, %s43
    %s45 = sphi 0, %s43
    %s46 = sphi 0, %s45
    %s60 = sphi 0, %s46
    %s64 = sphi 0, %s64
    %s66 = sphi 0, %s64
    %s67 = sphi 0, %s66
    %s81 = sphi 0, %s67
    %s87 = sphi 0, %s89
    %s90 = sphi 0, %s87
    %s91 = sphi 0, %s90
    %s107 = sphi 0, %s91
  $region4: #{residual_attention_block.12} parent=0 // loop_header_branch
    %12 = sbr.rel (%p10) target = $region8
  $region5: #{residual_attention_block.12} parent=0 // loop_body
    %s14 = ssub.s32 %s9, 1
    %s15 = ssub.s32 %s9, 2
    %s16 = sadd.s32 %s9, 1
    %s17 = ssub.s32 %s9, %s16
    %p18 = scmp.eq.s32.totalorder %s17, 0
    %s20 = sadd.s32 %s19, 1
    %s21 = scalar_select %p18, %s19, %s20
    %p24 = pneg %p18
    %p25 = scmp.eq.s32.totalorder %s9, 1
    %p26 = por %p24, %p25
    %p27 = scmp.ne.s32.totalorder %s19, %s22
    %p28 = scmp.eq.s32.totalorder %s9, 0
    %p29 = por %p27, %p28
    %p30 = scmp.ne.s32.totalorder %s19, %s22
    %p31 = scmp.eq.s32.totalorder %s14, 1
    %p32 = por %p30, %p31
    %p33 = scmp.ne.s32.totalorder %s22, %s23
    %p34 = scmp.eq.s32.totalorder %s14, 0
    %p35 = por %p33, %p34
    %p36 = scmp.ne.s32.totalorder %s22, %s23
    %p37 = scmp.eq.s32.totalorder %s15, 1
    %p38 = por %p36, %p37
    %p40 = scmp.ne.s32.totalorder %s23, %s39
    %p41 = scmp.eq.s32.totalorder %s15, 0
    %p42 = por %p40, %p41
    %s44 = sadd.s32 %s43, 1
    %p47 = scmp.eq.s32.totalorder %s9, 1
    %p48 = scmp.ne.s32.totalorder %s43, %s45
    %p49 = scmp.eq.s32.totalorder %s9, 0
    %p50 = por %p48, %p49
    %p51 = scmp.ne.s32.totalorder %s43, %s45
    %p52 = scmp.eq.s32.totalorder %s14, 1
    %p53 = por %p51, %p52
    %p54 = scmp.ne.s32.totalorder %s45, %s46
    %p55 = scmp.eq.s32.totalorder %s14, 0
    %p56 = por %p54, %p55
    %p57 = scmp.ne.s32.totalorder %s45, %s46
    %p58 = scmp.eq.s32.totalorder %s15, 1
    %p59 = por %p57, %p58
    %p61 = scmp.ne.s32.totalorder %s46, %s60
    %p62 = scmp.eq.s32.totalorder %s15, 0
    %p63 = por %p61, %p62
    %s65 = sadd.s32 %s64, 1
    %p68 = scmp.eq.s32.totalorder %s9, 1
    %p69 = scmp.ne.s32.totalorder %s64, %s66
    %p70 = scmp.eq.s32.totalorder %s9, 0
    %p71 = por %p69, %p70
    %p72 = scmp.ne.s32.totalorder %s64, %s66
    %p73 = scmp.eq.s32.totalorder %s14, 1
    %p74 = por %p72, %p73
    %p75 = scmp.ne.s32.totalorder %s66, %s67
    %p76 = scmp.eq.s32.totalorder %s14, 0
    %p77 = por %p75, %p76
    %p78 = scmp.ne.s32.totalorder %s66, %s67
    %p79 = scmp.eq.s32.totalorder %s15, 1
    %p80 = por %p78, %p79
    %p82 = scmp.ne.s32.totalorder %s67, %s81
    %p83 = scmp.eq.s32.totalorder %s15, 0
    %p84 = por %p82, %p83
    %s85 = ssub.s32 %s9, %s16
    %p86 = scmp.eq.s32.totalorder %s85, 0
    %s88 = sadd.s32 %s87, 1
    %s89 = scalar_select %p86, %s87, %s88
    %p92 = pneg %p86
    %p93 = scmp.eq.s32.totalorder %s9, 1
    %p94 = por %p92, %p93
    %p95 = scmp.ne.s32.totalorder %s87, %s90
    %p96 = scmp.eq.s32.totalorder %s9, 0
    %p97 = por %p95, %p96
    %p98 = scmp.ne.s32.totalorder %s87, %s90
    %p99 = scmp.eq.s32.totalorder %s14, 1
    %p100 = por %p98, %p99
    %p101 = scmp.ne.s32.totalorder %s90, %s91
    %p102 = scmp.eq.s32.totalorder %s14, 0
    %p103 = por %p101, %p102
    %p104 = scmp.ne.s32.totalorder %s90, %s91
    %p105 = scmp.eq.s32.totalorder %s15, 1
    %p106 = por %p104, %p105
    %p108 = scmp.ne.s32.totalorder %s91, %s107
    %p109 = scmp.eq.s32.totalorder %s15, 0
    %p110 = por %p108, %p109
    %p111 = scmp.le.s32.totalorder 1, %s9
    %p112 = scmp.lt.s32.totalorder %s9, 3
    %p113 = pnand %p111, %p112
    %p114 = pneg %p113
    // Predicated region
    $region9: #{residual_attention_block.12} parent=5 // pred_check
      _
    $region10: #{residual_attention_block.12} parent=5 // pred_check_branch
      %116 = sbr.rel (%p113) target = $region12
    $region11: #{residual_attention_block.12} parent=5 // pred_region
      %s117 = ssub.s32 %s9, 1
      // Predicated region
      $region13: #{residual_attention_block.12} parent=11 // pred_check
        %p118 = pneg %p56
      $region14: #{residual_attention_block.12} parent=11 // pred_check_branch
        %120 = sbr.rel (%p118) target = $region16
      $region15: #{residual_attention_block.12} parent=11 // pred_region
        _
      $region16: #{residual_attention_block.12} parent=11 // pred_fallthru
        _
      // Predicated region
      $region17: #{residual_attention_block.12} parent=11 // pred_check
        %p121 = pneg %p77
      $region18: #{residual_attention_block.12} parent=11 // pred_check_branch
        %123 = sbr.rel (%p121) target = $region20
      $region19: #{residual_attention_block.12} parent=11 // pred_region
        _
      $region20: #{residual_attention_block.12} parent=11 // pred_fallthru
        _
    $region12: #{residual_attention_block.12} parent=5 // pred_fallthru
      _
    %p124 = scmp.lt.s32.totalorder %s9, 2
    // Predicated region
    $region21: #{residual_attention_block.12} parent=5 // pred_check
      %p125 = pneg %p124
    $region22: #{residual_attention_block.12} parent=5 // pred_check_branch
      %127 = sbr.rel (%p125) target = $region24
    $region23: #{residual_attention_block.12} parent=5 // pred_region
      // Predicated region
      $region25: #{residual_attention_block.12} parent=23 // pred_check
        %p128 = pneg %p29
      $region26: #{residual_attention_block.12} parent=23 // pred_check_branch
        %130 = sbr.rel (%p128) target = $region28
      $region27: #{residual_attention_block.12} parent=23 // pred_region
        %p131 = scmp.lt.s32.totalorder %s9, 1
        %s132 = scalar_select %p131, %s9, 1
        %s133 = smul.addr %s132, 24
        %s134 = smul.addr %s133, 8
        %s135 = scalar_lea.vmem %s0, %s134
      $region28: #{residual_attention_block.12} parent=23 // pred_fallthru
        _
    $region24: #{residual_attention_block.12} parent=5 // pred_fallthru
      _
    %p136 = scmp.le.s32.totalorder 1, %s9
    %p137 = scmp.lt.s32.totalorder %s9, 3
    %p138 = pnand %p136, %p137
    %p139 = pneg %p138
    // Predicated region
    $region29: #{residual_attention_block.12} parent=5 // pred_check
      _
    $region30: #{residual_attention_block.12} parent=5 // pred_check_branch
      %141 = sbr.rel (%p138) target = $region32
    $region31: #{residual_attention_block.12} parent=5 // pred_region
      %s142 = ssub.s32 %s9, 1
      %p143 = scmp.lt.s32.totalorder %s14, 1
      %s144 = scalar_select %p143, %s14, 1
      %s145 = smul.addr %s144, 24
      %s146 = smul.addr %s145, 8
      %s147 = scalar_lea.vmem %s0, %s146
      %p148 = pneg %p35
      %p149 = pneg %p32
      %p150 = pneg %p56
      %p151 = pneg %p53
      %p152 = pneg %p77
      %p153 = pneg %p74
      %p154 = pneg %p103
      %p155 = pneg %p100
      %p156 = scmp.lt.s32.totalorder %s14, 1
      %s157 = scalar_select %p156, %s14, 1
      %s158 = smul.addr %s157, 8
      %s159 = smul.addr %s158, 4
      %s160 = scalar_lea.vmem %s3, %s159
      %p161 = scmp.lt.s32.totalorder %s14, 1
      %s162 = scalar_select %p161, %s14, 1
      %s163 = smul.addr %s162, 24
      %s164 = smul.addr %s163, 8
      %s165 = scalar_lea.vmem %s0, %s164
      %p166 = scmp.lt.s32.totalorder %s14, 1
      %s167 = scalar_select %p166, %s14, 1
      %s168 = smul.addr %s167, 8
      %s169 = smul.addr %s168, 4
      %s170 = scalar_lea.vmem %s3, %s169
      %v171 = vld [vmem:[%s165] sm:$0x3f]
      %v172 = vld [vmem:[%s165 + $0x8] sm:$0x3f]
      %v173 = vld [vmem:[%s165 + $0x10] sm:$0x3f]
      %v174 = vld [vmem:[%s165 + $0x18] sm:$0x3f]
      %v175 = vld [vmem:[%s165 + $0x20] sm:$0x3f]
      %v176 = vld [vmem:[%s165 + $0x28] sm:$0x3f]
      %v177 = vld [vmem:[%s165 + $0x30] sm:$0x3f]
      %v178 = vld [vmem:[%s165 + $0x38] sm:$0x3f]
      %v179 = vld [vmem:[%s165 + $0x40] sm:$0x3f]
      %v180 = vld [vmem:[%s165 + $0x48] sm:$0x3f]
      %v181 = vld [vmem:[%s165 + $0x50] sm:$0x3f]
      %v182 = vld [vmem:[%s165 + $0x58] sm:$0x3f]
      %v183 = vld [vmem:[%s165 + $0x60] sm:$0x3f]
      %v184 = vld [vmem:[%s165 + $0x68] sm:$0x3f]
      %v185 = vld [vmem:[%s165 + $0x70] sm:$0x3f]
      %v186 = vld [vmem:[%s165 + $0x78] sm:$0x3f]
      %v187 = vld [vmem:[%s165 + $0x80] sm:$0x3f]
      %v188 = vld [vmem:[%s165 + $0x88] sm:$0x3f]
      %v189 = vld [vmem:[%s165 + $0x90] sm:$0x3f]
      %v190 = vld [vmem:[%s165 + $0x98] sm:$0x3f]
      %v191 = vld [vmem:[%s165 + $0xa0] sm:$0x3f]
      %v192 = vld [vmem:[%s165 + $0xa8] sm:$0x3f]
      %v193 = vld [vmem:[%s165 + $0xb0] sm:$0x3f]
      %v194 = vld [vmem:[%s165 + $0xb8] sm:$0x3f]
      %v195 = vld [vmem:[%s1] sm:$0xf]
      %v196 = vmul.f32 %v171, %v195
      %v197 = vmul.f32 %v172, %v195
      %v198 = vmul.f32 %v173, %v195
      %v199 = vmul.f32 %v174, %v195
      %v200 = vmul.f32 %v177, %v195
      %v201 = vmul.f32 %v178, %v195
      %v202 = vmul.f32 %v179, %v195
      %v203 = vmul.f32 %v180, %v195
      %v204 = vadd.f32 %v196, 0.0
      %v205 = vadd.f32 %v197, 0.0
      %v206 = vadd.f32 %v198, 0.0
      %v207 = vadd.f32 %v199, 0.0
      %v208 = vadd.f32 %v200, 0.0
      %v209 = vadd.f32 %v201, 0.0
      %v210 = vadd.f32 %v202, 0.0
      %v211 = vadd.f32 %v203, 0.0
      %s212 = scalar_lea.vmem %s1, 4
      %v213 = vld [vmem:[%s212] sm:$0xf]
      %v215 = vrot.slane %v213, 7
      %v217 = vmul.f32 %v171, %v215
      %v218 = vmul.f32 %v172, %v215
      %v219 = vmul.f32 %v173, %v215
      %v220 = vmul.f32 %v174, %v215
      %v221 = vmul.f32 %v177, %v215
      %v222 = vmul.f32 %v178, %v215
      %v223 = vmul.f32 %v179, %v215
      %v224 = vmul.f32 %v180, %v215
      %v233 = vrot.slane %v217, 1
      %v234 = vrot.slane %v218, 1
      %v235 = vrot.slane %v219, 1
      %v236 = vrot.slane %v220, 1
      %v237 = vrot.slane %v221, 1
      %v238 = vrot.slane %v222, 1
      %v239 = vrot.slane %v223, 1
      %v240 = vrot.slane %v224, 1
      %v249 = vadd.f32 %v204, %v233
      %v250 = vadd.f32 %v205, %v234
      %v251 = vadd.f32 %v206, %v235
      %v252 = vadd.f32 %v207, %v236
      %v253 = vadd.f32 %v208, %v237
      %v254 = vadd.f32 %v209, %v238
      %v255 = vadd.f32 %v210, %v239
      %v256 = vadd.f32 %v211, %v240
      %s257 = scalar_lea.vmem %s1, 8
      %v258 = vld [vmem:[%s257] sm:$0xf]
      %v260 = vrot.slane %v258, 6
      %v262 = vmul.f32 %v171, %v260
      %v263 = vmul.f32 %v172, %v260
      %v264 = vmul.f32 %v173, %v260
      %v265 = vmul.f32 %v174, %v260
      %v266 = vmul.f32 %v177, %v260
      %v267 = vmul.f32 %v178, %v260
      %v268 = vmul.f32 %v179, %v260
      %v269 = vmul.f32 %v180, %v260
      %v278 = vrot.slane %v262, 2
      %v279 = vrot.slane %v263, 2
      %v280 = vrot.slane %v264, 2
      %v281 = vrot.slane %v265, 2
      %v282 = vrot.slane %v266, 2
      %v283 = vrot.slane %v267, 2
      %v284 = vrot.slane %v268, 2
      %v285 = vrot.slane %v269, 2
      %v294 = vadd.f32 %v249, %v278
      %v295 = vadd.f32 %v250, %v279
      %v296 = vadd.f32 %v251, %v280
      %v297 = vadd.f32 %v252, %v281
      %v298 = vadd.f32 %v253, %v282
      %v299 = vadd.f32 %v254, %v283
      %v300 = vadd.f32 %v255, %v284
      %v301 = vadd.f32 %v256, %v285
      %s302 = scalar_lea.vmem %s1, 12
      %v303 = vld [vmem:[%s302] sm:$0xf]
      %v304 = vmul.f32 %v172, %v303
      %v305 = vmul.f32 %v173, %v303
      %v306 = vmul.f32 %v174, %v303
      %v307 = vmul.f32 %v175, %v303
      %v308 = vmul.f32 %v178, %v303
      %v309 = vmul.f32 %v179, %v303
      %v310 = vmul.f32 %v180, %v303
      %v311 = vmul.f32 %v181, %v303
      %v312 = vadd.f32 %v294, %v304
      %v313 = vadd.f32 %v295, %v305
      %v314 = vadd.f32 %v296, %v306
      %v315 = vadd.f32 %v297, %v307
      %v316 = vadd.f32 %v298, %v308
      %v317 = vadd.f32 %v299, %v309
      %v318 = vadd.f32 %v300, %v310
      %v319 = vadd.f32 %v301, %v311
      %s320 = scalar_lea.vmem %s1, 16
      %v321 = vld [vmem:[%s320] sm:$0xf]
      %v323 = vrot.slane %v321, 7
      %v325 = vmul.f32 %v172, %v323
      %v326 = vmul.f32 %v173, %v323
      %v327 = vmul.f32 %v174, %v323
      %v328 = vmul.f32 %v175, %v323
      %v329 = vmul.f32 %v178, %v323
      %v330 = vmul.f32 %v179, %v323
      %v331 = vmul.f32 %v180, %v323
      %v332 = vmul.f32 %v181, %v323
      %v341 = vrot.slane %v325, 1
      %v342 = vrot.slane %v326, 1
      %v343 = vrot.slane %v327, 1
      %v344 = vrot.slane %v328, 1
      %v345 = vrot.slane %v329, 1
      %v346 = vrot.slane %v330, 1
      %v347 = vrot.slane %v331, 1
      %v348 = vrot.slane %v332, 1
      %v357 = vadd.f32 %v312, %v341
      %v358 = vadd.f32 %v313, %v342
      %v359 = vadd.f32 %v314, %v343
      %v360 = vadd.f32 %v315, %v344
      %v361 = vadd.f32 %v316, %v345
      %v362 = vadd.f32 %v317, %v346
      %v363 = vadd.f32 %v318, %v347
      %v364 = vadd.f32 %v319, %v348
      %s365 = scalar_lea.vmem %s1, 20
      %v366 = vld [vmem:[%s365] sm:$0xf]
      %v368 = vrot.slane %v366, 6
      %v370 = vmul.f32 %v172, %v368
      %v371 = vmul.f32 %v173, %v368
      %v372 = vmul.f32 %v174, %v368
      %v373 = vmul.f32 %v175, %v368
      %v374 = vmul.f32 %v178, %v368
      %v375 = vmul.f32 %v179, %v368
      %v376 = vmul.f32 %v180, %v368
      %v377 = vmul.f32 %v181, %v368
      %v386 = vrot.slane %v370, 2
      %v387 = vrot.slane %v371, 2
      %v388 = vrot.slane %v372, 2
      %v389 = vrot.slane %v373, 2
      %v390 = vrot.slane %v374, 2
      %v391 = vrot.slane %v375, 2
      %v392 = vrot.slane %v376, 2
      %v393 = vrot.slane %v377, 2
      %v402 = vadd.f32 %v357, %v386
      %v403 = vadd.f32 %v358, %v387
      %v404 = vadd.f32 %v359, %v388
      %v405 = vadd.f32 %v360, %v389
      %v406 = vadd.f32 %v361, %v390
      %v407 = vadd.f32 %v362, %v391
      %v408 = vadd.f32 %v363, %v392
      %v409 = vadd.f32 %v364, %v393
      %s410 = scalar_lea.vmem %s1, 24
      %v411 = vld [vmem:[%s410] sm:$0xf]
      %v412 = vmul.f32 %v173, %v411
      %v413 = vmul.f32 %v174, %v411
      %v414 = vmul.f32 %v175, %v411
      %v415 = vmul.f32 %v176, %v411
      %v416 = vmul.f32 %v179, %v411
      %v417 = vmul.f32 %v180, %v411
      %v418 = vmul.f32 %v181, %v411
      %v419 = vmul.f32 %v182, %v411
      %v420 = vadd.f32 %v402, %v412
      %v421 = vadd.f32 %v403, %v413
      %v422 = vadd.f32 %v404, %v414
      %v423 = vadd.f32 %v405, %v415
      %v424 = vadd.f32 %v406, %v416
      %v425 = vadd.f32 %v407, %v417
      %v426 = vadd.f32 %v408, %v418
      %v427 = vadd.f32 %v409, %v419
      %s428 = scalar_lea.vmem %s1, 28
      %v429 = vld [vmem:[%s428] sm:$0xf]
      %v431 = vrot.slane %v429, 7
      %v433 = vmul.f32 %v173, %v431
      %v434 = vmul.f32 %v174, %v431
      %v435 = vmul.f32 %v175, %v431
      %v436 = vmul.f32 %v176, %v431
      %v437 = vmul.f32 %v179, %v431
      %v438 = vmul.f32 %v180, %v431
      %v439 = vmul.f32 %v181, %v431
      %v440 = vmul.f32 %v182, %v431
      %v449 = vrot.slane %v433, 1
      %v450 = vrot.slane %v434, 1
      %v451 = vrot.slane %v435, 1
      %v452 = vrot.slane %v436, 1
      %v453 = vrot.slane %v437, 1
      %v454 = vrot.slane %v438, 1
      %v455 = vrot.slane %v439, 1
      %v456 = vrot.slane %v440, 1
      %v465 = vadd.f32 %v420, %v449
      %v466 = vadd.f32 %v421, %v450
      %v467 = vadd.f32 %v422, %v451
      %v468 = vadd.f32 %v423, %v452
      %v469 = vadd.f32 %v424, %v453
      %v470 = vadd.f32 %v425, %v454
      %v471 = vadd.f32 %v426, %v455
      %v472 = vadd.f32 %v427, %v456
      %s473 = scalar_lea.vmem %s1, 32
      %v474 = vld [vmem:[%s473] sm:$0xf]
      %v476 = vrot.slane %v474, 6
      %v478 = vmul.f32 %v173, %v476
      %v479 = vmul.f32 %v174, %v476
      %v480 = vmul.f32 %v175, %v476
      %v481 = vmul.f32 %v176, %v476
      %v482 = vmul.f32 %v179, %v476
      %v483 = vmul.f32 %v180, %v476
      %v484 = vmul.f32 %v181, %v476
      %v485 = vmul.f32 %v182, %v476
      %v494 = vrot.slane %v478, 2
      %v495 = vrot.slane %v479, 2
      %v496 = vrot.slane %v480, 2
      %v497 = vrot.slane %v481, 2
      %v498 = vrot.slane %v482, 2
      %v499 = vrot.slane %v483, 2
      %v500 = vrot.slane %v484, 2
      %v501 = vrot.slane %v485, 2
      %v510 = vadd.f32 %v465, %v494
      %v511 = vadd.f32 %v466, %v495
      %v512 = vadd.f32 %v467, %v496
      %v513 = vadd.f32 %v468, %v497
      %v514 = vadd.f32 %v469, %v498
      %v515 = vadd.f32 %v470, %v499
      %v516 = vadd.f32 %v471, %v500
      %v517 = vadd.f32 %v472, %v501
      %s518 = scalar_lea.vmem %s1, 36
      %v519 = vld [vmem:[%s518] sm:$0xf]
      %v520 = vmul.f32 %v177, %v519
      %v521 = vmul.f32 %v178, %v519
      %v522 = vmul.f32 %v179, %v519
      %v523 = vmul.f32 %v180, %v519
      %v524 = vmul.f32 %v183, %v519
      %v525 = vmul.f32 %v184, %v519
      %v526 = vmul.f32 %v185, %v519
      %v527 = vmul.f32 %v186, %v519
      %v528 = vadd.f32 %v510, %v520
      %v529 = vadd.f32 %v511, %v521
      %v530 = vadd.f32 %v512, %v522
      %v531 = vadd.f32 %v513, %v523
      %v532 = vadd.f32 %v514, %v524
      %v533 = vadd.f32 %v515, %v525
      %v534 = vadd.f32 %v516, %v526
      %v535 = vadd.f32 %v517, %v527
      %s536 = scalar_lea.vmem %s1, 40
      %v537 = vld [vmem:[%s536] sm:$0xf]
      %v539 = vrot.slane %v537, 7
      %v541 = vmul.f32 %v177, %v539
      %v542 = vmul.f32 %v178, %v539
      %v543 = vmul.f32 %v179, %v539
      %v544 = vmul.f32 %v180, %v539
      %v545 = vmul.f32 %v183, %v539
      %v546 = vmul.f32 %v184, %v539
      %v547 = vmul.f32 %v185, %v539
      %v548 = vmul.f32 %v186, %v539
      %v557 = vrot.slane %v541, 1
      %v558 = vrot.slane %v542, 1
      %v559 = vrot.slane %v543, 1
      %v560 = vrot.slane %v544, 1
      %v561 = vrot.slane %v545, 1
      %v562 = vrot.slane %v546, 1
      %v563 = vrot.slane %v547, 1
      %v564 = vrot.slane %v548, 1
      %v573 = vadd.f32 %v528, %v557
      %v574 = vadd.f32 %v529, %v558
      %v575 = vadd.f32 %v530, %v559
      %v576 = vadd.f32 %v531, %v560
      %v577 = vadd.f32 %v532, %v561
      %v578 = vadd.f32 %v533, %v562
      %v579 = vadd.f32 %v534, %v563
      %v580 = vadd.f32 %v535, %v564
      %s581 = scalar_lea.vmem %s1, 44
      %v582 = vld [vmem:[%s581] sm:$0xf]
      %v584 = vrot.slane %v582, 6
      %v586 = vmul.f32 %v177, %v584
      %v587 = vmul.f32 %v178, %v584
      %v588 = vmul.f32 %v179, %v584
      %v589 = vmul.f32 %v180, %v584
      %v590 = vmul.f32 %v183, %v584
      %v591 = vmul.f32 %v184, %v584
      %v592 = vmul.f32 %v185, %v584
      %v593 = vmul.f32 %v186, %v584
      %v602 = vrot.slane %v586, 2
      %v603 = vrot.slane %v587, 2
      %v604 = vrot.slane %v588, 2
      %v605 = vrot.slane %v589, 2
      %v606 = vrot.slane %v590, 2
      %v607 = vrot.slane %v591, 2
      %v608 = vrot.slane %v592, 2
      %v609 = vrot.slane %v593, 2
      %v618 = vadd.f32 %v573, %v602
      %v619 = vadd.f32 %v574, %v603
      %v620 = vadd.f32 %v575, %v604
      %v621 = vadd.f32 %v576, %v605
      %v622 = vadd.f32 %v577, %v606
      %v623 = vadd.f32 %v578, %v607
      %v624 = vadd.f32 %v579, %v608
      %v625 = vadd.f32 %v580, %v609
      %s626 = scalar_lea.vmem %s1, 48
      %v627 = vld [vmem:[%s626] sm:$0xf]
      %v628 = vmul.f32 %v178, %v627
      %v629 = vmul.f32 %v179, %v627
      %v630 = vmul.f32 %v180, %v627
      %v631 = vmul.f32 %v181, %v627
      %v632 = vmul.f32 %v184, %v627
      %v633 = vmul.f32 %v185, %v627
      %v634 = vmul.f32 %v186, %v627
      %v635 = vmul.f32 %v187, %v627
      %v636 = vadd.f32 %v618, %v628
      %v637 = vadd.f32 %v619, %v629
      %v638 = vadd.f32 %v620, %v630
      %v639 = vadd.f32 %v621, %v631
      %v640 = vadd.f32 %v622, %v632
      %v641 = vadd.f32 %v623, %v633
      %v642 = vadd.f32 %v624, %v634
      %v643 = vadd.f32 %v625, %v635
      %s644 = scalar_lea.vmem %s1, 52
      %v645 = vld [vmem:[%s644] sm:$0xf]
      %v647 = vrot.slane %v645, 7
      %v649 = vmul.f32 %v178, %v647
      %v650 = vmul.f32 %v179, %v647
      %v651 = vmul.f32 %v180, %v647
      %v652 = vmul.f32 %v181, %v647
      %v653 = vmul.f32 %v184, %v647
      %v654 = vmul.f32 %v185, %v647
      %v655 = vmul.f32 %v186, %v647
      %v656 = vmul.f32 %v187, %v647
      %v665 = vrot.slane %v649, 1
      %v666 = vrot.slane %v650, 1
      %v667 = vrot.slane %v651, 1
      %v668 = vrot.slane %v652, 1
      %v669 = vrot.slane %v653, 1
      %v670 = vrot.slane %v654, 1
      %v671 = vrot.slane %v655, 1
      %v672 = vrot.slane %v656, 1
      %v681 = vadd.f32 %v636, %v665
      %v682 = vadd.f32 %v637, %v666
      %v683 = vadd.f32 %v638, %v667
      %v684 = vadd.f32 %v639, %v668
      %v685 = vadd.f32 %v640, %v669
      %v686 = vadd.f32 %v641, %v670
      %v687 = vadd.f32 %v642, %v671
      %v688 = vadd.f32 %v643, %v672
      %s689 = scalar_lea.vmem %s1, 56
      %v690 = vld [vmem:[%s689] sm:$0xf]
      %v692 = vrot.slane %v690, 6
      %v694 = vmul.f32 %v178, %v692
      %v695 = vmul.f32 %v179, %v692
      %v696 = vmul.f32 %v180, %v692
      %v697 = vmul.f32 %v181, %v692
      %v698 = vmul.f32 %v184, %v692
      %v699 = vmul.f32 %v185, %v692
      %v700 = vmul.f32 %v186, %v692
      %v701 = vmul.f32 %v187, %v692
      %v710 = vrot.slane %v694, 2
      %v711 = vrot.slane %v695, 2
      %v712 = vrot.slane %v696, 2
      %v713 = vrot.slane %v697, 2
      %v714 = vrot.slane %v698, 2
      %v715 = vrot.slane %v699, 2
      %v716 = vrot.slane %v700, 2
      %v717 = vrot.slane %v701, 2
      %v726 = vadd.f32 %v681, %v710
      %v727 = vadd.f32 %v682, %v711
      %v728 = vadd.f32 %v683, %v712
      %v729 = vadd.f32 %v684, %v713
      %v730 = vadd.f32 %v685, %v714
      %v731 = vadd.f32 %v686, %v715
      %v732 = vadd.f32 %v687, %v716
      %v733 = vadd.f32 %v688, %v717
      %s734 = scalar_lea.vmem %s1, 60
      %v735 = vld [vmem:[%s734] sm:$0xf]
      %v736 = vmul.f32 %v179, %v735
      %v737 = vmul.f32 %v180, %v735
      %v738 = vmul.f32 %v181, %v735
      %v739 = vmul.f32 %v182, %v735
      %v740 = vmul.f32 %v185, %v735
      %v741 = vmul.f32 %v186, %v735
      %v742 = vmul.f32 %v187, %v735
      %v743 = vmul.f32 %v188, %v735
      %v744 = vadd.f32 %v726, %v736
      %v745 = vadd.f32 %v727, %v737
      %v746 = vadd.f32 %v728, %v738
      %v747 = vadd.f32 %v729, %v739
      %v748 = vadd.f32 %v730, %v740
      %v749 = vadd.f32 %v731, %v741
      %v750 = vadd.f32 %v732, %v742
      %v751 = vadd.f32 %v733, %v743
      %s752 = scalar_lea.vmem %s1, 64
      %v753 = vld [vmem:[%s752] sm:$0xf]
      %v755 = vrot.slane %v753, 7
      %v757 = vmul.f32 %v179, %v755
      %v758 = vmul.f32 %v180, %v755
      %v759 = vmul.f32 %v181, %v755
      %v760 = vmul.f32 %v182, %v755
      %v761 = vmul.f32 %v185, %v755
      %v762 = vmul.f32 %v186, %v755
      %v763 = vmul.f32 %v187, %v755
      %v764 = vmul.f32 %v188, %v755
      %v773 = vrot.slane %v757, 1
      %v774 = vrot.slane %v758, 1
      %v775 = vrot.slane %v759, 1
      %v776 = vrot.slane %v760, 1
      %v777 = vrot.slane %v761, 1
      %v778 = vrot.slane %v762, 1
      %v779 = vrot.slane %v763, 1
      %v780 = vrot.slane %v764, 1
      %v789 = vadd.f32 %v744, %v773
      %v790 = vadd.f32 %v745, %v774
      %v791 = vadd.f32 %v746, %v775
      %v792 = vadd.f32 %v747, %v776
      %v793 = vadd.f32 %v748, %v777
      %v794 = vadd.f32 %v749, %v778
      %v795 = vadd.f32 %v750, %v779
      %v796 = vadd.f32 %v751, %v780
      %s797 = scalar_lea.vmem %s1, 68
      %v798 = vld [vmem:[%s797] sm:$0xf]
      %v800 = vrot.slane %v798, 6
      %v802 = vmul.f32 %v179, %v800
      %v803 = vmul.f32 %v180, %v800
      %v804 = vmul.f32 %v181, %v800
      %v805 = vmul.f32 %v182, %v800
      %v806 = vmul.f32 %v185, %v800
      %v807 = vmul.f32 %v186, %v800
      %v808 = vmul.f32 %v187, %v800
      %v809 = vmul.f32 %v188, %v800
      %v818 = vrot.slane %v802, 2
      %v819 = vrot.slane %v803, 2
      %v820 = vrot.slane %v804, 2
      %v821 = vrot.slane %v805, 2
      %v822 = vrot.slane %v806, 2
      %v823 = vrot.slane %v807, 2
      %v824 = vrot.slane %v808, 2
      %v825 = vrot.slane %v809, 2
      %v834 = vadd.f32 %v789, %v818
      %v835 = vadd.f32 %v790, %v819
      %v836 = vadd.f32 %v791, %v820
      %v837 = vadd.f32 %v792, %v821
      %v838 = vadd.f32 %v793, %v822
      %v839 = vadd.f32 %v794, %v823
      %v840 = vadd.f32 %v795, %v824
      %v841 = vadd.f32 %v796, %v825
      %s842 = scalar_lea.vmem %s1, 72
      %v843 = vld [vmem:[%s842] sm:$0xf]
      %v844 = vmul.f32 %v183, %v843
      %v845 = vmul.f32 %v184, %v843
      %v846 = vmul.f32 %v185, %v843
      %v847 = vmul.f32 %v186, %v843
      %v848 = vmul.f32 %v189, %v843
      %v849 = vmul.f32 %v190, %v843
      %v850 = vmul.f32 %v191, %v843
      %v851 = vmul.f32 %v192, %v843
      %v852 = vadd.f32 %v834, %v844
      %v853 = vadd.f32 %v835, %v845
      %v854 = vadd.f32 %v836, %v846
      %v855 = vadd.f32 %v837, %v847
      %v856 = vadd.f32 %v838, %v848
      %v857 = vadd.f32 %v839, %v849
      %v858 = vadd.f32 %v840, %v850
      %v859 = vadd.f32 %v841, %v851
      %s860 = scalar_lea.vmem %s1, 76
      %v861 = vld [vmem:[%s860] sm:$0xf]
      %v863 = vrot.slane %v861, 7
      %v865 = vmul.f32 %v183, %v863
      %v866 = vmul.f32 %v184, %v863
      %v867 = vmul.f32 %v185, %v863
      %v868 = vmul.f32 %v186, %v863
      %v869 = vmul.f32 %v189, %v863
      %v870 = vmul.f32 %v190, %v863
      %v871 = vmul.f32 %v191, %v863
      %v872 = vmul.f32 %v192, %v863
      %v881 = vrot.slane %v865, 1
      %v882 = vrot.slane %v866, 1
      %v883 = vrot.slane %v867, 1
      %v884 = vrot.slane %v868, 1
      %v885 = vrot.slane %v869, 1
      %v886 = vrot.slane %v870, 1
      %v887 = vrot.slane %v871, 1
      %v888 = vrot.slane %v872, 1
      %v897 = vadd.f32 %v852, %v881
      %v898 = vadd.f32 %v853, %v882
      %v899 = vadd.f32 %v854, %v883
      %v900 = vadd.f32 %v855, %v884
      %v901 = vadd.f32 %v856, %v885
      %v902 = vadd.f32 %v857, %v886
      %v903 = vadd.f32 %v858, %v887
      %v904 = vadd.f32 %v859, %v888
      %s905 = scalar_lea.vmem %s1, 80
      %v906 = vld [vmem:[%s905] sm:$0xf]
      %v908 = vrot.slane %v906, 6
      %v910 = vmul.f32 %v183, %v908
      %v911 = vmul.f32 %v184, %v908
      %v912 = vmul.f32 %v185, %v908
      %v913 = vmul.f32 %v186, %v908
      %v914 = vmul.f32 %v189, %v908
      %v915 = vmul.f32 %v190, %v908
      %v916 = vmul.f32 %v191, %v908
      %v917 = vmul.f32 %v192, %v908
      %v926 = vrot.slane %v910, 2
      %v927 = vrot.slane %v911, 2
      %v928 = vrot.slane %v912, 2
      %v929 = vrot.slane %v913, 2
      %v930 = vrot.slane %v914, 2
      %v931 = vrot.slane %v915, 2
      %v932 = vrot.slane %v916, 2
      %v933 = vrot.slane %v917, 2
      %v942 = vadd.f32 %v897, %v926
      %v943 = vadd.f32 %v898, %v927
      %v944 = vadd.f32 %v899, %v928
      %v945 = vadd.f32 %v900, %v929
      %v946 = vadd.f32 %v901, %v930
      %v947 = vadd.f32 %v902, %v931
      %v948 = vadd.f32 %v903, %v932
      %v949 = vadd.f32 %v904, %v933
      %s950 = scalar_lea.vmem %s1, 84
      %v951 = vld [vmem:[%s950] sm:$0xf]
      %v952 = vmul.f32 %v184, %v951
      %v953 = vmul.f32 %v185, %v951
      %v954 = vmul.f32 %v186, %v951
      %v955 = vmul.f32 %v187, %v951
      %v956 = vmul.f32 %v190, %v951
      %v957 = vmul.f32 %v191, %v951
      %v958 = vmul.f32 %v192, %v951
      %v959 = vmul.f32 %v193, %v951
      %v960 = vadd.f32 %v942, %v952
      %v961 = vadd.f32 %v943, %v953
      %v962 = vadd.f32 %v944, %v954
      %v963 = vadd.f32 %v945, %v955
      %v964 = vadd.f32 %v946, %v956
      %v965 = vadd.f32 %v947, %v957
      %v966 = vadd.f32 %v948, %v958
      %v967 = vadd.f32 %v949, %v959
      %s968 = scalar_lea.vmem %s1, 88
      %v969 = vld [vmem:[%s968] sm:$0xf]
      %v971 = vrot.slane %v969, 7
      %v973 = vmul.f32 %v184, %v971
      %v974 = vmul.f32 %v185, %v971
      %v975 = vmul.f32 %v186, %v971
      %v976 = vmul.f32 %v187, %v971
      %v977 = vmul.f32 %v190, %v971
      %v978 = vmul.f32 %v191, %v971
      %v979 = vmul.f32 %v192, %v971
      %v980 = vmul.f32 %v193, %v971
      %v989 = vrot.slane %v973, 1
      %v990 = vrot.slane %v974, 1
      %v991 = vrot.slane %v975, 1
      %v992 = vrot.slane %v976, 1
      %v993 = vrot.slane %v977, 1
      %v994 = vrot.slane %v978, 1
      %v995 = vrot.slane %v979, 1
      %v996 = vrot.slane %v980, 1
      %v1005 = vadd.f32 %v960, %v989
      %v1006 = vadd.f32 %v961, %v990
      %v1007 = vadd.f32 %v962, %v991
      %v1008 = vadd.f32 %v963, %v992
      %v1009 = vadd.f32 %v964, %v993
      %v1010 = vadd.f32 %v965, %v994
      %v1011 = vadd.f32 %v966, %v995
      %v1012 = vadd.f32 %v967, %v996
      %s1013 = scalar_lea.vmem %s1, 92
      %v1014 = vld [vmem:[%s1013] sm:$0xf]
      %v1016 = vrot.slane %v1014, 6
      %v1018 = vmul.f32 %v184, %v1016
      %v1019 = vmul.f32 %v185, %v1016
      %v1020 = vmul.f32 %v186, %v1016
      %v1021 = vmul.f32 %v187, %v1016
      %v1022 = vmul.f32 %v190, %v1016
      %v1023 = vmul.f32 %v191, %v1016
      %v1024 = vmul.f32 %v192, %v1016
      %v1025 = vmul.f32 %v193, %v1016
      %v1034 = vrot.slane %v1018, 2
      %v1035 = vrot.slane %v1019, 2
      %v1036 = vrot.slane %v1020, 2
      %v1037 = vrot.slane %v1021, 2
      %v1038 = vrot.slane %v1022, 2
      %v1039 = vrot.slane %v1023, 2
      %v1040 = vrot.slane %v1024, 2
      %v1041 = vrot.slane %v1025, 2
      %v1050 = vadd.f32 %v1005, %v1034
      %v1051 = vadd.f32 %v1006, %v1035
      %v1052 = vadd.f32 %v1007, %v1036
      %v1053 = vadd.f32 %v1008, %v1037
      %v1054 = vadd.f32 %v1009, %v1038
      %v1055 = vadd.f32 %v1010, %v1039
      %v1056 = vadd.f32 %v1011, %v1040
      %v1057 = vadd.f32 %v1012, %v1041
      %s1058 = scalar_lea.vmem %s1, 96
      %v1059 = vld [vmem:[%s1058] sm:$0xf]
      %v1060 = vmul.f32 %v185, %v1059
      %v1061 = vmul.f32 %v186, %v1059
      %v1062 = vmul.f32 %v187, %v1059
      %v1063 = vmul.f32 %v188, %v1059
      %v1064 = vmul.f32 %v191, %v1059
      %v1065 = vmul.f32 %v192, %v1059
      %v1066 = vmul.f32 %v193, %v1059
      %v1067 = vmul.f32 %v194, %v1059
      %v1068 = vadd.f32 %v1050, %v1060
      %v1069 = vadd.f32 %v1051, %v1061
      %v1070 = vadd.f32 %v1052, %v1062
      %v1071 = vadd.f32 %v1053, %v1063
      %v1072 = vadd.f32 %v1054, %v1064
      %v1073 = vadd.f32 %v1055, %v1065
      %v1074 = vadd.f32 %v1056, %v1066
      %v1075 = vadd.f32 %v1057, %v1067
      %s1076 = scalar_lea.vmem %s1, 100
      %v1077 = vld [vmem:[%s1076] sm:$0xf]
      %v1079 = vrot.slane %v1077, 7
      %v1081 = vmul.f32 %v185, %v1079
      %v1082 = vmul.f32 %v186, %v1079
      %v1083 = vmul.f32 %v187, %v1079
      %v1084 = vmul.f32 %v188, %v1079
      %v1085 = vmul.f32 %v191, %v1079
      %v1086 = vmul.f32 %v192, %v1079
      %v1087 = vmul.f32 %v193, %v1079
      %v1088 = vmul.f32 %v194, %v1079
      %v1097 = vrot.slane %v1081, 1
      %v1098 = vrot.slane %v1082, 1
      %v1099 = vrot.slane %v1083, 1
      %v1100 = vrot.slane %v1084, 1
      %v1101 = vrot.slane %v1085, 1
      %v1102 = vrot.slane %v1086, 1
      %v1103 = vrot.slane %v1087, 1
      %v1104 = vrot.slane %v1088, 1
      %v1113 = vadd.f32 %v1068, %v1097
      %v1114 = vadd.f32 %v1069, %v1098
      %v1115 = vadd.f32 %v1070, %v1099
      %v1116 = vadd.f32 %v1071, %v1100
      %v1117 = vadd.f32 %v1072, %v1101
      %v1118 = vadd.f32 %v1073, %v1102
      %v1119 = vadd.f32 %v1074, %v1103
      %v1120 = vadd.f32 %v1075, %v1104
      %s1121 = scalar_lea.vmem %s1, 104
      %v1122 = vld [vmem:[%s1121] sm:$0xf]
      %v1124 = vrot.slane %v1122, 6
      %v1126 = vmul.f32 %v185, %v1124
      %v1127 = vmul.f32 %v186, %v1124
      %v1128 = vmul.f32 %v187, %v1124
      %v1129 = vmul.f32 %v188, %v1124
      %v1130 = vmul.f32 %v191, %v1124
      %v1131 = vmul.f32 %v192, %v1124
      %v1132 = vmul.f32 %v193, %v1124
      %v1133 = vmul.f32 %v194, %v1124
      %v1142 = vrot.slane %v1126, 2
      %v1143 = vrot.slane %v1127, 2
      %v1144 = vrot.slane %v1128, 2
      %v1145 = vrot.slane %v1129, 2
      %v1146 = vrot.slane %v1130, 2
      %v1147 = vrot.slane %v1131, 2
      %v1148 = vrot.slane %v1132, 2
      %v1149 = vrot.slane %v1133, 2
      %v1158 = vadd.f32 %v1113, %v1142
      %v1159 = vadd.f32 %v1114, %v1143
      %v1160 = vadd.f32 %v1115, %v1144
      %v1161 = vadd.f32 %v1116, %v1145
      %v1162 = vadd.f32 %v1117, %v1146
      %v1163 = vadd.f32 %v1118, %v1147
      %v1164 = vadd.f32 %v1119, %v1148
      %v1165 = vadd.f32 %v1120, %v1149
      %v1166 = vld [vmem:[%s2] sm:$0x1]
      %v1168 = vperm.slane %v1166, 0
      %v1170 = vadd.f32 %v1158, %v1168
      %v1171 = vadd.f32 %v1159, %v1168
      %v1172 = vadd.f32 %v1160, %v1168
      %v1173 = vadd.f32 %v1161, %v1168
      %v1174 = vadd.f32 %v1162, %v1168
      %v1175 = vadd.f32 %v1163, %v1168
      %v1176 = vadd.f32 %v1164, %v1168
      %v1177 = vadd.f32 %v1165, %v1168
      %vm1178 = vcmask 60416
      %1179 = vst.msk [vmem:[%s170] sm:$0xf] %vm1178, %v1170
      %1180 = vst.msk [vmem:[%s170 + $0x4] sm:$0xf] %vm1178, %v1171
      %1181 = vst.msk [vmem:[%s170 + $0x8] sm:$0xf] %vm1178, %v1172
      %1182 = vst.msk [vmem:[%s170 + $0xc] sm:$0xf] %vm1178, %v1173
      %1183 = vst.msk [vmem:[%s170 + $0x10] sm:$0xf] %vm1178, %v1174
      %1184 = vst.msk [vmem:[%s170 + $0x14] sm:$0xf] %vm1178, %v1175
      %1185 = vst.msk [vmem:[%s170 + $0x18] sm:$0xf] %vm1178, %v1176
      %1186 = vst.msk [vmem:[%s170 + $0x1c] sm:$0xf] %vm1178, %v1177
      %p1187 = scmp.lt.s32.totalorder %s14, 1
      %s1188 = scalar_select %p1187, %s14, 1
      %s1189 = smul.addr %s1188, 8
      %s1190 = smul.addr %s1189, 4
      %s1191 = scalar_lea.vmem %s3, %s1190
      // Predicated region
      $region33: #{residual_attention_block.12} parent=31 // pred_check
        %p1192 = pneg %p100
      $region34: #{residual_attention_block.12} parent=31 // pred_check_branch
        %1194 = sbr.rel (%p1192) target = $region36
      $region35: #{residual_attention_block.12} parent=31 // pred_region
        _
      $region36: #{residual_attention_block.12} parent=31 // pred_fallthru
        _
    $region32: #{residual_attention_block.12} parent=5 // pred_fallthru
      _
    %p1195 = scmp.le.s32.totalorder 2, %s9
    // Predicated region
    $region37: #{residual_attention_block.12} parent=5 // pred_check
      %p1196 = pneg %p1195
    $region38: #{residual_attention_block.12} parent=5 // pred_check_branch
      %1198 = sbr.rel (%p1196) target = $region40
    $region39: #{residual_attention_block.12} parent=5 // pred_region
      %s1199 = ssub.s32 %s9, 2
      // Predicated region
      $region41: #{residual_attention_block.12} parent=39 // pred_check
        %p1200 = pneg %p106
      $region42: #{residual_attention_block.12} parent=39 // pred_check_branch
        %1202 = sbr.rel (%p1200) target = $region44
      $region43: #{residual_attention_block.12} parent=39 // pred_region
        %p1203 = scmp.lt.s32.totalorder %s15, 1
        %s1204 = scalar_select %p1203, %s15, 1
        %s1205 = smul.addr %s1204, 8
        %s1206 = smul.addr %s1205, 4
        %s1207 = scalar_lea.vmem %s3, %s1206
      $region44: #{residual_attention_block.12} parent=39 // pred_fallthru
        _
    $region40: #{residual_attention_block.12} parent=5 // pred_fallthru
      _
  $region6: #{residual_attention_block.12} parent=0 // loop_footer
    %s13 = sadd.s32 1, %s9
  $region7: #{residual_attention_block.12} parent=0 // loop_footer_branch
    %8 = sbr.rel target = $region3
  $region8: #{residual_attention_block.12} parent=0 // loop_exit
    _

// kernel: residual_attention_block.20
$region0: #{residual_attention_block.20}
  #allocation0 [shape = 'u32[]', space=smem, size = 0x4, offset = 0x4, fixed_abs, tag = 'smem constant byte address 0x4 - core index']
  #allocation1 [shape = 'u32[72,128]{1,0:T(1,128)}', space=vmem, size = 0x9000, scoped, tag = 'internal scratch']
  %s0 = inlined_call_operand.vmem [shape: f32[68,32], index: 0, kind: input, shape index: {}]
  %s1 = inlined_call_operand.vmem [shape: f32[1,32], index: 1, kind: input, shape index: {}]
  %s2 = inlined_call_operand.vmem [shape: f32[1,32], index: 2, kind: input, shape index: {}]
  %s3 = inlined_call_operand.vmem [shape: f32[32,128], index: 3, kind: input, shape index: {}]
  %s4 = inlined_call_operand.vmem [shape: f32[1,128], index: 4, kind: input, shape index: {}]
  %s5 = inlined_call_operand.vmem [shape: f32[68,128], index: 5, kind: output, shape index: {}]
  %s6 = sld [smem:[#allocation0]]
  $region30: #{residual_attention_block.20} parent=0
    _
  %s8 = ssub.s32 1, %s6
  %s9 = scalar_select 0, %s8, %s6
  // Predicated region
  $region2: #{residual_attention_block.20} parent=0 // pred_check
    _
  $region3: #{residual_attention_block.20} parent=0 // pred_check_branch
    %11 = sbr.rel (0) target = $region5
  $region4: #{residual_attention_block.20} parent=0 // pred_region
    _
  $region5: #{residual_attention_block.20} parent=0 // pred_fallthru
    _
  // Predicated region
  $region6: #{residual_attention_block.20} parent=0 // pred_check
    _
  $region7: #{residual_attention_block.20} parent=0 // pred_check_branch
    %13 = sbr.rel (0) target = $region9
  $region8: #{residual_attention_block.20} parent=0 // pred_region
    _
  $region9: #{residual_attention_block.20} parent=0 // pred_fallthru
    _
  // Predicated region
  $region10: #{residual_attention_block.20} parent=0 // pred_check
    _
  $region11: #{residual_attention_block.20} parent=0 // pred_check_branch
    %15 = sbr.rel (0) target = $region13
  $region12: #{residual_attention_block.20} parent=0 // pred_region
    _
  $region13: #{residual_attention_block.20} parent=0 // pred_fallthru
    _
  // Predicated region
  $region14: #{residual_attention_block.20} parent=0 // pred_check
    _
  $region15: #{residual_attention_block.20} parent=0 // pred_check_branch
    %17 = sbr.rel (0) target = $region17
  $region16: #{residual_attention_block.20} parent=0 // pred_region
    _
  $region17: #{residual_attention_block.20} parent=0 // pred_fallthru
    _
  // Predicated region
  $region18: #{residual_attention_block.20} parent=0 // pred_check
    _
  $region19: #{residual_attention_block.20} parent=0 // pred_check_branch
    %19 = sbr.rel (0) target = $region21
  $region20: #{residual_attention_block.20} parent=0 // pred_region
    _
  $region21: #{residual_attention_block.20} parent=0 // pred_fallthru
    _
  %v20 = vld [vmem:[%s0] sm:$0xff]
  %v21 = vld [vmem:[%s0 + $0x8] sm:$0xff]
  %v22 = vld [vmem:[%s0 + $0x10] sm:$0xff]
  %v23 = vld [vmem:[%s0 + $0x18] sm:$0xff]
  %v24 = vld [vmem:[%s0 + $0x20] sm:$0xff]
  %v25 = vld [vmem:[%s0 + $0x28] sm:$0xff]
  %v26 = vld [vmem:[%s0 + $0x30] sm:$0xff]
  %v27 = vld [vmem:[%s0 + $0x38] sm:$0xff]
  %v28 = vld [vmem:[%s0 + $0x40] sm:$0xf]
  %vm29 = vcmask 261120
  %v30 = vsel %vm29, %v20, 0.0
  %31 = vadd.xlane.f32.xlu0 %v30
  %v32 = vpop.xlane.xlu0 %31
  %v33 = vsel %vm29, %v21, 0.0
  %34 = vadd.xlane.f32.xlu0 %v33
  %v35 = vpop.xlane.xlu0 %34
  %v36 = vsel %vm29, %v22, 0.0
  %37 = vadd.xlane.f32.xlu0 %v36
  %v38 = vpop.xlane.xlu0 %37
  %v39 = vsel %vm29, %v23, 0.0
  %40 = vadd.xlane.f32.xlu0 %v39
  %v41 = vpop.xlane.xlu0 %40
  %v42 = vsel %vm29, %v24, 0.0
  %43 = vadd.xlane.f32.xlu0 %v42
  %v44 = vpop.xlane.xlu0 %43
  %v45 = vsel %vm29, %v25, 0.0
  %46 = vadd.xlane.f32.xlu0 %v45
  %v47 = vpop.xlane.xlu0 %46
  %v48 = vsel %vm29, %v26, 0.0
  %49 = vadd.xlane.f32.xlu0 %v48
  %v50 = vpop.xlane.xlu0 %49
  %v51 = vsel %vm29, %v27, 0.0
  %52 = vadd.xlane.f32.xlu0 %v51
  %v53 = vpop.xlane.xlu0 %52
  %vm54 = vcmask 257024
  %v55 = vsel %vm54, %v28, 0.0
  %56 = vadd.xlane.f32.xlu0 %v55
  %v57 = vpop.xlane.xlu0 %56
  %v58 = vrcp.pop 32.0
  %v59 = vmul.f32 32.0, %v58
  %v60 = vsub.f32 1.0, %v59
  %v61 = vmul.f32 %v58, %v60
  %v62 = vadd.f32 %v58, %v61
  %vm63 = vweird.f32 %v58
  %v64 = vsel %vm63, %v58, %v62
  %v65 = vmul.f32 %v32, %v64
  %v66 = vmul.f32 %v35, %v64
  %v67 = vmul.f32 %v38, %v64
  %v68 = vmul.f32 %v41, %v64
  %v69 = vmul.f32 %v44, %v64
  %v70 = vmul.f32 %v47, %v64
  %v71 = vmul.f32 %v50, %v64
  %v72 = vmul.f32 %v53, %v64
  %v73 = vmul.f32 %v57, %v64
  %v74 = vsub.f32 %v20, %v65
  %v75 = vsub.f32 %v21, %v66
  %v76 = vsub.f32 %v22, %v67
  %v77 = vsub.f32 %v23, %v68
  %v78 = vsub.f32 %v24, %v69
  %v79 = vsub.f32 %v25, %v70
  %v80 = vsub.f32 %v26, %v71
  %v81 = vsub.f32 %v27, %v72
  %v82 = vsub.f32 %v28, %v73
  %v83 = vmul.f32 %v74, %v74
  %v84 = vmul.f32 %v75, %v75
  %v85 = vmul.f32 %v76, %v76
  %v86 = vmul.f32 %v77, %v77
  %v87 = vmul.f32 %v78, %v78
  %v88 = vmul.f32 %v79, %v79
  %v89 = vmul.f32 %v80, %v80
  %v90 = vmul.f32 %v81, %v81
  %v91 = vmul.f32 %v82, %v82
  %v92 = vsel %vm29, %v83, 0.0
  %93 = vadd.xlane.f32.xlu0 %v92
  %v94 = vpop.xlane.xlu0 %93
  %v95 = vsel %vm29, %v84, 0.0
  %96 = vadd.xlane.f32.xlu0 %v95
  %v97 = vpop.xlane.xlu0 %96
  %v98 = vsel %vm29, %v85, 0.0
  %99 = vadd.xlane.f32.xlu0 %v98
  %v100 = vpop.xlane.xlu0 %99
  %v101 = vsel %vm29, %v86, 0.0
  %102 = vadd.xlane.f32.xlu0 %v101
  %v103 = vpop.xlane.xlu0 %102
  %v104 = vsel %vm29, %v87, 0.0
  %105 = vadd.xlane.f32.xlu0 %v104
  %v106 = vpop.xlane.xlu0 %105
  %v107 = vsel %vm29, %v88, 0.0
  %108 = vadd.xlane.f32.xlu0 %v107
  %v109 = vpop.xlane.xlu0 %108
  %v110 = vsel %vm29, %v89, 0.0
  %111 = vadd.xlane.f32.xlu0 %v110
  %v112 = vpop.xlane.xlu0 %111
  %v113 = vsel %vm29, %v90, 0.0
  %114 = vadd.xlane.f32.xlu0 %v113
  %v115 = vpop.xlane.xlu0 %114
  %v116 = vsel %vm54, %v91, 0.0
  %117 = vadd.xlane.f32.xlu0 %v116
  %v118 = vpop.xlane.xlu0 %117
  %v119 = vmul.f32 %v94, %v64
  %v120 = vmul.f32 %v97, %v64
  %v121 = vmul.f32 %v100, %v64
  %v122 = vmul.f32 %v103, %v64
  %v123 = vmul.f32 %v106, %v64
  %v124 = vmul.f32 %v109, %v64
  %v125 = vmul.f32 %v112, %v64
  %v126 = vmul.f32 %v115, %v64
  %v127 = vmul.f32 %v118, %v64
  %v128 = vadd.f32 %v119, 1e-05
  %v129 = vadd.f32 %v120, 1e-05
  %v130 = vadd.f32 %v121, 1e-05
  %v131 = vadd.f32 %v122, 1e-05
  %v132 = vadd.f32 %v123, 1e-05
  %v133 = vadd.f32 %v124, 1e-05
  %v134 = vadd.f32 %v125, 1e-05
  %v135 = vadd.f32 %v126, 1e-05
  %v136 = vadd.f32 %v127, 1e-05
  %v137 = vrsqrt.pop %v128
  %v138 = vmul.f32 %v137, %v128
  %v139 = vmul.f32 %v138, %v137
  %v140 = vmul.f32 0.5, %v139
  %v141 = vsub.f32 1.5, %v140
  %v142 = vmul.f32 %v137, %v141
  %vm143 = vweird.f32 %v128
  %vm144 = vweird.f32 %v137
  %vm145 = vmor %vm143, %vm144
  %v146 = vsel %vm145, %v137, %v142
  %v147 = vrsqrt.pop %v129
  %v148 = vmul.f32 %v147, %v129
  %v149 = vmul.f32 %v148, %v147
  %v150 = vmul.f32 0.5, %v149
  %v151 = vsub.f32 1.5, %v150
  %v152 = vmul.f32 %v147, %v151
  %vm153 = vweird.f32 %v129
  %vm154 = vweird.f32 %v147
  %vm155 = vmor %vm153, %vm154
  %v156 = vsel %vm155, %v147, %v152
  %v157 = vrsqrt.pop %v130
  %v158 = vmul.f32 %v157, %v130
  %v159 = vmul.f32 %v158, %v157
  %v160 = vmul.f32 0.5, %v159
  %v161 = vsub.f32 1.5, %v160
  %v162 = vmul.f32 %v157, %v161
  %vm163 = vweird.f32 %v130
  %vm164 = vweird.f32 %v157
  %vm165 = vmor %vm163, %vm164
  %v166 = vsel %vm165, %v157, %v162
  %v167 = vrsqrt.pop %v131
  %v168 = vmul.f32 %v167, %v131
  %v169 = vmul.f32 %v168, %v167
  %v170 = vmul.f32 0.5, %v169
  %v171 = vsub.f32 1.5, %v170
  %v172 = vmul.f32 %v167, %v171
  %vm173 = vweird.f32 %v131
  %vm174 = vweird.f32 %v167
  %vm175 = vmor %vm173, %vm174
  %v176 = vsel %vm175, %v167, %v172
  %v177 = vrsqrt.pop %v132
  %v178 = vmul.f32 %v177, %v132
  %v179 = vmul.f32 %v178, %v177
  %v180 = vmul.f32 0.5, %v179
  %v181 = vsub.f32 1.5, %v180
  %v182 = vmul.f32 %v177, %v181
  %vm183 = vweird.f32 %v132
  %vm184 = vweird.f32 %v177
  %vm185 = vmor %vm183, %vm184
  %v186 = vsel %vm185, %v177, %v182
  %v187 = vrsqrt.pop %v133
  %v188 = vmul.f32 %v187, %v133
  %v189 = vmul.f32 %v188, %v187
  %v190 = vmul.f32 0.5, %v189
  %v191 = vsub.f32 1.5, %v190
  %v192 = vmul.f32 %v187, %v191
  %vm193 = vweird.f32 %v133
  %vm194 = vweird.f32 %v187
  %vm195 = vmor %vm193, %vm194
  %v196 = vsel %vm195, %v187, %v192
  %v197 = vrsqrt.pop %v134
  %v198 = vmul.f32 %v197, %v134
  %v199 = vmul.f32 %v198, %v197
  %v200 = vmul.f32 0.5, %v199
  %v201 = vsub.f32 1.5, %v200
  %v202 = vmul.f32 %v197, %v201
  %vm203 = vweird.f32 %v134
  %vm204 = vweird.f32 %v197
  %vm205 = vmor %vm203, %vm204
  %v206 = vsel %vm205, %v197, %v202
  %v207 = vrsqrt.pop %v135
  %v208 = vmul.f32 %v207, %v135
  %v209 = vmul.f32 %v208, %v207
  %v210 = vmul.f32 0.5, %v209
  %v211 = vsub.f32 1.5, %v210
  %v212 = vmul.f32 %v207, %v211
  %vm213 = vweird.f32 %v135
  %vm214 = vweird.f32 %v207
  %vm215 = vmor %vm213, %vm214
  %v216 = vsel %vm215, %v207, %v212
  %v217 = vrsqrt.pop %v136
  %v218 = vmul.f32 %v217, %v136
  %v219 = vmul.f32 %v218, %v217
  %v220 = vmul.f32 0.5, %v219
  %v221 = vsub.f32 1.5, %v220
  %v222 = vmul.f32 %v217, %v221
  %vm223 = vweird.f32 %v136
  %vm224 = vweird.f32 %v217
  %vm225 = vmor %vm223, %vm224
  %v226 = vsel %vm225, %v217, %v222
  %v227 = vmul.f32 %v74, %v146
  %v228 = vmul.f32 %v75, %v156
  %v229 = vmul.f32 %v76, %v166
  %v230 = vmul.f32 %v77, %v176
  %v231 = vmul.f32 %v78, %v186
  %v232 = vmul.f32 %v79, %v196
  %v233 = vmul.f32 %v80, %v206
  %v234 = vmul.f32 %v81, %v216
  %v235 = vmul.f32 %v82, %v226
  %v236 = vld [vmem:[%s1] sm:$0x1]
  %v238 = vperm.slane %v236, 0
  %v240 = vmul.f32 %v227, %v238
  %v241 = vmul.f32 %v228, %v238
  %v242 = vmul.f32 %v229, %v238
  %v243 = vmul.f32 %v230, %v238
  %v244 = vmul.f32 %v231, %v238
  %v245 = vmul.f32 %v232, %v238
  %v246 = vmul.f32 %v233, %v238
  %v247 = vmul.f32 %v234, %v238
  %v248 = vmul.f32 %v235, %v238
  %v249 = vld [vmem:[%s2] sm:$0x1]
  %v251 = vperm.slane %v249, 0
  %v253 = vadd.f32 %v240, %v251
  %v254 = vadd.f32 %v241, %v251
  %v255 = vadd.f32 %v242, %v251
  %v256 = vadd.f32 %v243, %v251
  %v257 = vadd.f32 %v244, %v251
  %v258 = vadd.f32 %v245, %v251
  %v259 = vadd.f32 %v246, %v251
  %v260 = vadd.f32 %v247, %v251
  %v261 = vadd.f32 %v248, %v251
  %v262 = vld [vmem:[%s3] sm:$0xff]
  %v263 = vld [vmem:[%s3 + $0x8] sm:$0xff]
  %v264 = vld [vmem:[%s3 + $0x10] sm:$0xff]
  %v265 = vld [vmem:[%s3 + $0x18] sm:$0xff]
  %v266 = vld [vmem:[%s4] sm:$0x1]
  %v268 = vperm.slane %v266, 0
  %v271 = vsel %vm29, %v253, 0
  %v274 = vsel %vm29, %v254, 0
  %v277 = vsel %vm29, %v255, 0
  %v280 = vsel %vm29, %v256, 0
  %v283 = vsel %vm29, %v257, 0
  %v286 = vsel %vm29, %v258, 0
  %v289 = vsel %vm29, %v259, 0
  %v292 = vsel %vm29, %v260, 0
  %v295 = vsel %vm29, %v261, 0
  %297 = vmatpush.msra.mxu0 0.0
  %298 = vmatpush.msra.mxu0 0.0
  %299 = vmatpush.msra.mxu0 0.0
  %300 = vmatpush.msra.mxu0 0.0
  %301 = vmatpush.msra.mxu0 0.0
  %302 = vmatpush.msra.mxu0 0.0
  %303 = vmatpush.msra.mxu0 0.0
  %304 = vmatpush.msra.mxu0 0.0
  %305 = vmatpush.msra.mxu0 0.0
  %306 = vmatpush.msra.mxu0 0.0
  %307 = vmatpush.msra.mxu0 0.0
  %308 = vmatpush.msra.mxu0 0.0
  %309 = vmatpush.msra.mxu0 %v265
  %310 = vmatpush.msra.mxu0 %v264
  %311 = vmatpush.msra.mxu0 %v263
  %312 = vmatpush.msra.mxu0 %v262
  %313 = vmatmul.f32.gmra.mxu0 %v271
  %v314 = vpop.f32.mrf.mxu0
  %v315 = vadd.f32 %v268, %v314
  %316 = vmatmul.f32.gmra.mxu0 %v274
  %v317 = vpop.f32.mrf.mxu0
  %v318 = vadd.f32 %v268, %v317
  %319 = vmatmul.f32.gmra.mxu0 %v277
  %v320 = vpop.f32.mrf.mxu0
  %v321 = vadd.f32 %v268, %v320
  %322 = vmatmul.f32.gmra.mxu0 %v280
  %v323 = vpop.f32.mrf.mxu0
  %v324 = vadd.f32 %v268, %v323
  %325 = vmatmul.f32.gmra.mxu0 %v283
  %v326 = vpop.f32.mrf.mxu0
  %v327 = vadd.f32 %v268, %v326
  %328 = vmatmul.f32.gmra.mxu0 %v286
  %v329 = vpop.f32.mrf.mxu0
  %v330 = vadd.f32 %v268, %v329
  %331 = vmatmul.f32.gmra.mxu0 %v289
  %v332 = vpop.f32.mrf.mxu0
  %v333 = vadd.f32 %v268, %v332
  %334 = vmatmul.f32.gmra.mxu0 %v292
  %v335 = vpop.f32.mrf.mxu0
  %v336 = vadd.f32 %v268, %v335
  %337 = vmatmul.f32.gmra.mxu0 %v295
  %v338 = vpop.f32.mrf.mxu0
  %v339 = vadd.f32 %v268, %v338
  %340 = vdwg.mxu0
  %v341 = vmul.f32 %v315, 1.702
  %v342 = vmul.f32 %v318, 1.702
  %v343 = vmul.f32 %v321, 1.702
  %v344 = vmul.f32 %v324, 1.702
  %v345 = vmul.f32 %v327, 1.702
  %v346 = vmul.f32 %v330, 1.702
  %v347 = vmul.f32 %v333, 1.702
  %v348 = vmul.f32 %v336, 1.702
  %v349 = vmul.f32 %v339, 1.702
  %v350 = vxor.u32 %v341, 2147483648
  %v351 = vxor.u32 %v342, 2147483648
  %v352 = vxor.u32 %v343, 2147483648
  %v353 = vxor.u32 %v344, 2147483648
  %v354 = vxor.u32 %v345, 2147483648
  %v355 = vxor.u32 %v346, 2147483648
  %v356 = vxor.u32 %v347, 2147483648
  %v357 = vxor.u32 %v348, 2147483648
  %v358 = vxor.u32 %v349, 2147483648
  %v359 = vmul.f32 %v350, 1.442695
  %v360 = vpow.pop %v359
  %v361 = vmul.f32 %v351, 1.442695
  %v362 = vpow.pop %v361
  %v363 = vmul.f32 %v352, 1.442695
  %v364 = vpow.pop %v363
  %v365 = vmul.f32 %v353, 1.442695
  %v366 = vpow.pop %v365
  %v367 = vmul.f32 %v354, 1.442695
  %v368 = vpow.pop %v367
  %v369 = vmul.f32 %v355, 1.442695
  %v370 = vpow.pop %v369
  %v371 = vmul.f32 %v356, 1.442695
  %v372 = vpow.pop %v371
  %v373 = vmul.f32 %v357, 1.442695
  %v374 = vpow.pop %v373
  %v375 = vmul.f32 %v358, 1.442695
  %v376 = vpow.pop %v375
  %v377 = vadd.f32 %v360, 1.0
  %v378 = vadd.f32 %v362, 1.0
  %v379 = vadd.f32 %v364, 1.0
  %v380 = vadd.f32 %v366, 1.0
  %v381 = vadd.f32 %v368, 1.0
  %v382 = vadd.f32 %v370, 1.0
  %v383 = vadd.f32 %v372, 1.0
  %v384 = vadd.f32 %v374, 1.0
  %v385 = vadd.f32 %v376, 1.0
  %v386 = vrcp.pop %v377
  %v387 = vmul.f32 %v377, %v386
  %v388 = vsub.f32 1.0, %v387
  %v389 = vmul.f32 %v386, %v388
  %v390 = vadd.f32 %v386, %v389
  %vm391 = vweird.f32 %v377
  %vm392 = vweird.f32 %v386
  %vm393 = vmor %vm391, %vm392
  %v394 = vsel %vm393, %v386, %v390
  %v395 = vand.u32 2147483647, %v377
  %vm396 = vcmp.eq.f32.partialorder %v395, 8.507059e+37
  %v397 = vand.u32 %v377, 2147483648
  %v398 = vor.u32 1.1754944e-38, %v397
  %v399 = vsel %vm396, %v398, %v394
  %v400 = vmul.f32 1.0, %v399
  %v401 = vrcp.pop %v378
  %v402 = vmul.f32 %v378, %v401
  %v403 = vsub.f32 1.0, %v402
  %v404 = vmul.f32 %v401, %v403
  %v405 = vadd.f32 %v401, %v404
  %vm406 = vweird.f32 %v378
  %vm407 = vweird.f32 %v401
  %vm408 = vmor %vm406, %vm407
  %v409 = vsel %vm408, %v401, %v405
  %v410 = vand.u32 2147483647, %v378
  %vm411 = vcmp.eq.f32.partialorder %v410, 8.507059e+37
  %v412 = vand.u32 %v378, 2147483648
  %v413 = vor.u32 1.1754944e-38, %v412
  %v414 = vsel %vm411, %v413, %v409
  %v415 = vmul.f32 1.0, %v414
  %v416 = vrcp.pop %v379
  %v417 = vmul.f32 %v379, %v416
  %v418 = vsub.f32 1.0, %v417
  %v419 = vmul.f32 %v416, %v418
  %v420 = vadd.f32 %v416, %v419
  %vm421 = vweird.f32 %v379
  %vm422 = vweird.f32 %v416
  %vm423 = vmor %vm421, %vm422
  %v424 = vsel %vm423, %v416, %v420
  %v425 = vand.u32 2147483647, %v379
  %vm426 = vcmp.eq.f32.partialorder %v425, 8.507059e+37
  %v427 = vand.u32 %v379, 2147483648
  %v428 = vor.u32 1.1754944e-38, %v427
  %v429 = vsel %vm426, %v428, %v424
  %v430 = vmul.f32 1.0, %v429
  %v431 = vrcp.pop %v380
  %v432 = vmul.f32 %v380, %v431
  %v433 = vsub.f32 1.0, %v432
  %v434 = vmul.f32 %v431, %v433
  %v435 = vadd.f32 %v431, %v434
  %vm436 = vweird.f32 %v380
  %vm437 = vweird.f32 %v431
  %vm438 = vmor %vm436, %vm437
  %v439 = vsel %vm438, %v431, %v435
  %v440 = vand.u32 2147483647, %v380
  %vm441 = vcmp.eq.f32.partialorder %v440, 8.507059e+37
  %v442 = vand.u32 %v380, 2147483648
  %v443 = vor.u32 1.1754944e-38, %v442
  %v444 = vsel %vm441, %v443, %v439
  %v445 = vmul.f32 1.0, %v444
  %v446 = vrcp.pop %v381
  %v447 = vmul.f32 %v381, %v446
  %v448 = vsub.f32 1.0, %v447
  %v449 = vmul.f32 %v446, %v448
  %v450 = vadd.f32 %v446, %v449
  %vm451 = vweird.f32 %v381
  %vm452 = vweird.f32 %v446
  %vm453 = vmor %vm451, %vm452
  %v454 = vsel %vm453, %v446, %v450
  %v455 = vand.u32 2147483647, %v381
  %vm456 = vcmp.eq.f32.partialorder %v455, 8.507059e+37
  %v457 = vand.u32 %v381, 2147483648
  %v458 = vor.u32 1.1754944e-38, %v457
  %v459 = vsel %vm456, %v458, %v454
  %v460 = vmul.f32 1.0, %v459
  %v461 = vrcp.pop %v382
  %v462 = vmul.f32 %v382, %v461
  %v463 = vsub.f32 1.0, %v462
  %v464 = vmul.f32 %v461, %v463
  %v465 = vadd.f32 %v461, %v464
  %vm466 = vweird.f32 %v382
  %vm467 = vweird.f32 %v461
  %vm468 = vmor %vm466, %vm467
  %v469 = vsel %vm468, %v461, %v465
  %v470 = vand.u32 2147483647, %v382
  %vm471 = vcmp.eq.f32.partialorder %v470, 8.507059e+37
  %v472 = vand.u32 %v382, 2147483648
  %v473 = vor.u32 1.1754944e-38, %v472
  %v474 = vsel %vm471, %v473, %v469
  %v475 = vmul.f32 1.0, %v474
  %v476 = vrcp.pop %v383
  %v477 = vmul.f32 %v383, %v476
  %v478 = vsub.f32 1.0, %v477
  %v479 = vmul.f32 %v476, %v478
  %v480 = vadd.f32 %v476, %v479
  %vm481 = vweird.f32 %v383
  %vm482 = vweird.f32 %v476
  %vm483 = vmor %vm481, %vm482
  %v484 = vsel %vm483, %v476, %v480
  %v485 = vand.u32 2147483647, %v383
  %vm486 = vcmp.eq.f32.partialorder %v485, 8.507059e+37
  %v487 = vand.u32 %v383, 2147483648
  %v488 = vor.u32 1.1754944e-38, %v487
  %v489 = vsel %vm486, %v488, %v484
  %v490 = vmul.f32 1.0, %v489
  %v491 = vrcp.pop %v384
  %v492 = vmul.f32 %v384, %v491
  %v493 = vsub.f32 1.0, %v492
  %v494 = vmul.f32 %v491, %v493
  %v495 = vadd.f32 %v491, %v494
  %vm496 = vweird.f32 %v384
  %vm497 = vweird.f32 %v491
  %vm498 = vmor %vm496, %vm497
  %v499 = vsel %vm498, %v491, %v495
  %v500 = vand.u32 2147483647, %v384
  %vm501 = vcmp.eq.f32.partialorder %v500, 8.507059e+37
  %v502 = vand.u32 %v384, 2147483648
  %v503 = vor.u32 1.1754944e-38, %v502
  %v504 = vsel %vm501, %v503, %v499
  %v505 = vmul.f32 1.0, %v504
  %v506 = vrcp.pop %v385
  %v507 = vmul.f32 %v385, %v506
  %v508 = vsub.f32 1.0, %v507
  %v509 = vmul.f32 %v506, %v508
  %v510 = vadd.f32 %v506, %v509
  %vm511 = vweird.f32 %v385
  %vm512 = vweird.f32 %v506
  %vm513 = vmor %vm511, %vm512
  %v514 = vsel %vm513, %v506, %v510
  %v515 = vand.u32 2147483647, %v385
  %vm516 = vcmp.eq.f32.partialorder %v515, 8.507059e+37
  %v517 = vand.u32 %v385, 2147483648
  %v518 = vor.u32 1.1754944e-38, %v517
  %v519 = vsel %vm516, %v518, %v514
  %v520 = vmul.f32 1.0, %v519
  %v521 = vmul.f32 %v315, %v400
  %v522 = vmul.f32 %v318, %v415
  %v523 = vmul.f32 %v321, %v430
  %v524 = vmul.f32 %v324, %v445
  %v525 = vmul.f32 %v327, %v460
  %v526 = vmul.f32 %v330, %v475
  %v527 = vmul.f32 %v333, %v490
  %v528 = vmul.f32 %v336, %v505
  %v529 = vmul.f32 %v339, %v520
  %530 = vst [vmem:[%s5] sm:$0xff] %v521
  %531 = vst [vmem:[%s5 + $0x8] sm:$0xff] %v522
  %532 = vst [vmem:[%s5 + $0x10] sm:$0xff] %v523
  %533 = vst [vmem:[%s5 + $0x18] sm:$0xff] %v524
  %534 = vst [vmem:[%s5 + $0x20] sm:$0xff] %v525
  %535 = vst [vmem:[%s5 + $0x28] sm:$0xff] %v526
  %536 = vst [vmem:[%s5 + $0x30] sm:$0xff] %v527
  %537 = vst [vmem:[%s5 + $0x38] sm:$0xff] %v528
  %538 = vst [vmem:[%s5 + $0x40] sm:$0xf] %v529
  // Predicated region
  $region22: #{residual_attention_block.20} parent=0 // pred_check
    _
  $region23: #{residual_attention_block.20} parent=0 // pred_check_branch
    %540 = sbr.rel (0) target = $region25
  $region24: #{residual_attention_block.20} parent=0 // pred_region
    _
  $region25: #{residual_attention_block.20} parent=0 // pred_fallthru
    _
  // Predicated region
  $region26: #{residual_attention_block.20} parent=0 // pred_check
    _
  $region27: #{residual_attention_block.20} parent=0 // pred_check_branch
    %542 = sbr.rel (0) target = $region29
  $region28: #{residual_attention_block.20} parent=0 // pred_region
    _
  $region29: #{residual_attention_block.20} parent=0 // pred_fallthru
    _

// kernel: residual_attention_block.21
$region0: #{residual_attention_block.21}
  #allocation0 [shape = 'u32[]', space=smem, size = 0x4, offset = 0x4, fixed_abs, tag = 'smem constant byte address 0x4 - core index']
  #allocation1 [shape = 'u32[72,128]{1,0:T(1,128)}', space=vmem, size = 0x9000, scoped, tag = 'internal scratch']
  #allocation2 [shape = 'f32[68,32]{1,0:T(8,128)}', space=vmem, size = 0x9000, scoped, tag = 'scratch operand']
  %s0 = inlined_call_operand.vmem [shape: f32[68,128], index: 0, kind: input, shape index: {}]
  %s1 = inlined_call_operand.vmem [shape: f32[128,32], index: 1, kind: input, shape index: {}]
  %s2 = inlined_call_operand.vmem [shape: f32[1,32], index: 2, kind: input, shape index: {}]
  %s3 = inlined_call_operand.vmem [shape: f32[68,32], index: 3, kind: input, shape index: {}]
  %s4 = inlined_call_operand.vmem [shape: f32[68,32], index: 4, kind: output, shape index: {}]
  %s5 = sld [smem:[#allocation0]]
  $region34: #{residual_attention_block.21} parent=0
    _
  %s7 = ssub.s32 1, %s5
  %s8 = scalar_select 0, %s7, %s5
  // Predicated region
  $region2: #{residual_attention_block.21} parent=0 // pred_check
    _
  $region3: #{residual_attention_block.21} parent=0 // pred_check_branch
    %10 = sbr.rel (0) target = $region5
  $region4: #{residual_attention_block.21} parent=0 // pred_region
    _
  $region5: #{residual_attention_block.21} parent=0 // pred_fallthru
    _
  // Predicated region
  $region6: #{residual_attention_block.21} parent=0 // pred_check
    _
  $region7: #{residual_attention_block.21} parent=0 // pred_check_branch
    %12 = sbr.rel (0) target = $region9
  $region8: #{residual_attention_block.21} parent=0 // pred_region
    _
  $region9: #{residual_attention_block.21} parent=0 // pred_fallthru
    _
  // Predicated region
  $region10: #{residual_attention_block.21} parent=0 // pred_check
    _
  $region11: #{residual_attention_block.21} parent=0 // pred_check_branch
    %14 = sbr.rel (0) target = $region13
  $region12: #{residual_attention_block.21} parent=0 // pred_region
    _
  $region13: #{residual_attention_block.21} parent=0 // pred_fallthru
    _
  // Predicated region
  $region14: #{residual_attention_block.21} parent=0 // pred_check
    _
  $region15: #{residual_attention_block.21} parent=0 // pred_check_branch
    %16 = sbr.rel (0) target = $region17
  $region16: #{residual_attention_block.21} parent=0 // pred_region
    _
  $region17: #{residual_attention_block.21} parent=0 // pred_fallthru
    _
  %p17 = scmp.eq.s32.totalorder 0, 0
  // Predicated region
  $region18: #{residual_attention_block.21} parent=0 // pred_check
    %p18 = pneg %p17
  $region19: #{residual_attention_block.21} parent=0 // pred_check_branch
    %20 = sbr.rel (%p18) target = $region21
  $region20: #{residual_attention_block.21} parent=0 // pred_region
    %vm21 = vcmask 261120
    %22 = vst.msk [vmem:[#allocation2] sm:$0xff] %vm21, 0.0
    %23 = vst.msk [vmem:[#allocation2 + $0x8] sm:$0xff] %vm21, 0.0
    %24 = vst.msk [vmem:[#allocation2 + $0x10] sm:$0xff] %vm21, 0.0
    %25 = vst.msk [vmem:[#allocation2 + $0x18] sm:$0xff] %vm21, 0.0
    %26 = vst.msk [vmem:[#allocation2 + $0x20] sm:$0xff] %vm21, 0.0
    %27 = vst.msk [vmem:[#allocation2 + $0x28] sm:$0xff] %vm21, 0.0
    %28 = vst.msk [vmem:[#allocation2 + $0x30] sm:$0xff] %vm21, 0.0
    %29 = vst.msk [vmem:[#allocation2 + $0x38] sm:$0xff] %vm21, 0.0
    %vm30 = vcmask 257024
    %31 = vst.msk [vmem:[#allocation2 + $0x40] sm:$0xf] %vm30, 0.0
  $region21: #{residual_attention_block.21} parent=0 // pred_fallthru
    _
  %v32 = vld [vmem:[#allocation2] sm:$0xff]
  %v33 = vld [vmem:[#allocation2 + $0x8] sm:$0xff]
  %v34 = vld [vmem:[#allocation2 + $0x10] sm:$0xff]
  %v35 = vld [vmem:[#allocation2 + $0x18] sm:$0xff]
  %v36 = vld [vmem:[#allocation2 + $0x20] sm:$0xff]
  %v37 = vld [vmem:[#allocation2 + $0x28] sm:$0xff]
  %v38 = vld [vmem:[#allocation2 + $0x30] sm:$0xff]
  %v39 = vld [vmem:[#allocation2 + $0x38] sm:$0xff]
  %v40 = vld [vmem:[#allocation2 + $0x40] sm:$0xf]
  %v41 = vld [vmem:[%s0] sm:$0xff]
  %v42 = vld [vmem:[%s0 + $0x8] sm:$0xff]
  %v43 = vld [vmem:[%s0 + $0x10] sm:$0xff]
  %v44 = vld [vmem:[%s0 + $0x18] sm:$0xff]
  %v45 = vld [vmem:[%s0 + $0x20] sm:$0xff]
  %v46 = vld [vmem:[%s0 + $0x28] sm:$0xff]
  %v47 = vld [vmem:[%s0 + $0x30] sm:$0xff]
  %v48 = vld [vmem:[%s0 + $0x38] sm:$0xff]
  %v49 = vld [vmem:[%s0 + $0x40] sm:$0xf]
  %v50 = vld [vmem:[%s1] sm:$0xff]
  %v51 = vld [vmem:[%s1 + $0x8] sm:$0xff]
  %v52 = vld [vmem:[%s1 + $0x10] sm:$0xff]
  %v53 = vld [vmem:[%s1 + $0x18] sm:$0xff]
  %v54 = vld [vmem:[%s1 + $0x20] sm:$0xff]
  %v55 = vld [vmem:[%s1 + $0x28] sm:$0xff]
  %v56 = vld [vmem:[%s1 + $0x30] sm:$0xff]
  %v57 = vld [vmem:[%s1 + $0x38] sm:$0xff]
  %v58 = vld [vmem:[%s1 + $0x40] sm:$0xff]
  %v59 = vld [vmem:[%s1 + $0x48] sm:$0xff]
  %v60 = vld [vmem:[%s1 + $0x50] sm:$0xff]
  %v61 = vld [vmem:[%s1 + $0x58] sm:$0xff]
  %v62 = vld [vmem:[%s1 + $0x60] sm:$0xff]
  %v63 = vld [vmem:[%s1 + $0x68] sm:$0xff]
  %v64 = vld [vmem:[%s1 + $0x70] sm:$0xff]
  %v65 = vld [vmem:[%s1 + $0x78] sm:$0xff]
  %66 = vmatpush.msra.mxu0 %v65
  %67 = vmatpush.msra.mxu0 %v64
  %68 = vmatpush.msra.mxu0 %v63
  %69 = vmatpush.msra.mxu0 %v62
  %70 = vmatpush.msra.mxu0 %v61
  %71 = vmatpush.msra.mxu0 %v60
  %72 = vmatpush.msra.mxu0 %v59
  %73 = vmatpush.msra.mxu0 %v58
  %74 = vmatpush.msra.mxu0 %v57
  %75 = vmatpush.msra.mxu0 %v56
  %76 = vmatpush.msra.mxu0 %v55
  %77 = vmatpush.msra.mxu0 %v54
  %78 = vmatpush.msra.mxu0 %v53
  %79 = vmatpush.msra.mxu0 %v52
  %80 = vmatpush.msra.mxu0 %v51
  %81 = vmatpush.msra.mxu0 %v50
  %82 = vmatmul.f32.gmra.mxu0 %v41
  %v83 = vpop.f32.mrf.mxu0
  %v84 = vadd.f32 0.0, %v83
  %85 = vmatmul.f32.gmra.mxu0 %v42
  %v86 = vpop.f32.mrf.mxu0
  %v87 = vadd.f32 0.0, %v86
  %88 = vmatmul.f32.gmra.mxu0 %v43
  %v89 = vpop.f32.mrf.mxu0
  %v90 = vadd.f32 0.0, %v89
  %91 = vmatmul.f32.gmra.mxu0 %v44
  %v92 = vpop.f32.mrf.mxu0
  %v93 = vadd.f32 0.0, %v92
  %94 = vmatmul.f32.gmra.mxu0 %v45
  %v95 = vpop.f32.mrf.mxu0
  %v96 = vadd.f32 0.0, %v95
  %97 = vmatmul.f32.gmra.mxu0 %v46
  %v98 = vpop.f32.mrf.mxu0
  %v99 = vadd.f32 0.0, %v98
  %100 = vmatmul.f32.gmra.mxu0 %v47
  %v101 = vpop.f32.mrf.mxu0
  %v102 = vadd.f32 0.0, %v101
  %103 = vmatmul.f32.gmra.mxu0 %v48
  %v104 = vpop.f32.mrf.mxu0
  %v105 = vadd.f32 0.0, %v104
  %106 = vmatmul.f32.gmra.mxu0 %v49
  %v107 = vpop.f32.mrf.mxu0
  %v108 = vadd.f32 0.0, %v107
  %109 = vdwg.mxu0
  %v110 = vadd.f32 %v32, %v84
  %v111 = vadd.f32 %v33, %v87
  %v112 = vadd.f32 %v34, %v90
  %v113 = vadd.f32 %v35, %v93
  %v114 = vadd.f32 %v36, %v96
  %v115 = vadd.f32 %v37, %v99
  %v116 = vadd.f32 %v38, %v102
  %v117 = vadd.f32 %v39, %v105
  %v118 = vadd.f32 %v40, %v108
  %vm119 = vcmask 261120
  %120 = vst.msk [vmem:[#allocation2] sm:$0xff] %vm119, %v110
  %121 = vst.msk [vmem:[#allocation2 + $0x8] sm:$0xff] %vm119, %v111
  %122 = vst.msk [vmem:[#allocation2 + $0x10] sm:$0xff] %vm119, %v112
  %123 = vst.msk [vmem:[#allocation2 + $0x18] sm:$0xff] %vm119, %v113
  %124 = vst.msk [vmem:[#allocation2 + $0x20] sm:$0xff] %vm119, %v114
  %125 = vst.msk [vmem:[#allocation2 + $0x28] sm:$0xff] %vm119, %v115
  %126 = vst.msk [vmem:[#allocation2 + $0x30] sm:$0xff] %vm119, %v116
  %127 = vst.msk [vmem:[#allocation2 + $0x38] sm:$0xff] %vm119, %v117
  %vm128 = vcmask 257024
  %129 = vst.msk [vmem:[#allocation2 + $0x40] sm:$0xf] %vm128, %v118
  // Predicated region
  $region22: #{residual_attention_block.21} parent=0 // pred_check
    %p130 = pneg %p17
  $region23: #{residual_attention_block.21} parent=0 // pred_check_branch
    %132 = sbr.rel (%p130) target = $region25
  $region24: #{residual_attention_block.21} parent=0 // pred_region
    %v133 = vld [vmem:[#allocation2] sm:$0xff]
    %v134 = vld [vmem:[#allocation2 + $0x8] sm:$0xff]
    %v135 = vld [vmem:[#allocation2 + $0x10] sm:$0xff]
    %v136 = vld [vmem:[#allocation2 + $0x18] sm:$0xff]
    %v137 = vld [vmem:[#allocation2 + $0x20] sm:$0xff]
    %v138 = vld [vmem:[#allocation2 + $0x28] sm:$0xff]
    %v139 = vld [vmem:[#allocation2 + $0x30] sm:$0xff]
    %v140 = vld [vmem:[#allocation2 + $0x38] sm:$0xff]
    %v141 = vld [vmem:[#allocation2 + $0x40] sm:$0xf]
    %v142 = vld [vmem:[%s2] sm:$0x1]
    %v144 = vperm.slane %v142, 0
    %v146 = vadd.f32 %v133, %v144
    %v147 = vadd.f32 %v134, %v144
    %v148 = vadd.f32 %v135, %v144
    %v149 = vadd.f32 %v136, %v144
    %v150 = vadd.f32 %v137, %v144
    %v151 = vadd.f32 %v138, %v144
    %v152 = vadd.f32 %v139, %v144
    %v153 = vadd.f32 %v140, %v144
    %v154 = vadd.f32 %v141, %v144
    %v155 = vld [vmem:[%s3] sm:$0xff]
    %v156 = vld [vmem:[%s3 + $0x8] sm:$0xff]
    %v157 = vld [vmem:[%s3 + $0x10] sm:$0xff]
    %v158 = vld [vmem:[%s3 + $0x18] sm:$0xff]
    %v159 = vld [vmem:[%s3 + $0x20] sm:$0xff]
    %v160 = vld [vmem:[%s3 + $0x28] sm:$0xff]
    %v161 = vld [vmem:[%s3 + $0x30] sm:$0xff]
    %v162 = vld [vmem:[%s3 + $0x38] sm:$0xff]
    %v163 = vld [vmem:[%s3 + $0x40] sm:$0xf]
    %v164 = vadd.f32 %v146, %v155
    %v165 = vadd.f32 %v147, %v156
    %v166 = vadd.f32 %v148, %v157
    %v167 = vadd.f32 %v149, %v158
    %v168 = vadd.f32 %v150, %v159
    %v169 = vadd.f32 %v151, %v160
    %v170 = vadd.f32 %v152, %v161
    %v171 = vadd.f32 %v153, %v162
    %v172 = vadd.f32 %v154, %v163
    %173 = vst.msk [vmem:[%s4] sm:$0xff] %vm119, %v164
    %174 = vst.msk [vmem:[%s4 + $0x8] sm:$0xff] %vm119, %v165
    %175 = vst.msk [vmem:[%s4 + $0x10] sm:$0xff] %vm119, %v166
    %176 = vst.msk [vmem:[%s4 + $0x18] sm:$0xff] %vm119, %v167
    %177 = vst.msk [vmem:[%s4 + $0x20] sm:$0xff] %vm119, %v168
    %178 = vst.msk [vmem:[%s4 + $0x28] sm:$0xff] %vm119, %v169
    %179 = vst.msk [vmem:[%s4 + $0x30] sm:$0xff] %vm119, %v170
    %180 = vst.msk [vmem:[%s4 + $0x38] sm:$0xff] %vm119, %v171
    %181 = vst.msk [vmem:[%s4 + $0x40] sm:$0xf] %vm128, %v172
  $region25: #{residual_attention_block.21} parent=0 // pred_fallthru
    _
  // Predicated region
  $region26: #{residual_attention_block.21} parent=0 // pred_check
    _
  $region27: #{residual_attention_block.21} parent=0 // pred_check_branch
    %183 = sbr.rel (0) target = $region29
  $region28: #{residual_attention_block.21} parent=0 // pred_region
    _
  $region29: #{residual_attention_block.21} parent=0 // pred_fallthru
    _
  // Predicated region
  $region30: #{residual_attention_block.21} parent=0 // pred_check
    _
  $region31: #{residual_attention_block.21} parent=0 // pred_check_branch
    %185 = sbr.rel (0) target = $region33
  $region32: #{residual_attention_block.21} parent=0 // pred_region
    _
  $region33: #{residual_attention_block.21} parent=0 // pred_fallthru
    _

</llo_original>
